<compile_context>
chip_gen: v7x
topology: tpu7x:2x2x1
jax: 0.10.0
libtpu: 0.0.40
codegen_flags: <defaults>
</compile_context>

<pallas_src>
import functools

import jax
import jax.numpy as jnp
from jax.experimental import pallas as pl
from jax.experimental.pallas import tpu as pltpu


def _conv_block_kernel(x_ref, w1_ref, sh1_ref, w2_ref, sh2_ref, o_ref,
                       xpad_ref, hpad_ref, *, H, W, compute_dtype):
    """Fused (conv3x3 + BN + ReLU) x 2 for one block of batch elements.

    x_ref:    (BB, H, W, Cin)       unpadded NHWC input tile
    w1_ref:   (9*Cin, Cout)         im2col weights, BN scale folded in
    sh1_ref:  (1, Cout)             folded BN/bias shift (f32)
    w2_ref:   (9*Cout, Cout)
    sh2_ref:  (1, Cout)
    o_ref:    (BB, Cout, H*W)       channels-first, lane-dense output (== NCHW)
    xpad_ref: (H+2, W+2, Cin)  f32  VMEM halo scratch for the input
    hpad_ref: (H+2, W+2, Cout) f32  VMEM halo scratch for the stage-1 activation
    """
    # Zero the halo buffers once per grid step: the borders provide the conv
    # zero-padding; interiors are overwritten below for every batch element.
    xpad_ref[...] = jnp.zeros_like(xpad_ref)
    hpad_ref[...] = jnp.zeros_like(hpad_ref)

    def im2col(padded):
        # padded: (H+2, W+2, C) -> (H, W, 9*C); column order (kh, kw, c)
        # matches the wrapper-side weight reshape.
        taps = [padded[kh:kh + H, kw:kw + W, :]
                for kh in range(3) for kw in range(3)]
        return jnp.concatenate(taps, axis=-1)

    def conv_bn_relu(padded, w, shift):
        p = im2col(padded).astype(compute_dtype)          # MXU operands
        y = jnp.einsum("hwk,kd->hwd", p, w,
                       preferred_element_type=jnp.float32)  # f32 accumulate
        return jnp.maximum(y + shift, 0.0)                 # (H, W, Cout) f32

    w1 = w1_ref[...]
    w2 = w2_ref[...]
    sh1 = sh1_ref[0]          # (Cout,) f32
    sh2 = sh2_ref[0]

    for b in range(x_ref.shape[0]):          # static unroll over batch-in-block
        # Stage 1: pad input into VMEM, conv + folded-BN + ReLU.
        xpad_ref[1:H + 1, 1:W + 1, :] = x_ref[b].astype(xpad_ref.dtype)
        h1 = conv_bn_relu(xpad_ref[...], w1, sh1)
        # Stage 2: stage-1 activation never leaves VMEM.
        hpad_ref[1:H + 1, 1:W + 1, :] = h1.astype(hpad_ref.dtype)
        h2 = conv_bn_relu(hpad_ref[...], w2, sh2)
        # Channels-first lane-dense store: (Cout, H*W) -- already NCHW layout.
        o_ref[b] = h2.reshape(H * W, -1).T.astype(o_ref.dtype)


def conv_block_apply(x_nhwc, w1_2d, sh1, w2_2d, sh2, *,
                     batch_block, out_dtype, compute_dtype):
    N, H, W, Cin = x_nhwc.shape
    Cout = w1_2d.shape[1]
    HW = H * W
    kernel = functools.partial(_conv_block_kernel, H=H, W=W,
                               compute_dtype=compute_dtype)
    return pl.pallas_call(
        kernel,
        out_shape=jax.ShapeDtypeStruct((N, Cout, HW), out_dtype),
        grid_spec=pltpu.PrefetchScalarGridSpec(
            num_scalar_prefetch=0,
            grid=(N // batch_block,),
            in_specs=[
                pl.BlockSpec((batch_block, H, W, Cin), lambda n: (n, 0, 0, 0)),
                pl.BlockSpec((9 * Cin, Cout), lambda n: (0, 0)),
                pl.BlockSpec((1, Cout), lambda n: (0, 0)),
                pl.BlockSpec((9 * Cout, Cout), lambda n: (0, 0)),
                pl.BlockSpec((1, Cout), lambda n: (0, 0)),
            ],
            out_specs=pl.BlockSpec((batch_block, Cout, HW),
                                   lambda n: (n, 0, 0)),
            scratch_shapes=[
                pltpu.VMEM((H + 2, W + 2, Cin), jnp.float32),
                pltpu.VMEM((H + 2, W + 2, Cout), jnp.float32),
            ],
        ),
        compiler_params=pltpu.CompilerParams(
            dimension_semantics=("parallel",),
            vmem_limit_bytes=32 * 1024 * 1024,
        ),
    )(x_nhwc, w1_2d, sh1, w2_2d, sh2)


def _fold_bn(conv_bias, gamma, beta, mean, var, eps=1e-5):
    scale = gamma / jnp.sqrt(var + eps)
    shift = beta + (conv_bias - mean) * scale
    return scale, shift


def _fold_weights(w_oihw, scale, compute_dtype):
    # (Cout, Cin, 3, 3) -> (9*Cin, Cout), row order (kh, kw, cin), BN scale folded.
    cout, cin = w_oihw.shape[0], w_oihw.shape[1]
    w2d = jnp.transpose(w_oihw, (2, 3, 1, 0)).reshape(9 * cin, cout)
    return (w2d * scale[None, :]).astype(compute_dtype)


def _pick_batch_block(n):
    # Batch several images per grid step to amortize the ~0.35us per-step
    # overhead, but keep >= 2 steps so dual-TensorCore parts (megacore) still
    # get parallel work through dimension_semantics=("parallel",).
    for bb in (8, 4, 2):
        if n % bb == 0 and n // bb >= 2:
            return bb
    return 1


def conv_block_forward(x_nchw, p, *, compute_dtype=jnp.float32, batch_block=None):
    """Matches ConvBlock.forward with activation='relu' (BatchNorm in eval mode)."""
    N, Cin, H, W = x_nchw.shape
    Cout = p["w1"].shape[0]
    if batch_block is None:
        batch_block = _pick_batch_block(N)

    s1, t1 = _fold_bn(p["b1"], p["bn1_gamma"], p["bn1_beta"],
                      p["bn1_mean"], p["bn1_var"])
    s2, t2 = _fold_bn(p["b2"], p["bn2_gamma"], p["bn2_beta"],
                      p["bn2_mean"], p["bn2_var"])
    w1_2d = _fold_weights(p["w1"], s1, compute_dtype)
    w2_2d = _fold_weights(p["w2"], s2, compute_dtype)
    sh1 = t1.reshape(1, Cout).astype(jnp.float32)
    sh2 = t2.reshape(1, Cout).astype(jnp.float32)

    # Only remaining layout op: NCHW -> NHWC on the (small) input.  The kernel
    # emits channels-first (Cout, H*W), so the output is already NCHW.
    # TODO(synk): keep activations NHWC end-to-end in a full network to drop this too.
    x_nhwc = jnp.transpose(x_nchw, (0, 2, 3, 1))

    out = conv_block_apply(x_nhwc, w1_2d, sh1, w2_2d, sh2,
                           batch_block=batch_block,
                           out_dtype=x_nchw.dtype,
                           compute_dtype=compute_dtype)
    return out.reshape(N, Cout, H, W)


def make_conv_block_params(key, in_channels, out_channels):
    ks = jax.random.split(key, 10)
    p = {}
    # PyTorch Conv2d weight layout: (Cout, Cin, 3, 3).
    p["w1"] = 0.1 * jax.random.normal(ks[0], (out_channels, in_channels, 3, 3), jnp.float32)
    p["b1"] = 0.1 * jax.random.normal(ks[1], (out_channels,), jnp.float32)
    p["bn1_gamma"] = 1.0 + 0.1 * jax.random.normal(ks[2], (out_channels,), jnp.float32)
    p["bn1_beta"] = 0.1 * jax.random.normal(ks[3], (out_channels,), jnp.float32)
    p["bn1_mean"] = 0.05 * jax.random.normal(ks[4], (out_channels,), jnp.float32)
    p["bn1_var"] = 0.5 + jax.random.uniform(ks[5], (out_channels,), jnp.float32)
    p["w2"] = 0.1 * jax.random.normal(ks[6], (out_channels, out_channels, 3, 3), jnp.float32)
    p["b2"] = 0.1 * jax.random.normal(ks[7], (out_channels,), jnp.float32)
    p["bn2_gamma"] = 1.0 + 0.1 * jax.random.normal(ks[8], (out_channels,), jnp.float32)
    p["bn2_beta"] = 0.1 * jax.random.normal(ks[9], (out_channels,), jnp.float32)
    p["bn2_mean"] = jnp.zeros((out_channels,), jnp.float32)
    p["bn2_var"] = jnp.ones((out_channels,), jnp.float32)
    return p


def _reference_forward(x_nchw, p):
    """Plain-JAX reference (NCHW, eval-mode BN) for validation."""
    def conv(x, w, b):
        y = jax.lax.conv_general_dilated(
            x, w, window_strides=(1, 1), padding="SAME",
            dimension_numbers=("NCHW", "OIHW", "NCHW"))
        return y + b[None, :, None, None]

    def bn(y, g, bt, m, v, eps=1e-5):
        inv = g / jnp.sqrt(v + eps)
        return (y - m[None, :, None, None]) * inv[None, :, None, None] + bt[None, :, None, None]

    h = jax.nn.relu(bn(conv(x_nchw, p["w1"], p["b1"]),
                       p["bn1_gamma"], p["bn1_beta"], p["bn1_mean"], p["bn1_var"]))
    h = jax.nn.relu(bn(conv(h, p["w2"], p["b2"]),
                       p["bn2_gamma"], p["bn2_beta"], p["bn2_mean"], p["bn2_var"]))
    return h


if __name__ == "__main__":
    key = jax.random.PRNGKey(0)
    k_x, k_p = jax.random.split(key)

    N, Cin, Cout, H, W = 2, 4, 8, 16, 16
    x = jax.random.normal(k_x, (N, Cin, H, W), jnp.float32)   # NCHW like PyTorch
    params = make_conv_block_params(k_p, Cin, Cout)

    ref = jax.block_until_ready(_reference_forward(x, params))

    # f32 path: strict check against the reference.
    out = jax.block_until_ready(conv_block_forward(x, params))
    assert out.shape == (N, Cout, H, W)
    assert jnp.allclose(out, ref, atol=1e-3, rtol=1e-3), "f32 kernel mismatch vs reference"

    # bf16 MXU-operand fast path (v6e/v7x): loose tolerance.
    out_bf16 = jax.block_until_ready(
        conv_block_forward(x, params, compute_dtype=jnp.bfloat16))
    assert out_bf16.shape == (N, Cout, H, W)
    assert jnp.allclose(out_bf16, ref, atol=1e-1, rtol=1e-1), "bf16 kernel mismatch vs reference"

    print("KERNEL_OK")
</pallas_src>

<mosaic_0001>
module attributes {stable_mosaic.version = 11 : i64} {
  func.func @_conv_block_kernel(%arg0: i32, %arg1: memref<1x16x16x4xf32, #tpu.memory_space<vmem>>, %arg2: memref<36x8xf32, #tpu.memory_space<vmem>>, %arg3: memref<1x8xf32, #tpu.memory_space<vmem>>, %arg4: memref<72x8xf32, #tpu.memory_space<vmem>>, %arg5: memref<1x8xf32, #tpu.memory_space<vmem>>, %arg6: memref<1x8x256xf32, #tpu.memory_space<vmem>>, %arg7: memref<18x18x4xf32, #tpu.memory_space<vmem>>, %arg8: memref<18x18x8xf32, #tpu.memory_space<vmem>>) attributes {dimension_semantics = [#tpu.dimension_semantics<parallel>], iteration_bounds = array<i64: 2>, scalar_prefetch = 0 : i64, scratch_operands = 2 : i64, tpu.core_type = #tpu.core_type<tc>, window_params = [{transform_indices = @transform_0, window_bounds = array<i64: 1, 16, 16, 4>}, {pipeline_mode = #tpu.pipeline_mode<synchronous>, transform_indices = @transform_1, window_bounds = array<i64: 36, 8>}, {pipeline_mode = #tpu.pipeline_mode<synchronous>, transform_indices = @transform_2, window_bounds = array<i64: 1, 8>}, {pipeline_mode = #tpu.pipeline_mode<synchronous>, transform_indices = @transform_3, window_bounds = array<i64: 72, 8>}, {pipeline_mode = #tpu.pipeline_mode<synchronous>, transform_indices = @transform_4, window_bounds = array<i64: 1, 8>}, {transform_indices = @transform_5, window_bounds = array<i64: 1, 8, 256>}]} {
    %cst = arith.constant 0.000000e+00 : f32
    %0 = vector.broadcast %cst : f32 to vector<18x18x4xf32>
    %c0 = arith.constant 0 : index
    %c0_0 = arith.constant 0 : index
    %c0_1 = arith.constant 0 : index
    %1 = vector.load %arg7[%c0, %c0_0, %c0_1] : memref<18x18x4xf32, #tpu.memory_space<vmem>>, vector<18x18x4xf32>
    tpu.vector_store %arg7[%c0, %c0_0, %c0_1], %0 {strides = array<i32>} : memref<18x18x4xf32, #tpu.memory_space<vmem>>, vector<18x18x4xf32>,
    %cst_2 = arith.constant 0.000000e+00 : f32
    %2 = vector.broadcast %cst_2 : f32 to vector<18x18x8xf32>
    %c0_3 = arith.constant 0 : index
    %c0_4 = arith.constant 0 : index
    %c0_5 = arith.constant 0 : index
    %3 = vector.load %arg8[%c0_3, %c0_4, %c0_5] : memref<18x18x8xf32, #tpu.memory_space<vmem>>, vector<18x18x8xf32>
    tpu.vector_store %arg8[%c0_3, %c0_4, %c0_5], %2 {strides = array<i32>} : memref<18x18x8xf32, #tpu.memory_space<vmem>>, vector<18x18x8xf32>,
    %c0_6 = arith.constant 0 : index
    %c0_7 = arith.constant 0 : index
    %4 = vector.load %arg2[%c0_6, %c0_7] : memref<36x8xf32, #tpu.memory_space<vmem>>, vector<36x8xf32>
    %c0_8 = arith.constant 0 : index
    %c0_9 = arith.constant 0 : index
    %5 = vector.load %arg4[%c0_8, %c0_9] : memref<72x8xf32, #tpu.memory_space<vmem>>, vector<72x8xf32>
    %c0_10 = arith.constant 0 : index
    %c0_11 = arith.constant 0 : index
    %6 = vector.load %arg3[%c0_10, %c0_11] : memref<1x8xf32, #tpu.memory_space<vmem>>, vector<1x8xf32>
    %7 = vector.shape_cast %6 : vector<1x8xf32> to vector<8xf32>
    %c0_12 = arith.constant 0 : index
    %c0_13 = arith.constant 0 : index
    %8 = vector.load %arg5[%c0_12, %c0_13] : memref<1x8xf32, #tpu.memory_space<vmem>>, vector<1x8xf32>
    %9 = vector.shape_cast %8 : vector<1x8xf32> to vector<8xf32>
    %c0_14 = arith.constant 0 : index
    %c0_15 = arith.constant 0 : index
    %c0_16 = arith.constant 0 : index
    %c0_17 = arith.constant 0 : index
    %10 = vector.load %arg1[%c0_14, %c0_15, %c0_16, %c0_17] : memref<1x16x16x4xf32, #tpu.memory_space<vmem>>, vector<1x16x16x4xf32>
    %11 = vector.shape_cast %10 : vector<1x16x16x4xf32> to vector<16x16x4xf32>
    %c1 = arith.constant 1 : index
    %c1_18 = arith.constant 1 : index
    %c0_19 = arith.constant 0 : index
    %12 = vector.load %arg7[%c1, %c1_18, %c0_19] : memref<18x18x4xf32, #tpu.memory_space<vmem>>, vector<16x16x4xf32>
    tpu.vector_store %arg7[%c1, %c1_18, %c0_19], %11 {strides = array<i32>} : memref<18x18x4xf32, #tpu.memory_space<vmem>>, vector<16x16x4xf32>,
    %c0_20 = arith.constant 0 : index
    %c0_21 = arith.constant 0 : index
    %c0_22 = arith.constant 0 : index
    %13 = vector.load %arg7[%c0_20, %c0_21, %c0_22] : memref<18x18x4xf32, #tpu.memory_space<vmem>>, vector<18x18x4xf32>
    %14 = vector.extract_strided_slice %13 {offsets = [0, 0, 0], sizes = [16, 16, 4], strides = [1, 1, 1]} : vector<18x18x4xf32> to vector<16x16x4xf32>
    %15 = vector.extract_strided_slice %13 {offsets = [0, 1, 0], sizes = [16, 16, 4], strides = [1, 1, 1]} : vector<18x18x4xf32> to vector<16x16x4xf32>
    %16 = vector.extract_strided_slice %13 {offsets = [0, 2, 0], sizes = [16, 16, 4], strides = [1, 1, 1]} : vector<18x18x4xf32> to vector<16x16x4xf32>
    %17 = vector.extract_strided_slice %13 {offsets = [1, 0, 0], sizes = [16, 16, 4], strides = [1, 1, 1]} : vector<18x18x4xf32> to vector<16x16x4xf32>
    %18 = vector.extract_strided_slice %13 {offsets = [1, 1, 0], sizes = [16, 16, 4], strides = [1, 1, 1]} : vector<18x18x4xf32> to vector<16x16x4xf32>
    %19 = vector.extract_strided_slice %13 {offsets = [1, 2, 0], sizes = [16, 16, 4], strides = [1, 1, 1]} : vector<18x18x4xf32> to vector<16x16x4xf32>
    %20 = vector.extract_strided_slice %13 {offsets = [2, 0, 0], sizes = [16, 16, 4], strides = [1, 1, 1]} : vector<18x18x4xf32> to vector<16x16x4xf32>
    %21 = vector.extract_strided_slice %13 {offsets = [2, 1, 0], sizes = [16, 16, 4], strides = [1, 1, 1]} : vector<18x18x4xf32> to vector<16x16x4xf32>
    %22 = vector.extract_strided_slice %13 {offsets = [2, 2, 0], sizes = [16, 16, 4], strides = [1, 1, 1]} : vector<18x18x4xf32> to vector<16x16x4xf32>
    %23 = tpu.concatenate %14, %15, %16, %17, %18, %19, %20, %21, %22 in 2 : vector<16x16x4xf32>, vector<16x16x4xf32>, vector<16x16x4xf32>, vector<16x16x4xf32>, vector<16x16x4xf32>, vector<16x16x4xf32>, vector<16x16x4xf32>, vector<16x16x4xf32>, vector<16x16x4xf32> -> vector<16x16x36xf32>
    "tpu.trace_start"() <{level = 10 : i32, message = "hwk,kd->hwd"}> : () -> ()
    %cst_23 = arith.constant dense<0.000000e+00> : vector<16x16x8xf32>
    %24 = tpu.matmul %23, %4, %cst_23 {dimension_numbers = #tpu.dot_dimension_numbers<[2], [0], [0, 1], [1], [0, 0, 0, 1, 1, 1], [], []>} : vector<16x16x36xf32>, vector<36x8xf32>, vector<16x16x8xf32> -> vector<16x16x8xf32>
    "tpu.trace_stop"() : () -> ()
    %25 = vector.shape_cast %7 : vector<8xf32> to vector<1x1x8xf32>
    %26 = vector.broadcast %25 : vector<1x1x8xf32> to vector<16x16x8xf32>
    %27 = arith.addf %24, %26 : vector<16x16x8xf32>
    %cst_24 = arith.constant 0.000000e+00 : f32
    %28 = vector.broadcast %cst_24 : f32 to vector<16x16x8xf32>
    %29 = arith.maximumf %27, %28 : vector<16x16x8xf32>
    %c1_25 = arith.constant 1 : index
    %c1_26 = arith.constant 1 : index
    %c0_27 = arith.constant 0 : index
    %30 = vector.load %arg8[%c1_25, %c1_26, %c0_27] : memref<18x18x8xf32, #tpu.memory_space<vmem>>, vector<16x16x8xf32>
    tpu.vector_store %arg8[%c1_25, %c1_26, %c0_27], %29 {strides = array<i32>} : memref<18x18x8xf32, #tpu.memory_space<vmem>>, vector<16x16x8xf32>,
    %c0_28 = arith.constant 0 : index
    %c0_29 = arith.constant 0 : index
    %c0_30 = arith.constant 0 : index
    %31 = vector.load %arg8[%c0_28, %c0_29, %c0_30] : memref<18x18x8xf32, #tpu.memory_space<vmem>>, vector<18x18x8xf32>
    %32 = vector.extract_strided_slice %31 {offsets = [0, 0, 0], sizes = [16, 16, 8], strides = [1, 1, 1]} : vector<18x18x8xf32> to vector<16x16x8xf32>
    %33 = vector.extract_strided_slice %31 {offsets = [0, 1, 0], sizes = [16, 16, 8], strides = [1, 1, 1]} : vector<18x18x8xf32> to vector<16x16x8xf32>
    %34 = vector.extract_strided_slice %31 {offsets = [0, 2, 0], sizes = [16, 16, 8], strides = [1, 1, 1]} : vector<18x18x8xf32> to vector<16x16x8xf32>
    %35 = vector.extract_strided_slice %31 {offsets = [1, 0, 0], sizes = [16, 16, 8], strides = [1, 1, 1]} : vector<18x18x8xf32> to vector<16x16x8xf32>
    %36 = vector.extract_strided_slice %31 {offsets = [1, 1, 0], sizes = [16, 16, 8], strides = [1, 1, 1]} : vector<18x18x8xf32> to vector<16x16x8xf32>
    %37 = vector.extract_strided_slice %31 {offsets = [1, 2, 0], sizes = [16, 16, 8], strides = [1, 1, 1]} : vector<18x18x8xf32> to vector<16x16x8xf32>
    %38 = vector.extract_strided_slice %31 {offsets = [2, 0, 0], sizes = [16, 16, 8], strides = [1, 1, 1]} : vector<18x18x8xf32> to vector<16x16x8xf32>
    %39 = vector.extract_strided_slice %31 {offsets = [2, 1, 0], sizes = [16, 16, 8], strides = [1, 1, 1]} : vector<18x18x8xf32> to vector<16x16x8xf32>
    %40 = vector.extract_strided_slice %31 {offsets = [2, 2, 0], sizes = [16, 16, 8], strides = [1, 1, 1]} : vector<18x18x8xf32> to vector<16x16x8xf32>
    %41 = tpu.concatenate %32, %33, %34, %35, %36, %37, %38, %39, %40 in 2 : vector<16x16x8xf32>, vector<16x16x8xf32>, vector<16x16x8xf32>, vector<16x16x8xf32>, vector<16x16x8xf32>, vector<16x16x8xf32>, vector<16x16x8xf32>, vector<16x16x8xf32>, vector<16x16x8xf32> -> vector<16x16x72xf32>
    "tpu.trace_start"() <{level = 10 : i32, message = "hwk,kd->hwd"}> : () -> ()
    %cst_31 = arith.constant dense<0.000000e+00> : vector<16x16x8xf32>
    %42 = tpu.matmul %41, %5, %cst_31 {dimension_numbers = #tpu.dot_dimension_numbers<[2], [0], [0, 1], [1], [0, 0, 0, 1, 1, 1], [], []>} : vector<16x16x72xf32>, vector<72x8xf32>, vector<16x16x8xf32> -> vector<16x16x8xf32>
    "tpu.trace_stop"() : () -> ()
    %43 = vector.shape_cast %9 : vector<8xf32> to vector<1x1x8xf32>
    %44 = vector.broadcast %43 : vector<1x1x8xf32> to vector<16x16x8xf32>
    %45 = arith.addf %42, %44 : vector<16x16x8xf32>
    %cst_32 = arith.constant 0.000000e+00 : f32
    %46 = vector.broadcast %cst_32 : f32 to vector<16x16x8xf32>
    %47 = arith.maximumf %45, %46 : vector<16x16x8xf32>
    %48 = vector.shape_cast %47 : vector<16x16x8xf32> to vector<256x8xf32>
    %49 = tpu.transpose %48, [1, 0] : vector<256x8xf32> -> vector<8x256xf32>
    %c0_33 = arith.constant 0 : index
    %c0_34 = arith.constant 0 : index
    %c0_35 = arith.constant 0 : index
    %50 = vector.load %arg6[%c0_33, %c0_34, %c0_35] : memref<1x8x256xf32, #tpu.memory_space<vmem>>, vector<1x8x256xf32>
    %51 = vector.shape_cast %50 : vector<1x8x256xf32> to vector<8x256xf32>
    %52 = vector.shape_cast %49 : vector<8x256xf32> to vector<1x8x256xf32>
    tpu.vector_store %arg6[%c0_33, %c0_34, %c0_35], %52 {strides = array<i32>} : memref<1x8x256xf32, #tpu.memory_space<vmem>>, vector<1x8x256xf32>,
    return
  }
  func.func @transform_0(%arg0: i32) -> (i32, i32, i32, i32) {
    %c0_i32 = arith.constant 0 : i32
    %c0_i32_0 = arith.constant 0 : i32
    %c0_i32_1 = arith.constant 0 : i32
    %c0_i32_2 = arith.constant 0 : i32
    return %arg0, %c0_i32, %c0_i32_0, %c0_i32_1 : i32, i32, i32, i32
  }
  func.func @transform_1(%arg0: i32) -> (i32, i32) {
    %c0_i32 = arith.constant 0 : i32
    %c0_i32_0 = arith.constant 0 : i32
    %c0_i32_1 = arith.constant 0 : i32
    return %c0_i32, %c0_i32_0 : i32, i32
  }
  func.func @transform_2(%arg0: i32) -> (i32, i32) {
    %c0_i32 = arith.constant 0 : i32
    %c0_i32_0 = arith.constant 0 : i32
    %c0_i32_1 = arith.constant 0 : i32
    return %c0_i32, %c0_i32_0 : i32, i32
  }
  func.func @transform_3(%arg0: i32) -> (i32, i32) {
    %c0_i32 = arith.constant 0 : i32
    %c0_i32_0 = arith.constant 0 : i32
    %c0_i32_1 = arith.constant 0 : i32
    return %c0_i32, %c0_i32_0 : i32, i32
  }
  func.func @transform_4(%arg0: i32) -> (i32, i32) {
    %c0_i32 = arith.constant 0 : i32
    %c0_i32_0 = arith.constant 0 : i32
    %c0_i32_1 = arith.constant 0 : i32
    return %c0_i32, %c0_i32_0 : i32, i32
  }
  func.func @transform_5(%arg0: i32) -> (i32, i32, i32) {
    %c0_i32 = arith.constant 0 : i32
    %c0_i32_0 = arith.constant 0 : i32
    %c0_i32_1 = arith.constant 0 : i32
    return %arg0, %c0_i32, %c0_i32_0 : i32, i32, i32
  }
}

</mosaic_0001>

<llo_original>
// kernel: tpu_custom_call.1
$region0: #{tpu_custom_call.1}
  #allocation0 [shape = 'u32[]', space=smem, size = 0x4, offset = 0x4, fixed_abs, tag = 'smem constant byte address 0x4 - core index']
  #allocation1 [shape = 'u32[144,128]{1,0:T(1,128)}', space=vmem, size = 0x12000, scoped, tag = 'internal scratch']
  #allocation2 [shape = 'f32[18,18,4]{2,1,0:T(8,128)}', space=vmem, size = 0x36000, scoped, tag = 'scratch operand']
  #allocation3 [shape = 'f32[18,18,8]{2,1,0:T(8,128)}', space=vmem, size = 0x36000, scoped, tag = 'scratch operand']
  %s0 = inlined_call_operand.vmem [shape: f32[2,16,16,4], index: 0, kind: input, shape index: {}]
  %s1 = inlined_call_operand.vmem [shape: f32[36,8], index: 1, kind: input, shape index: {}]
  %s2 = inlined_call_operand.vmem [shape: f32[1,8], index: 2, kind: input, shape index: {}]
  %s3 = inlined_call_operand.vmem [shape: f32[72,8], index: 3, kind: input, shape index: {}]
  %s4 = inlined_call_operand.vmem [shape: f32[1,8], index: 4, kind: input, shape index: {}]
  %s5 = inlined_call_operand.hbm [shape: f32[2,8,256], index: 5, kind: output, shape index: {}]
  %s6 = sld [smem:[#allocation0]]
  $region53: #{tpu_custom_call.1} parent=0
    _
  %s8 = ssub.s32 1, %s6
  %s9 = scalar_select 0, %s8, %s6
  $region1: #{tpu_custom_call.1} parent=0
    #allocation4 [shape = 'u8[16384]{0}', space=vmem, size = 0x4000, scoped, tag = 'output window, operand 0']
    #allocation5 [shape = 's32[2]{0}', space=sflag, size = 0x8, scoped, tag = 'scoped memory for tpu_custom_call.1']
    %10 = vsyncpa [#allocation5], 0
    %s11 = scalar_lea.sflag [#allocation5], 1
    %12 = vsyncpa %s11, 0
    loop: start=0, step=1, limit=4
    $region2: #{tpu_custom_call.1} parent=1 // loop_pre_header
      _
    $region3: #{tpu_custom_call.1} parent=1 // loop_header
      %s14 = sphi 0, %s18
      %p15 = scmp.ge.s32.totalorder %s14, 4
      %s24 = sphi 0, %s26
      %s27 = sphi 0, %s24
      %s28 = sphi 0, %s27
      %s44 = sphi 0, %s28
      %s48 = sphi 0, %s48
      %s50 = sphi 0, %s48
      %s51 = sphi 0, %s50
      %s65 = sphi 0, %s51
      %s69 = sphi 0, %s69
      %s71 = sphi 0, %s69
      %s72 = sphi 0, %s71
      %s86 = sphi 0, %s72
      %s90 = sphi 0, %s90
      %s92 = sphi 0, %s90
      %s93 = sphi 0, %s92
      %s107 = sphi 0, %s93
      %s111 = sphi 0, %s111
      %s113 = sphi 0, %s111
      %s114 = sphi 0, %s113
      %s128 = sphi 0, %s114
      %s134 = sphi 0, %s136
      %s137 = sphi 0, %s134
      %s138 = sphi 0, %s137
      %s154 = sphi 0, %s138
    $region4: #{tpu_custom_call.1} parent=1 // loop_header_branch
      %17 = sbr.rel (%p15) target = $region8
    $region5: #{tpu_custom_call.1} parent=1 // loop_body
      %s19 = ssub.s32 %s14, 1
      %s20 = ssub.s32 %s14, 2
      %s21 = sadd.s32 %s14, 1
      %s22 = ssub.s32 %s14, %s21
      %p23 = scmp.eq.s32.totalorder %s22, 0
      %s25 = sadd.s32 %s24, 1
      %s26 = scalar_select %p23, %s24, %s25
      %p29 = pneg %p23
      %p30 = scmp.eq.s32.totalorder %s14, 1
      %p31 = por %p29, %p30
      %p32 = scmp.ne.s32.totalorder %s24, %s27
      %p33 = scmp.eq.s32.totalorder %s14, 0
      %p34 = por %p32, %p33
      %p35 = scmp.ne.s32.totalorder %s24, %s27
      %p36 = scmp.eq.s32.totalorder %s19, 1
      %p37 = por %p35, %p36
      %p38 = scmp.ne.s32.totalorder %s27, %s28
      %p39 = scmp.eq.s32.totalorder %s19, 0
      %p40 = por %p38, %p39
      %p41 = scmp.ne.s32.totalorder %s27, %s28
      %p42 = scmp.eq.s32.totalorder %s20, 1
      %p43 = por %p41, %p42
      %p45 = scmp.ne.s32.totalorder %s28, %s44
      %p46 = scmp.eq.s32.totalorder %s20, 0
      %p47 = por %p45, %p46
      %s49 = sadd.s32 %s48, 1
      %p52 = scmp.eq.s32.totalorder %s14, 1
      %p53 = scmp.ne.s32.totalorder %s48, %s50
      %p54 = scmp.eq.s32.totalorder %s14, 0
      %p55 = por %p53, %p54
      %p56 = scmp.ne.s32.totalorder %s48, %s50
      %p57 = scmp.eq.s32.totalorder %s19, 1
      %p58 = por %p56, %p57
      %p59 = scmp.ne.s32.totalorder %s50, %s51
      %p60 = scmp.eq.s32.totalorder %s19, 0
      %p61 = por %p59, %p60
      %p62 = scmp.ne.s32.totalorder %s50, %s51
      %p63 = scmp.eq.s32.totalorder %s20, 1
      %p64 = por %p62, %p63
      %p66 = scmp.ne.s32.totalorder %s51, %s65
      %p67 = scmp.eq.s32.totalorder %s20, 0
      %p68 = por %p66, %p67
      %s70 = sadd.s32 %s69, 1
      %p73 = scmp.eq.s32.totalorder %s14, 1
      %p74 = scmp.ne.s32.totalorder %s69, %s71
      %p75 = scmp.eq.s32.totalorder %s14, 0
      %p76 = por %p74, %p75
      %p77 = scmp.ne.s32.totalorder %s69, %s71
      %p78 = scmp.eq.s32.totalorder %s19, 1
      %p79 = por %p77, %p78
      %p80 = scmp.ne.s32.totalorder %s71, %s72
      %p81 = scmp.eq.s32.totalorder %s19, 0
      %p82 = por %p80, %p81
      %p83 = scmp.ne.s32.totalorder %s71, %s72
      %p84 = scmp.eq.s32.totalorder %s20, 1
      %p85 = por %p83, %p84
      %p87 = scmp.ne.s32.totalorder %s72, %s86
      %p88 = scmp.eq.s32.totalorder %s20, 0
      %p89 = por %p87, %p88
      %s91 = sadd.s32 %s90, 1
      %p94 = scmp.eq.s32.totalorder %s14, 1
      %p95 = scmp.ne.s32.totalorder %s90, %s92
      %p96 = scmp.eq.s32.totalorder %s14, 0
      %p97 = por %p95, %p96
      %p98 = scmp.ne.s32.totalorder %s90, %s92
      %p99 = scmp.eq.s32.totalorder %s19, 1
      %p100 = por %p98, %p99
      %p101 = scmp.ne.s32.totalorder %s92, %s93
      %p102 = scmp.eq.s32.totalorder %s19, 0
      %p103 = por %p101, %p102
      %p104 = scmp.ne.s32.totalorder %s92, %s93
      %p105 = scmp.eq.s32.totalorder %s20, 1
      %p106 = por %p104, %p105
      %p108 = scmp.ne.s32.totalorder %s93, %s107
      %p109 = scmp.eq.s32.totalorder %s20, 0
      %p110 = por %p108, %p109
      %s112 = sadd.s32 %s111, 1
      %p115 = scmp.eq.s32.totalorder %s14, 1
      %p116 = scmp.ne.s32.totalorder %s111, %s113
      %p117 = scmp.eq.s32.totalorder %s14, 0
      %p118 = por %p116, %p117
      %p119 = scmp.ne.s32.totalorder %s111, %s113
      %p120 = scmp.eq.s32.totalorder %s19, 1
      %p121 = por %p119, %p120
      %p122 = scmp.ne.s32.totalorder %s113, %s114
      %p123 = scmp.eq.s32.totalorder %s19, 0
      %p124 = por %p122, %p123
      %p125 = scmp.ne.s32.totalorder %s113, %s114
      %p126 = scmp.eq.s32.totalorder %s20, 1
      %p127 = por %p125, %p126
      %p129 = scmp.ne.s32.totalorder %s114, %s128
      %p130 = scmp.eq.s32.totalorder %s20, 0
      %p131 = por %p129, %p130
      %s132 = ssub.s32 %s14, %s21
      %p133 = scmp.eq.s32.totalorder %s132, 0
      %s135 = sadd.s32 %s134, 1
      %s136 = scalar_select %p133, %s134, %s135
      %p139 = pneg %p133
      %p140 = scmp.eq.s32.totalorder %s14, 1
      %p141 = por %p139, %p140
      %p142 = scmp.ne.s32.totalorder %s134, %s137
      %p143 = scmp.eq.s32.totalorder %s14, 0
      %p144 = por %p142, %p143
      %p145 = scmp.ne.s32.totalorder %s134, %s137
      %p146 = scmp.eq.s32.totalorder %s19, 1
      %p147 = por %p145, %p146
      %p148 = scmp.ne.s32.totalorder %s137, %s138
      %p149 = scmp.eq.s32.totalorder %s19, 0
      %p150 = por %p148, %p149
      %p151 = scmp.ne.s32.totalorder %s137, %s138
      %p152 = scmp.eq.s32.totalorder %s20, 1
      %p153 = por %p151, %p152
      %p155 = scmp.ne.s32.totalorder %s138, %s154
      %p156 = scmp.eq.s32.totalorder %s20, 0
      %p157 = por %p155, %p156
      %p158 = scmp.le.s32.totalorder 1, %s14
      %p159 = scmp.lt.s32.totalorder %s14, 3
      %p160 = pnand %p158, %p159
      %p161 = pneg %p160
      // Predicated region
      $region9: #{tpu_custom_call.1} parent=5 // pred_check
        _
      $region10: #{tpu_custom_call.1} parent=5 // pred_check_branch
        %163 = sbr.rel (%p160) target = $region12
      $region11: #{tpu_custom_call.1} parent=5 // pred_region
        %s164 = ssub.s32 %s14, 1
        // Predicated region
        $region13: #{tpu_custom_call.1} parent=11 // pred_check
          %p165 = pneg %p61
        $region14: #{tpu_custom_call.1} parent=11 // pred_check_branch
          %167 = sbr.rel (%p165) target = $region16
        $region15: #{tpu_custom_call.1} parent=11 // pred_region
          _
        $region16: #{tpu_custom_call.1} parent=11 // pred_fallthru
          _
        // Predicated region
        $region17: #{tpu_custom_call.1} parent=11 // pred_check
          %p168 = pneg %p82
        $region18: #{tpu_custom_call.1} parent=11 // pred_check_branch
          %170 = sbr.rel (%p168) target = $region20
        $region19: #{tpu_custom_call.1} parent=11 // pred_region
          _
        $region20: #{tpu_custom_call.1} parent=11 // pred_fallthru
          _
        // Predicated region
        $region21: #{tpu_custom_call.1} parent=11 // pred_check
          %p171 = pneg %p103
        $region22: #{tpu_custom_call.1} parent=11 // pred_check_branch
          %173 = sbr.rel (%p171) target = $region24
        $region23: #{tpu_custom_call.1} parent=11 // pred_region
          _
        $region24: #{tpu_custom_call.1} parent=11 // pred_fallthru
          _
        // Predicated region
        $region25: #{tpu_custom_call.1} parent=11 // pred_check
          %p174 = pneg %p124
        $region26: #{tpu_custom_call.1} parent=11 // pred_check_branch
          %176 = sbr.rel (%p174) target = $region28
        $region27: #{tpu_custom_call.1} parent=11 // pred_region
          _
        $region28: #{tpu_custom_call.1} parent=11 // pred_fallthru
          _
      $region12: #{tpu_custom_call.1} parent=5 // pred_fallthru
        _
      %p177 = scmp.lt.s32.totalorder %s14, 2
      // Predicated region
      $region29: #{tpu_custom_call.1} parent=5 // pred_check
        %p178 = pneg %p177
      $region30: #{tpu_custom_call.1} parent=5 // pred_check_branch
        %180 = sbr.rel (%p178) target = $region32
      $region31: #{tpu_custom_call.1} parent=5 // pred_region
        // Predicated region
        $region33: #{tpu_custom_call.1} parent=31 // pred_check
          %p181 = pneg %p34
        $region34: #{tpu_custom_call.1} parent=31 // pred_check_branch
          %183 = sbr.rel (%p181) target = $region36
        $region35: #{tpu_custom_call.1} parent=31 // pred_region
          %p184 = scmp.lt.s32.totalorder %s14, 1
          %s185 = scalar_select %p184, %s14, 1
          %s186 = smul.addr %s185, 32
          %s187 = smul.addr %s186, 8
          %s188 = scalar_lea.vmem %s0, %s187
        $region36: #{tpu_custom_call.1} parent=31 // pred_fallthru
          _
      $region32: #{tpu_custom_call.1} parent=5 // pred_fallthru
        _
      %p189 = scmp.le.s32.totalorder 1, %s14
      %p190 = scmp.lt.s32.totalorder %s14, 3
      %p191 = pnand %p189, %p190
      %p192 = pneg %p191
      // Predicated region
      $region37: #{tpu_custom_call.1} parent=5 // pred_check
        _
      $region38: #{tpu_custom_call.1} parent=5 // pred_check_branch
        %194 = sbr.rel (%p191) target = $region40
      $region39: #{tpu_custom_call.1} parent=5 // pred_region
        %s195 = ssub.s32 %s14, 1
        %p196 = scmp.lt.s32.totalorder %s19, 1
        %s197 = scalar_select %p196, %s19, 1
        %s198 = smul.addr %s197, 32
        %s199 = smul.addr %s198, 8
        %s200 = scalar_lea.vmem %s0, %s199
        %p201 = pneg %p40
        %p202 = pneg %p37
        %p203 = pneg %p61
        %p204 = pneg %p58
        %p205 = pneg %p82
        %p206 = pneg %p79
        %p207 = pneg %p103
        %p208 = pneg %p100
        %p209 = pneg %p124
        %p210 = pneg %p121
        %p211 = pneg %p150
        %p212 = pneg %p147
        %s213 = sand.u32 %s137, 1
        %s214 = scalar_lea.sflag [#allocation5], %s213
        %s215 = sand.u32 %s137, 1
        %s216 = smul.addr %s215, 16
        %s217 = scalar_lea.vmem [#allocation4], %s216
        %p218 = scmp.lt.s32.totalorder %s19, 1
        %s219 = scalar_select %p218, %s19, 1
        %s220 = smul.addr %s219, 32
        %s221 = smul.addr %s220, 8
        %s222 = scalar_lea.vmem %s0, %s221
        %vm223 = vcmask 31744
        %224 = vst.msk [vmem:[#allocation2] sm:$0xff] %vm223, 0.0
        %225 = vst.msk [vmem:[#allocation2 + $0x8] sm:$0xff] %vm223, 0.0
        %vm226 = vcmask 25600
        %227 = vst.msk [vmem:[#allocation2 + $0x10] sm:$0x3] %vm226, 0.0
        %228 = vst.msk [vmem:[#allocation2 + $0x18] sm:$0xff] %vm223, 0.0
        %229 = vst.msk [vmem:[#allocation2 + $0x20] sm:$0xff] %vm223, 0.0
        %230 = vst.msk [vmem:[#allocation2 + $0x28] sm:$0x3] %vm226, 0.0
        %231 = vst.msk [vmem:[#allocation2 + $0x30] sm:$0xff] %vm223, 0.0
        %232 = vst.msk [vmem:[#allocation2 + $0x38] sm:$0xff] %vm223, 0.0
        %233 = vst.msk [vmem:[#allocation2 + $0x40] sm:$0x3] %vm226, 0.0
        %234 = vst.msk [vmem:[#allocation2 + $0x48] sm:$0xff] %vm223, 0.0
        %235 = vst.msk [vmem:[#allocation2 + $0x50] sm:$0xff] %vm223, 0.0
        %236 = vst.msk [vmem:[#allocation2 + $0x58] sm:$0x3] %vm226, 0.0
        %237 = vst.msk [vmem:[#allocation2 + $0x60] sm:$0xff] %vm223, 0.0
        %238 = vst.msk [vmem:[#allocation2 + $0x68] sm:$0xff] %vm223, 0.0
        %239 = vst.msk [vmem:[#allocation2 + $0x70] sm:$0x3] %vm226, 0.0
        %240 = vst.msk [vmem:[#allocation2 + $0x78] sm:$0xff] %vm223, 0.0
        %241 = vst.msk [vmem:[#allocation2 + $0x80] sm:$0xff] %vm223, 0.0
        %242 = vst.msk [vmem:[#allocation2 + $0x88] sm:$0x3] %vm226, 0.0
        %243 = vst.msk [vmem:[#allocation2 + $0x90] sm:$0xff] %vm223, 0.0
        %244 = vst.msk [vmem:[#allocation2 + $0x98] sm:$0xff] %vm223, 0.0
        %245 = vst.msk [vmem:[#allocation2 + $0xa0] sm:$0x3] %vm226, 0.0
        %246 = vst.msk [vmem:[#allocation2 + $0xa8] sm:$0xff] %vm223, 0.0
        %247 = vst.msk [vmem:[#allocation2 + $0xb0] sm:$0xff] %vm223, 0.0
        %248 = vst.msk [vmem:[#allocation2 + $0xb8] sm:$0x3] %vm226, 0.0
        %249 = vst.msk [vmem:[#allocation2 + $0xc0] sm:$0xff] %vm223, 0.0
        %250 = vst.msk [vmem:[#allocation2 + $0xc8] sm:$0xff] %vm223, 0.0
        %251 = vst.msk [vmem:[#allocation2 + $0xd0] sm:$0x3] %vm226, 0.0
        %252 = vst.msk [vmem:[#allocation2 + $0xd8] sm:$0xff] %vm223, 0.0
        %253 = vst.msk [vmem:[#allocation2 + $0xe0] sm:$0xff] %vm223, 0.0
        %254 = vst.msk [vmem:[#allocation2 + $0xe8] sm:$0x3] %vm226, 0.0
        %255 = vst.msk [vmem:[#allocation2 + $0xf0] sm:$0xff] %vm223, 0.0
        %256 = vst.msk [vmem:[#allocation2 + $0xf8] sm:$0xff] %vm223, 0.0
        %257 = vst.msk [vmem:[#allocation2 + $0x100] sm:$0x3] %vm226, 0.0
        %258 = vst.msk [vmem:[#allocation2 + $0x108] sm:$0xff] %vm223, 0.0
        %259 = vst.msk [vmem:[#allocation2 + $0x110] sm:$0xff] %vm223, 0.0
        %260 = vst.msk [vmem:[#allocation2 + $0x118] sm:$0x3] %vm226, 0.0
        %261 = vst.msk [vmem:[#allocation2 + $0x120] sm:$0xff] %vm223, 0.0
        %262 = vst.msk [vmem:[#allocation2 + $0x128] sm:$0xff] %vm223, 0.0
        %263 = vst.msk [vmem:[#allocation2 + $0x130] sm:$0x3] %vm226, 0.0
        %264 = vst.msk [vmem:[#allocation2 + $0x138] sm:$0xff] %vm223, 0.0
        %265 = vst.msk [vmem:[#allocation2 + $0x140] sm:$0xff] %vm223, 0.0
        %266 = vst.msk [vmem:[#allocation2 + $0x148] sm:$0x3] %vm226, 0.0
        %267 = vst.msk [vmem:[#allocation2 + $0x150] sm:$0xff] %vm223, 0.0
        %268 = vst.msk [vmem:[#allocation2 + $0x158] sm:$0xff] %vm223, 0.0
        %269 = vst.msk [vmem:[#allocation2 + $0x160] sm:$0x3] %vm226, 0.0
        %270 = vst.msk [vmem:[#allocation2 + $0x168] sm:$0xff] %vm223, 0.0
        %271 = vst.msk [vmem:[#allocation2 + $0x170] sm:$0xff] %vm223, 0.0
        %272 = vst.msk [vmem:[#allocation2 + $0x178] sm:$0x3] %vm226, 0.0
        %273 = vst.msk [vmem:[#allocation2 + $0x180] sm:$0xff] %vm223, 0.0
        %274 = vst.msk [vmem:[#allocation2 + $0x188] sm:$0xff] %vm223, 0.0
        %275 = vst.msk [vmem:[#allocation2 + $0x190] sm:$0x3] %vm226, 0.0
        %276 = vst.msk [vmem:[#allocation2 + $0x198] sm:$0xff] %vm223, 0.0
        %277 = vst.msk [vmem:[#allocation2 + $0x1a0] sm:$0xff] %vm223, 0.0
        %278 = vst.msk [vmem:[#allocation2 + $0x1a8] sm:$0x3] %vm226, 0.0
        %vm279 = vcmask 64512
        %280 = vst.msk [vmem:[#allocation3] sm:$0xff] %vm279, 0.0
        %281 = vst.msk [vmem:[#allocation3 + $0x8] sm:$0xff] %vm279, 0.0
        %vm282 = vcmask 58368
        %283 = vst.msk [vmem:[#allocation3 + $0x10] sm:$0x3] %vm282, 0.0
        %284 = vst.msk [vmem:[#allocation3 + $0x18] sm:$0xff] %vm279, 0.0
        %285 = vst.msk [vmem:[#allocation3 + $0x20] sm:$0xff] %vm279, 0.0
        %286 = vst.msk [vmem:[#allocation3 + $0x28] sm:$0x3] %vm282, 0.0
        %287 = vst.msk [vmem:[#allocation3 + $0x30] sm:$0xff] %vm279, 0.0
        %288 = vst.msk [vmem:[#allocation3 + $0x38] sm:$0xff] %vm279, 0.0
        %289 = vst.msk [vmem:[#allocation3 + $0x40] sm:$0x3] %vm282, 0.0
        %290 = vst.msk [vmem:[#allocation3 + $0x48] sm:$0xff] %vm279, 0.0
        %291 = vst.msk [vmem:[#allocation3 + $0x50] sm:$0xff] %vm279, 0.0
        %292 = vst.msk [vmem:[#allocation3 + $0x58] sm:$0x3] %vm282, 0.0
        %293 = vst.msk [vmem:[#allocation3 + $0x60] sm:$0xff] %vm279, 0.0
        %294 = vst.msk [vmem:[#allocation3 + $0x68] sm:$0xff] %vm279, 0.0
        %295 = vst.msk [vmem:[#allocation3 + $0x70] sm:$0x3] %vm282, 0.0
        %296 = vst.msk [vmem:[#allocation3 + $0x78] sm:$0xff] %vm279, 0.0
        %297 = vst.msk [vmem:[#allocation3 + $0x80] sm:$0xff] %vm279, 0.0
        %298 = vst.msk [vmem:[#allocation3 + $0x88] sm:$0x3] %vm282, 0.0
        %299 = vst.msk [vmem:[#allocation3 + $0x90] sm:$0xff] %vm279, 0.0
        %300 = vst.msk [vmem:[#allocation3 + $0x98] sm:$0xff] %vm279, 0.0
        %301 = vst.msk [vmem:[#allocation3 + $0xa0] sm:$0x3] %vm282, 0.0
        %302 = vst.msk [vmem:[#allocation3 + $0xa8] sm:$0xff] %vm279, 0.0
        %303 = vst.msk [vmem:[#allocation3 + $0xb0] sm:$0xff] %vm279, 0.0
        %304 = vst.msk [vmem:[#allocation3 + $0xb8] sm:$0x3] %vm282, 0.0
        %305 = vst.msk [vmem:[#allocation3 + $0xc0] sm:$0xff] %vm279, 0.0
        %306 = vst.msk [vmem:[#allocation3 + $0xc8] sm:$0xff] %vm279, 0.0
        %307 = vst.msk [vmem:[#allocation3 + $0xd0] sm:$0x3] %vm282, 0.0
        %308 = vst.msk [vmem:[#allocation3 + $0xd8] sm:$0xff] %vm279, 0.0
        %309 = vst.msk [vmem:[#allocation3 + $0xe0] sm:$0xff] %vm279, 0.0
        %310 = vst.msk [vmem:[#allocation3 + $0xe8] sm:$0x3] %vm282, 0.0
        %311 = vst.msk [vmem:[#allocation3 + $0xf0] sm:$0xff] %vm279, 0.0
        %312 = vst.msk [vmem:[#allocation3 + $0xf8] sm:$0xff] %vm279, 0.0
        %313 = vst.msk [vmem:[#allocation3 + $0x100] sm:$0x3] %vm282, 0.0
        %314 = vst.msk [vmem:[#allocation3 + $0x108] sm:$0xff] %vm279, 0.0
        %315 = vst.msk [vmem:[#allocation3 + $0x110] sm:$0xff] %vm279, 0.0
        %316 = vst.msk [vmem:[#allocation3 + $0x118] sm:$0x3] %vm282, 0.0
        %317 = vst.msk [vmem:[#allocation3 + $0x120] sm:$0xff] %vm279, 0.0
        %318 = vst.msk [vmem:[#allocation3 + $0x128] sm:$0xff] %vm279, 0.0
        %319 = vst.msk [vmem:[#allocation3 + $0x130] sm:$0x3] %vm282, 0.0
        %320 = vst.msk [vmem:[#allocation3 + $0x138] sm:$0xff] %vm279, 0.0
        %321 = vst.msk [vmem:[#allocation3 + $0x140] sm:$0xff] %vm279, 0.0
        %322 = vst.msk [vmem:[#allocation3 + $0x148] sm:$0x3] %vm282, 0.0
        %323 = vst.msk [vmem:[#allocation3 + $0x150] sm:$0xff] %vm279, 0.0
        %324 = vst.msk [vmem:[#allocation3 + $0x158] sm:$0xff] %vm279, 0.0
        %325 = vst.msk [vmem:[#allocation3 + $0x160] sm:$0x3] %vm282, 0.0
        %326 = vst.msk [vmem:[#allocation3 + $0x168] sm:$0xff] %vm279, 0.0
        %327 = vst.msk [vmem:[#allocation3 + $0x170] sm:$0xff] %vm279, 0.0
        %328 = vst.msk [vmem:[#allocation3 + $0x178] sm:$0x3] %vm282, 0.0
        %329 = vst.msk [vmem:[#allocation3 + $0x180] sm:$0xff] %vm279, 0.0
        %330 = vst.msk [vmem:[#allocation3 + $0x188] sm:$0xff] %vm279, 0.0
        %331 = vst.msk [vmem:[#allocation3 + $0x190] sm:$0x3] %vm282, 0.0
        %332 = vst.msk [vmem:[#allocation3 + $0x198] sm:$0xff] %vm279, 0.0
        %333 = vst.msk [vmem:[#allocation3 + $0x1a0] sm:$0xff] %vm279, 0.0
        %334 = vst.msk [vmem:[#allocation3 + $0x1a8] sm:$0x3] %vm282, 0.0
        %v335 = vld [vmem:[%s1] sm:$0xff]
        %v336 = vld [vmem:[%s1 + $0x8] sm:$0xff]
        %v337 = vld [vmem:[%s1 + $0x10] sm:$0xff]
        %v338 = vld [vmem:[%s1 + $0x18] sm:$0xff]
        %v339 = vld [vmem:[%s1 + $0x20] sm:$0xf]
        %v340 = vld [vmem:[%s3] sm:$0xff]
        %v341 = vld [vmem:[%s3 + $0x8] sm:$0xff]
        %v342 = vld [vmem:[%s3 + $0x10] sm:$0xff]
        %v343 = vld [vmem:[%s3 + $0x18] sm:$0xff]
        %v344 = vld [vmem:[%s3 + $0x20] sm:$0xff]
        %v345 = vld [vmem:[%s3 + $0x28] sm:$0xff]
        %v346 = vld [vmem:[%s3 + $0x30] sm:$0xff]
        %v347 = vld [vmem:[%s3 + $0x38] sm:$0xff]
        %v348 = vld [vmem:[%s3 + $0x40] sm:$0xff]
        %v349 = vld [vmem:[%s2] sm:$0x1]
        %v350 = vld [vmem:[%s4] sm:$0x1]
        %v351 = vld [vmem:[%s222] sm:$0xff]
        %v352 = vld [vmem:[%s222 + $0x8] sm:$0xff]
        %v353 = vld [vmem:[%s222 + $0x10] sm:$0xff]
        %v354 = vld [vmem:[%s222 + $0x18] sm:$0xff]
        %v355 = vld [vmem:[%s222 + $0x20] sm:$0xff]
        %v356 = vld [vmem:[%s222 + $0x28] sm:$0xff]
        %v357 = vld [vmem:[%s222 + $0x30] sm:$0xff]
        %v358 = vld [vmem:[%s222 + $0x38] sm:$0xff]
        %v359 = vld [vmem:[%s222 + $0x40] sm:$0xff]
        %v360 = vld [vmem:[%s222 + $0x48] sm:$0xff]
        %v361 = vld [vmem:[%s222 + $0x50] sm:$0xff]
        %v362 = vld [vmem:[%s222 + $0x58] sm:$0xff]
        %v363 = vld [vmem:[%s222 + $0x60] sm:$0xff]
        %v364 = vld [vmem:[%s222 + $0x68] sm:$0xff]
        %v365 = vld [vmem:[%s222 + $0x70] sm:$0xff]
        %v366 = vld [vmem:[%s222 + $0x78] sm:$0xff]
        %v367 = vld [vmem:[%s222 + $0x80] sm:$0xff]
        %v368 = vld [vmem:[%s222 + $0x88] sm:$0xff]
        %v369 = vld [vmem:[%s222 + $0x90] sm:$0xff]
        %v370 = vld [vmem:[%s222 + $0x98] sm:$0xff]
        %v371 = vld [vmem:[%s222 + $0xa0] sm:$0xff]
        %v372 = vld [vmem:[%s222 + $0xa8] sm:$0xff]
        %v373 = vld [vmem:[%s222 + $0xb0] sm:$0xff]
        %v374 = vld [vmem:[%s222 + $0xb8] sm:$0xff]
        %v375 = vld [vmem:[%s222 + $0xc0] sm:$0xff]
        %v376 = vld [vmem:[%s222 + $0xc8] sm:$0xff]
        %v377 = vld [vmem:[%s222 + $0xd0] sm:$0xff]
        %v378 = vld [vmem:[%s222 + $0xd8] sm:$0xff]
        %v379 = vld [vmem:[%s222 + $0xe0] sm:$0xff]
        %v380 = vld [vmem:[%s222 + $0xe8] sm:$0xff]
        %v381 = vld [vmem:[%s222 + $0xf0] sm:$0xff]
        %v382 = vld [vmem:[%s222 + $0xf8] sm:$0xff]
        %s383 = scalar_lea.vmem [#allocation2], 24
        %384 = vst.msk [vmem:[%s383 + $0x1] sm:$0xff] %vm223, %v351
        %385 = vst.msk [vmem:[%s383 + $0x9] sm:$0xff] %vm223, %v352
        %386 = vst.msk [vmem:[%s383 + $0x19] sm:$0xff] %vm223, %v353
        %387 = vst.msk [vmem:[%s383 + $0x21] sm:$0xff] %vm223, %v354
        %388 = vst.msk [vmem:[%s383 + $0x31] sm:$0xff] %vm223, %v355
        %389 = vst.msk [vmem:[%s383 + $0x39] sm:$0xff] %vm223, %v356
        %390 = vst.msk [vmem:[%s383 + $0x49] sm:$0xff] %vm223, %v357
        %391 = vst.msk [vmem:[%s383 + $0x51] sm:$0xff] %vm223, %v358
        %392 = vst.msk [vmem:[%s383 + $0x61] sm:$0xff] %vm223, %v359
        %393 = vst.msk [vmem:[%s383 + $0x69] sm:$0xff] %vm223, %v360
        %394 = vst.msk [vmem:[%s383 + $0x79] sm:$0xff] %vm223, %v361
        %395 = vst.msk [vmem:[%s383 + $0x81] sm:$0xff] %vm223, %v362
        %396 = vst.msk [vmem:[%s383 + $0x91] sm:$0xff] %vm223, %v363
        %397 = vst.msk [vmem:[%s383 + $0x99] sm:$0xff] %vm223, %v364
        %398 = vst.msk [vmem:[%s383 + $0xa9] sm:$0xff] %vm223, %v365
        %399 = vst.msk [vmem:[%s383 + $0xb1] sm:$0xff] %vm223, %v366
        %400 = vst.msk [vmem:[%s383 + $0xc1] sm:$0xff] %vm223, %v367
        %401 = vst.msk [vmem:[%s383 + $0xc9] sm:$0xff] %vm223, %v368
        %402 = vst.msk [vmem:[%s383 + $0xd9] sm:$0xff] %vm223, %v369
        %403 = vst.msk [vmem:[%s383 + $0xe1] sm:$0xff] %vm223, %v370
        %404 = vst.msk [vmem:[%s383 + $0xf1] sm:$0xff] %vm223, %v371
        %405 = vst.msk [vmem:[%s383 + $0xf9] sm:$0xff] %vm223, %v372
        %406 = vst.msk [vmem:[%s383 + $0x109] sm:$0xff] %vm223, %v373
        %407 = vst.msk [vmem:[%s383 + $0x111] sm:$0xff] %vm223, %v374
        %408 = vst.msk [vmem:[%s383 + $0x121] sm:$0xff] %vm223, %v375
        %409 = vst.msk [vmem:[%s383 + $0x129] sm:$0xff] %vm223, %v376
        %410 = vst.msk [vmem:[%s383 + $0x139] sm:$0xff] %vm223, %v377
        %411 = vst.msk [vmem:[%s383 + $0x141] sm:$0xff] %vm223, %v378
        %412 = vst.msk [vmem:[%s383 + $0x151] sm:$0xff] %vm223, %v379
        %413 = vst.msk [vmem:[%s383 + $0x159] sm:$0xff] %vm223, %v380
        %414 = vst.msk [vmem:[%s383 + $0x169] sm:$0xff] %vm223, %v381
        %415 = vst.msk [vmem:[%s383 + $0x171] sm:$0xff] %vm223, %v382
        %v416 = vld [vmem:[#allocation2] sm:$0xff]
        %v417 = vld [vmem:[#allocation2 + $0x8] sm:$0xff]
        %v418 = vld [vmem:[#allocation2 + $0x10] sm:$0x3]
        %v419 = vld [vmem:[#allocation2 + $0x18] sm:$0xff]
        %v420 = vld [vmem:[#allocation2 + $0x20] sm:$0xff]
        %v421 = vld [vmem:[#allocation2 + $0x28] sm:$0x3]
        %v422 = vld [vmem:[#allocation2 + $0x30] sm:$0xff]
        %v423 = vld [vmem:[#allocation2 + $0x38] sm:$0xff]
        %v424 = vld [vmem:[#allocation2 + $0x40] sm:$0x3]
        %v425 = vld [vmem:[#allocation2 + $0x48] sm:$0xff]
        %v426 = vld [vmem:[#allocation2 + $0x50] sm:$0xff]
        %v427 = vld [vmem:[#allocation2 + $0x58] sm:$0x3]
        %v428 = vld [vmem:[#allocation2 + $0x60] sm:$0xff]
        %v429 = vld [vmem:[#allocation2 + $0x68] sm:$0xff]
        %v430 = vld [vmem:[#allocation2 + $0x70] sm:$0x3]
        %v431 = vld [vmem:[#allocation2 + $0x78] sm:$0xff]
        %v432 = vld [vmem:[#allocation2 + $0x80] sm:$0xff]
        %v433 = vld [vmem:[#allocation2 + $0x88] sm:$0x3]
        %v434 = vld [vmem:[#allocation2 + $0x90] sm:$0xff]
        %v435 = vld [vmem:[#allocation2 + $0x98] sm:$0xff]
        %v436 = vld [vmem:[#allocation2 + $0xa0] sm:$0x3]
        %v437 = vld [vmem:[#allocation2 + $0xa8] sm:$0xff]
        %v438 = vld [vmem:[#allocation2 + $0xb0] sm:$0xff]
        %v439 = vld [vmem:[#allocation2 + $0xb8] sm:$0x3]
        %v440 = vld [vmem:[#allocation2 + $0xc0] sm:$0xff]
        %v441 = vld [vmem:[#allocation2 + $0xc8] sm:$0xff]
        %v442 = vld [vmem:[#allocation2 + $0xd0] sm:$0x3]
        %v443 = vld [vmem:[#allocation2 + $0xd8] sm:$0xff]
        %v444 = vld [vmem:[#allocation2 + $0xe0] sm:$0xff]
        %v445 = vld [vmem:[#allocation2 + $0xe8] sm:$0x3]
        %v446 = vld [vmem:[#allocation2 + $0xf0] sm:$0xff]
        %v447 = vld [vmem:[#allocation2 + $0xf8] sm:$0xff]
        %v448 = vld [vmem:[#allocation2 + $0x100] sm:$0x3]
        %v449 = vld [vmem:[#allocation2 + $0x108] sm:$0xff]
        %v450 = vld [vmem:[#allocation2 + $0x110] sm:$0xff]
        %v451 = vld [vmem:[#allocation2 + $0x118] sm:$0x3]
        %v452 = vld [vmem:[#allocation2 + $0x120] sm:$0xff]
        %v453 = vld [vmem:[#allocation2 + $0x128] sm:$0xff]
        %v454 = vld [vmem:[#allocation2 + $0x130] sm:$0x3]
        %v455 = vld [vmem:[#allocation2 + $0x138] sm:$0xff]
        %v456 = vld [vmem:[#allocation2 + $0x140] sm:$0xff]
        %v457 = vld [vmem:[#allocation2 + $0x148] sm:$0x3]
        %v458 = vld [vmem:[#allocation2 + $0x150] sm:$0xff]
        %v459 = vld [vmem:[#allocation2 + $0x158] sm:$0xff]
        %v460 = vld [vmem:[#allocation2 + $0x160] sm:$0x3]
        %v461 = vld [vmem:[#allocation2 + $0x168] sm:$0xff]
        %v462 = vld [vmem:[#allocation2 + $0x170] sm:$0xff]
        %v463 = vld [vmem:[#allocation2 + $0x178] sm:$0x3]
        %v464 = vld [vmem:[#allocation2 + $0x180] sm:$0xff]
        %v465 = vld [vmem:[#allocation2 + $0x188] sm:$0xff]
        %v466 = vld [vmem:[#allocation2 + $0x190] sm:$0x3]
        %v467 = vld [vmem:[#allocation2 + $0x198] sm:$0xff]
        %v468 = vld [vmem:[#allocation2 + $0x1a0] sm:$0xff]
        %v469 = vld [vmem:[#allocation2 + $0x1a8] sm:$0x3]
        %vm518 = vcmask 1046528
        %v519 = vrot.slane %v416, 1
        %v520 = vrot.slane %v417, 1
        %v521 = vsel %vm518, %v519, %v520
        %v522 = vrot.slane %v418, 1
        %v523 = vsel %vm518, %v520, %v522
        %v524 = vrot.slane %v419, 1
        %v525 = vrot.slane %v420, 1
        %v526 = vsel %vm518, %v524, %v525
        %v527 = vrot.slane %v421, 1
        %v528 = vsel %vm518, %v525, %v527
        %v529 = vrot.slane %v422, 1
        %v530 = vrot.slane %v423, 1
        %v531 = vsel %vm518, %v529, %v530
        %v532 = vrot.slane %v424, 1
        %v533 = vsel %vm518, %v530, %v532
        %v534 = vrot.slane %v425, 1
        %v535 = vrot.slane %v426, 1
        %v536 = vsel %vm518, %v534, %v535
        %v537 = vrot.slane %v427, 1
        %v538 = vsel %vm518, %v535, %v537
        %v539 = vrot.slane %v428, 1
        %v540 = vrot.slane %v429, 1
        %v541 = vsel %vm518, %v539, %v540
        %v542 = vrot.slane %v430, 1
        %v543 = vsel %vm518, %v540, %v542
        %v544 = vrot.slane %v431, 1
        %v545 = vrot.slane %v432, 1
        %v546 = vsel %vm518, %v544, %v545
        %v547 = vrot.slane %v433, 1
        %v548 = vsel %vm518, %v545, %v547
        %v549 = vrot.slane %v434, 1
        %v550 = vrot.slane %v435, 1
        %v551 = vsel %vm518, %v549, %v550
        %v552 = vrot.slane %v436, 1
        %v553 = vsel %vm518, %v550, %v552
        %v554 = vrot.slane %v437, 1
        %v555 = vrot.slane %v438, 1
        %v556 = vsel %vm518, %v554, %v555
        %v557 = vrot.slane %v439, 1
        %v558 = vsel %vm518, %v555, %v557
        %v559 = vrot.slane %v440, 1
        %v560 = vrot.slane %v441, 1
        %v561 = vsel %vm518, %v559, %v560
        %v562 = vrot.slane %v442, 1
        %v563 = vsel %vm518, %v560, %v562
        %v564 = vrot.slane %v443, 1
        %v565 = vrot.slane %v444, 1
        %v566 = vsel %vm518, %v564, %v565
        %v567 = vrot.slane %v445, 1
        %v568 = vsel %vm518, %v565, %v567
        %v569 = vrot.slane %v446, 1
        %v570 = vrot.slane %v447, 1
        %v571 = vsel %vm518, %v569, %v570
        %v572 = vrot.slane %v448, 1
        %v573 = vsel %vm518, %v570, %v572
        %v574 = vrot.slane %v449, 1
        %v575 = vrot.slane %v450, 1
        %v576 = vsel %vm518, %v574, %v575
        %v577 = vrot.slane %v451, 1
        %v578 = vsel %vm518, %v575, %v577
        %v579 = vrot.slane %v452, 1
        %v580 = vrot.slane %v453, 1
        %v581 = vsel %vm518, %v579, %v580
        %v582 = vrot.slane %v454, 1
        %v583 = vsel %vm518, %v580, %v582
        %v584 = vrot.slane %v455, 1
        %v585 = vrot.slane %v456, 1
        %v586 = vsel %vm518, %v584, %v585
        %v587 = vrot.slane %v457, 1
        %v588 = vsel %vm518, %v585, %v587
        %v589 = vrot.slane %v458, 1
        %v590 = vrot.slane %v459, 1
        %v591 = vsel %vm518, %v589, %v590
        %v592 = vrot.slane %v460, 1
        %v593 = vsel %vm518, %v590, %v592
        %v594 = vrot.slane %v461, 1
        %v595 = vrot.slane %v462, 1
        %v596 = vsel %vm518, %v594, %v595
        %v597 = vrot.slane %v463, 1
        %v598 = vsel %vm518, %v595, %v597
        %599 = vrot.lane.b32.xlu0 %v521, 4
        %v600 = vpop.permute.xlu0 %599
        %601 = vrot.lane.b32.xlu0 %v523, 4
        %v602 = vpop.permute.xlu0 %601
        %603 = vrot.lane.b32.xlu0 %v526, 4
        %v604 = vpop.permute.xlu0 %603
        %605 = vrot.lane.b32.xlu0 %v528, 4
        %v606 = vpop.permute.xlu0 %605
        %607 = vrot.lane.b32.xlu0 %v531, 4
        %v608 = vpop.permute.xlu0 %607
        %609 = vrot.lane.b32.xlu0 %v533, 4
        %v610 = vpop.permute.xlu0 %609
        %611 = vrot.lane.b32.xlu0 %v536, 4
        %v612 = vpop.permute.xlu0 %611
        %613 = vrot.lane.b32.xlu0 %v538, 4
        %v614 = vpop.permute.xlu0 %613
        %615 = vrot.lane.b32.xlu0 %v541, 4
        %v616 = vpop.permute.xlu0 %615
        %617 = vrot.lane.b32.xlu0 %v543, 4
        %v618 = vpop.permute.xlu0 %617
        %619 = vrot.lane.b32.xlu0 %v546, 4
        %v620 = vpop.permute.xlu0 %619
        %621 = vrot.lane.b32.xlu0 %v548, 4
        %v622 = vpop.permute.xlu0 %621
        %623 = vrot.lane.b32.xlu0 %v551, 4
        %v624 = vpop.permute.xlu0 %623
        %625 = vrot.lane.b32.xlu0 %v553, 4
        %v626 = vpop.permute.xlu0 %625
        %627 = vrot.lane.b32.xlu0 %v556, 4
        %v628 = vpop.permute.xlu0 %627
        %629 = vrot.lane.b32.xlu0 %v558, 4
        %v630 = vpop.permute.xlu0 %629
        %631 = vrot.lane.b32.xlu0 %v561, 4
        %v632 = vpop.permute.xlu0 %631
        %633 = vrot.lane.b32.xlu0 %v563, 4
        %v634 = vpop.permute.xlu0 %633
        %635 = vrot.lane.b32.xlu0 %v566, 4
        %v636 = vpop.permute.xlu0 %635
        %637 = vrot.lane.b32.xlu0 %v568, 4
        %v638 = vpop.permute.xlu0 %637
        %639 = vrot.lane.b32.xlu0 %v571, 4
        %v640 = vpop.permute.xlu0 %639
        %641 = vrot.lane.b32.xlu0 %v573, 4
        %v642 = vpop.permute.xlu0 %641
        %643 = vrot.lane.b32.xlu0 %v576, 4
        %v644 = vpop.permute.xlu0 %643
        %645 = vrot.lane.b32.xlu0 %v578, 4
        %v646 = vpop.permute.xlu0 %645
        %647 = vrot.lane.b32.xlu0 %v581, 4
        %v648 = vpop.permute.xlu0 %647
        %649 = vrot.lane.b32.xlu0 %v583, 4
        %v650 = vpop.permute.xlu0 %649
        %651 = vrot.lane.b32.xlu0 %v586, 4
        %v652 = vpop.permute.xlu0 %651
        %653 = vrot.lane.b32.xlu0 %v588, 4
        %v654 = vpop.permute.xlu0 %653
        %655 = vrot.lane.b32.xlu0 %v591, 4
        %v656 = vpop.permute.xlu0 %655
        %657 = vrot.lane.b32.xlu0 %v593, 4
        %v658 = vpop.permute.xlu0 %657
        %659 = vrot.lane.b32.xlu0 %v596, 4
        %v660 = vpop.permute.xlu0 %659
        %661 = vrot.lane.b32.xlu0 %v598, 4
        %v662 = vpop.permute.xlu0 %661
        %vm695 = vcmask 1045504
        %v696 = vrot.slane %v416, 2
        %v697 = vrot.slane %v417, 2
        %v698 = vsel %vm695, %v696, %v697
        %v699 = vrot.slane %v418, 2
        %v700 = vsel %vm695, %v697, %v699
        %v701 = vrot.slane %v419, 2
        %v702 = vrot.slane %v420, 2
        %v703 = vsel %vm695, %v701, %v702
        %v704 = vrot.slane %v421, 2
        %v705 = vsel %vm695, %v702, %v704
        %v706 = vrot.slane %v422, 2
        %v707 = vrot.slane %v423, 2
        %v708 = vsel %vm695, %v706, %v707
        %v709 = vrot.slane %v424, 2
        %v710 = vsel %vm695, %v707, %v709
        %v711 = vrot.slane %v425, 2
        %v712 = vrot.slane %v426, 2
        %v713 = vsel %vm695, %v711, %v712
        %v714 = vrot.slane %v427, 2
        %v715 = vsel %vm695, %v712, %v714
        %v716 = vrot.slane %v428, 2
        %v717 = vrot.slane %v429, 2
        %v718 = vsel %vm695, %v716, %v717
        %v719 = vrot.slane %v430, 2
        %v720 = vsel %vm695, %v717, %v719
        %v721 = vrot.slane %v431, 2
        %v722 = vrot.slane %v432, 2
        %v723 = vsel %vm695, %v721, %v722
        %v724 = vrot.slane %v433, 2
        %v725 = vsel %vm695, %v722, %v724
        %v726 = vrot.slane %v434, 2
        %v727 = vrot.slane %v435, 2
        %v728 = vsel %vm695, %v726, %v727
        %v729 = vrot.slane %v436, 2
        %v730 = vsel %vm695, %v727, %v729
        %v731 = vrot.slane %v437, 2
        %v732 = vrot.slane %v438, 2
        %v733 = vsel %vm695, %v731, %v732
        %v734 = vrot.slane %v439, 2
        %v735 = vsel %vm695, %v732, %v734
        %v736 = vrot.slane %v440, 2
        %v737 = vrot.slane %v441, 2
        %v738 = vsel %vm695, %v736, %v737
        %v739 = vrot.slane %v442, 2
        %v740 = vsel %vm695, %v737, %v739
        %v741 = vrot.slane %v443, 2
        %v742 = vrot.slane %v444, 2
        %v743 = vsel %vm695, %v741, %v742
        %v744 = vrot.slane %v445, 2
        %v745 = vsel %vm695, %v742, %v744
        %v746 = vrot.slane %v446, 2
        %v747 = vrot.slane %v447, 2
        %v748 = vsel %vm695, %v746, %v747
        %v749 = vrot.slane %v448, 2
        %v750 = vsel %vm695, %v747, %v749
        %v751 = vrot.slane %v449, 2
        %v752 = vrot.slane %v450, 2
        %v753 = vsel %vm695, %v751, %v752
        %v754 = vrot.slane %v451, 2
        %v755 = vsel %vm695, %v752, %v754
        %v756 = vrot.slane %v452, 2
        %v757 = vrot.slane %v453, 2
        %v758 = vsel %vm695, %v756, %v757
        %v759 = vrot.slane %v454, 2
        %v760 = vsel %vm695, %v757, %v759
        %v761 = vrot.slane %v455, 2
        %v762 = vrot.slane %v456, 2
        %v763 = vsel %vm695, %v761, %v762
        %v764 = vrot.slane %v457, 2
        %v765 = vsel %vm695, %v762, %v764
        %v766 = vrot.slane %v458, 2
        %v767 = vrot.slane %v459, 2
        %v768 = vsel %vm695, %v766, %v767
        %v769 = vrot.slane %v460, 2
        %v770 = vsel %vm695, %v767, %v769
        %v771 = vrot.slane %v461, 2
        %v772 = vrot.slane %v462, 2
        %v773 = vsel %vm695, %v771, %v772
        %v774 = vrot.slane %v463, 2
        %v775 = vsel %vm695, %v772, %v774
        %776 = vrot.lane.b32.xlu0 %v698, 8
        %v777 = vpop.permute.xlu0 %776
        %778 = vrot.lane.b32.xlu0 %v700, 8
        %v779 = vpop.permute.xlu0 %778
        %780 = vrot.lane.b32.xlu0 %v703, 8
        %v781 = vpop.permute.xlu0 %780
        %782 = vrot.lane.b32.xlu0 %v705, 8
        %v783 = vpop.permute.xlu0 %782
        %784 = vrot.lane.b32.xlu0 %v708, 8
        %v785 = vpop.permute.xlu0 %784
        %786 = vrot.lane.b32.xlu0 %v710, 8
        %v787 = vpop.permute.xlu0 %786
        %788 = vrot.lane.b32.xlu0 %v713, 8
        %v789 = vpop.permute.xlu0 %788
        %790 = vrot.lane.b32.xlu0 %v715, 8
        %v791 = vpop.permute.xlu0 %790
        %792 = vrot.lane.b32.xlu0 %v718, 8
        %v793 = vpop.permute.xlu0 %792
        %794 = vrot.lane.b32.xlu0 %v720, 8
        %v795 = vpop.permute.xlu0 %794
        %796 = vrot.lane.b32.xlu0 %v723, 8
        %v797 = vpop.permute.xlu0 %796
        %798 = vrot.lane.b32.xlu0 %v725, 8
        %v799 = vpop.permute.xlu0 %798
        %800 = vrot.lane.b32.xlu0 %v728, 8
        %v801 = vpop.permute.xlu0 %800
        %802 = vrot.lane.b32.xlu0 %v730, 8
        %v803 = vpop.permute.xlu0 %802
        %804 = vrot.lane.b32.xlu0 %v733, 8
        %v805 = vpop.permute.xlu0 %804
        %806 = vrot.lane.b32.xlu0 %v735, 8
        %v807 = vpop.permute.xlu0 %806
        %808 = vrot.lane.b32.xlu0 %v738, 8
        %v809 = vpop.permute.xlu0 %808
        %810 = vrot.lane.b32.xlu0 %v740, 8
        %v811 = vpop.permute.xlu0 %810
        %812 = vrot.lane.b32.xlu0 %v743, 8
        %v813 = vpop.permute.xlu0 %812
        %814 = vrot.lane.b32.xlu0 %v745, 8
        %v815 = vpop.permute.xlu0 %814
        %816 = vrot.lane.b32.xlu0 %v748, 8
        %v817 = vpop.permute.xlu0 %816
        %818 = vrot.lane.b32.xlu0 %v750, 8
        %v819 = vpop.permute.xlu0 %818
        %820 = vrot.lane.b32.xlu0 %v753, 8
        %v821 = vpop.permute.xlu0 %820
        %822 = vrot.lane.b32.xlu0 %v755, 8
        %v823 = vpop.permute.xlu0 %822
        %824 = vrot.lane.b32.xlu0 %v758, 8
        %v825 = vpop.permute.xlu0 %824
        %826 = vrot.lane.b32.xlu0 %v760, 8
        %v827 = vpop.permute.xlu0 %826
        %828 = vrot.lane.b32.xlu0 %v763, 8
        %v829 = vpop.permute.xlu0 %828
        %830 = vrot.lane.b32.xlu0 %v765, 8
        %v831 = vpop.permute.xlu0 %830
        %832 = vrot.lane.b32.xlu0 %v768, 8
        %v833 = vpop.permute.xlu0 %832
        %834 = vrot.lane.b32.xlu0 %v770, 8
        %v835 = vpop.permute.xlu0 %834
        %836 = vrot.lane.b32.xlu0 %v773, 8
        %v837 = vpop.permute.xlu0 %836
        %838 = vrot.lane.b32.xlu0 %v775, 8
        %v839 = vpop.permute.xlu0 %838
        %874 = vrot.lane.b32.xlu0 %v419, 12
        %v875 = vpop.permute.xlu0 %874
        %876 = vrot.lane.b32.xlu0 %v420, 12
        %v877 = vpop.permute.xlu0 %876
        %878 = vrot.lane.b32.xlu0 %v422, 12
        %v879 = vpop.permute.xlu0 %878
        %880 = vrot.lane.b32.xlu0 %v423, 12
        %v881 = vpop.permute.xlu0 %880
        %882 = vrot.lane.b32.xlu0 %v425, 12
        %v883 = vpop.permute.xlu0 %882
        %884 = vrot.lane.b32.xlu0 %v426, 12
        %v885 = vpop.permute.xlu0 %884
        %886 = vrot.lane.b32.xlu0 %v428, 12
        %v887 = vpop.permute.xlu0 %886
        %888 = vrot.lane.b32.xlu0 %v429, 12
        %v889 = vpop.permute.xlu0 %888
        %890 = vrot.lane.b32.xlu0 %v431, 12
        %v891 = vpop.permute.xlu0 %890
        %892 = vrot.lane.b32.xlu0 %v432, 12
        %v893 = vpop.permute.xlu0 %892
        %894 = vrot.lane.b32.xlu0 %v434, 12
        %v895 = vpop.permute.xlu0 %894
        %896 = vrot.lane.b32.xlu0 %v435, 12
        %v897 = vpop.permute.xlu0 %896
        %898 = vrot.lane.b32.xlu0 %v437, 12
        %v899 = vpop.permute.xlu0 %898
        %900 = vrot.lane.b32.xlu0 %v438, 12
        %v901 = vpop.permute.xlu0 %900
        %902 = vrot.lane.b32.xlu0 %v440, 12
        %v903 = vpop.permute.xlu0 %902
        %904 = vrot.lane.b32.xlu0 %v441, 12
        %v905 = vpop.permute.xlu0 %904
        %906 = vrot.lane.b32.xlu0 %v443, 12
        %v907 = vpop.permute.xlu0 %906
        %908 = vrot.lane.b32.xlu0 %v444, 12
        %v909 = vpop.permute.xlu0 %908
        %910 = vrot.lane.b32.xlu0 %v446, 12
        %v911 = vpop.permute.xlu0 %910
        %912 = vrot.lane.b32.xlu0 %v447, 12
        %v913 = vpop.permute.xlu0 %912
        %914 = vrot.lane.b32.xlu0 %v449, 12
        %v915 = vpop.permute.xlu0 %914
        %916 = vrot.lane.b32.xlu0 %v450, 12
        %v917 = vpop.permute.xlu0 %916
        %918 = vrot.lane.b32.xlu0 %v452, 12
        %v919 = vpop.permute.xlu0 %918
        %920 = vrot.lane.b32.xlu0 %v453, 12
        %v921 = vpop.permute.xlu0 %920
        %922 = vrot.lane.b32.xlu0 %v455, 12
        %v923 = vpop.permute.xlu0 %922
        %924 = vrot.lane.b32.xlu0 %v456, 12
        %v925 = vpop.permute.xlu0 %924
        %926 = vrot.lane.b32.xlu0 %v458, 12
        %v927 = vpop.permute.xlu0 %926
        %928 = vrot.lane.b32.xlu0 %v459, 12
        %v929 = vpop.permute.xlu0 %928
        %930 = vrot.lane.b32.xlu0 %v461, 12
        %v931 = vpop.permute.xlu0 %930
        %932 = vrot.lane.b32.xlu0 %v462, 12
        %v933 = vpop.permute.xlu0 %932
        %934 = vrot.lane.b32.xlu0 %v464, 12
        %v935 = vpop.permute.xlu0 %934
        %936 = vrot.lane.b32.xlu0 %v465, 12
        %v937 = vpop.permute.xlu0 %936
        %v971 = vrot.slane %v464, 1
        %v972 = vrot.slane %v465, 1
        %v973 = vsel %vm518, %v971, %v972
        %v974 = vrot.slane %v466, 1
        %v975 = vsel %vm518, %v972, %v974
        %976 = vrot.lane.b32.xlu0 %v526, 16
        %v977 = vpop.permute.xlu0 %976
        %978 = vrot.lane.b32.xlu0 %v528, 16
        %v979 = vpop.permute.xlu0 %978
        %980 = vrot.lane.b32.xlu0 %v531, 16
        %v981 = vpop.permute.xlu0 %980
        %982 = vrot.lane.b32.xlu0 %v533, 16
        %v983 = vpop.permute.xlu0 %982
        %984 = vrot.lane.b32.xlu0 %v536, 16
        %v985 = vpop.permute.xlu0 %984
        %986 = vrot.lane.b32.xlu0 %v538, 16
        %v987 = vpop.permute.xlu0 %986
        %988 = vrot.lane.b32.xlu0 %v541, 16
        %v989 = vpop.permute.xlu0 %988
        %990 = vrot.lane.b32.xlu0 %v543, 16
        %v991 = vpop.permute.xlu0 %990
        %992 = vrot.lane.b32.xlu0 %v546, 16
        %v993 = vpop.permute.xlu0 %992
        %994 = vrot.lane.b32.xlu0 %v548, 16
        %v995 = vpop.permute.xlu0 %994
        %996 = vrot.lane.b32.xlu0 %v551, 16
        %v997 = vpop.permute.xlu0 %996
        %998 = vrot.lane.b32.xlu0 %v553, 16
        %v999 = vpop.permute.xlu0 %998
        %1000 = vrot.lane.b32.xlu0 %v556, 16
        %v1001 = vpop.permute.xlu0 %1000
        %1002 = vrot.lane.b32.xlu0 %v558, 16
        %v1003 = vpop.permute.xlu0 %1002
        %1004 = vrot.lane.b32.xlu0 %v561, 16
        %v1005 = vpop.permute.xlu0 %1004
        %1006 = vrot.lane.b32.xlu0 %v563, 16
        %v1007 = vpop.permute.xlu0 %1006
        %1008 = vrot.lane.b32.xlu0 %v566, 16
        %v1009 = vpop.permute.xlu0 %1008
        %1010 = vrot.lane.b32.xlu0 %v568, 16
        %v1011 = vpop.permute.xlu0 %1010
        %1012 = vrot.lane.b32.xlu0 %v571, 16
        %v1013 = vpop.permute.xlu0 %1012
        %1014 = vrot.lane.b32.xlu0 %v573, 16
        %v1015 = vpop.permute.xlu0 %1014
        %1016 = vrot.lane.b32.xlu0 %v576, 16
        %v1017 = vpop.permute.xlu0 %1016
        %1018 = vrot.lane.b32.xlu0 %v578, 16
        %v1019 = vpop.permute.xlu0 %1018
        %1020 = vrot.lane.b32.xlu0 %v581, 16
        %v1021 = vpop.permute.xlu0 %1020
        %1022 = vrot.lane.b32.xlu0 %v583, 16
        %v1023 = vpop.permute.xlu0 %1022
        %1024 = vrot.lane.b32.xlu0 %v586, 16
        %v1025 = vpop.permute.xlu0 %1024
        %1026 = vrot.lane.b32.xlu0 %v588, 16
        %v1027 = vpop.permute.xlu0 %1026
        %1028 = vrot.lane.b32.xlu0 %v591, 16
        %v1029 = vpop.permute.xlu0 %1028
        %1030 = vrot.lane.b32.xlu0 %v593, 16
        %v1031 = vpop.permute.xlu0 %1030
        %1032 = vrot.lane.b32.xlu0 %v596, 16
        %v1033 = vpop.permute.xlu0 %1032
        %1034 = vrot.lane.b32.xlu0 %v598, 16
        %v1035 = vpop.permute.xlu0 %1034
        %1036 = vrot.lane.b32.xlu0 %v973, 16
        %v1037 = vpop.permute.xlu0 %1036
        %1038 = vrot.lane.b32.xlu0 %v975, 16
        %v1039 = vpop.permute.xlu0 %1038
        %v1072 = vrot.slane %v464, 2
        %v1073 = vrot.slane %v465, 2
        %v1074 = vsel %vm695, %v1072, %v1073
        %v1075 = vrot.slane %v466, 2
        %v1076 = vsel %vm695, %v1073, %v1075
        %1077 = vrot.lane.b32.xlu0 %v703, 20
        %v1078 = vpop.permute.xlu0 %1077
        %1079 = vrot.lane.b32.xlu0 %v705, 20
        %v1080 = vpop.permute.xlu0 %1079
        %1081 = vrot.lane.b32.xlu0 %v708, 20
        %v1082 = vpop.permute.xlu0 %1081
        %1083 = vrot.lane.b32.xlu0 %v710, 20
        %v1084 = vpop.permute.xlu0 %1083
        %1085 = vrot.lane.b32.xlu0 %v713, 20
        %v1086 = vpop.permute.xlu0 %1085
        %1087 = vrot.lane.b32.xlu0 %v715, 20
        %v1088 = vpop.permute.xlu0 %1087
        %1089 = vrot.lane.b32.xlu0 %v718, 20
        %v1090 = vpop.permute.xlu0 %1089
        %1091 = vrot.lane.b32.xlu0 %v720, 20
        %v1092 = vpop.permute.xlu0 %1091
        %1093 = vrot.lane.b32.xlu0 %v723, 20
        %v1094 = vpop.permute.xlu0 %1093
        %1095 = vrot.lane.b32.xlu0 %v725, 20
        %v1096 = vpop.permute.xlu0 %1095
        %1097 = vrot.lane.b32.xlu0 %v728, 20
        %v1098 = vpop.permute.xlu0 %1097
        %1099 = vrot.lane.b32.xlu0 %v730, 20
        %v1100 = vpop.permute.xlu0 %1099
        %1101 = vrot.lane.b32.xlu0 %v733, 20
        %v1102 = vpop.permute.xlu0 %1101
        %1103 = vrot.lane.b32.xlu0 %v735, 20
        %v1104 = vpop.permute.xlu0 %1103
        %1105 = vrot.lane.b32.xlu0 %v738, 20
        %v1106 = vpop.permute.xlu0 %1105
        %1107 = vrot.lane.b32.xlu0 %v740, 20
        %v1108 = vpop.permute.xlu0 %1107
        %1109 = vrot.lane.b32.xlu0 %v743, 20
        %v1110 = vpop.permute.xlu0 %1109
        %1111 = vrot.lane.b32.xlu0 %v745, 20
        %v1112 = vpop.permute.xlu0 %1111
        %1113 = vrot.lane.b32.xlu0 %v748, 20
        %v1114 = vpop.permute.xlu0 %1113
        %1115 = vrot.lane.b32.xlu0 %v750, 20
        %v1116 = vpop.permute.xlu0 %1115
        %1117 = vrot.lane.b32.xlu0 %v753, 20
        %v1118 = vpop.permute.xlu0 %1117
        %1119 = vrot.lane.b32.xlu0 %v755, 20
        %v1120 = vpop.permute.xlu0 %1119
        %1121 = vrot.lane.b32.xlu0 %v758, 20
        %v1122 = vpop.permute.xlu0 %1121
        %1123 = vrot.lane.b32.xlu0 %v760, 20
        %v1124 = vpop.permute.xlu0 %1123
        %1125 = vrot.lane.b32.xlu0 %v763, 20
        %v1126 = vpop.permute.xlu0 %1125
        %1127 = vrot.lane.b32.xlu0 %v765, 20
        %v1128 = vpop.permute.xlu0 %1127
        %1129 = vrot.lane.b32.xlu0 %v768, 20
        %v1130 = vpop.permute.xlu0 %1129
        %1131 = vrot.lane.b32.xlu0 %v770, 20
        %v1132 = vpop.permute.xlu0 %1131
        %1133 = vrot.lane.b32.xlu0 %v773, 20
        %v1134 = vpop.permute.xlu0 %1133
        %1135 = vrot.lane.b32.xlu0 %v775, 20
        %v1136 = vpop.permute.xlu0 %1135
        %1137 = vrot.lane.b32.xlu0 %v1074, 20
        %v1138 = vpop.permute.xlu0 %1137
        %1139 = vrot.lane.b32.xlu0 %v1076, 20
        %v1140 = vpop.permute.xlu0 %1139
        %1175 = vrot.lane.b32.xlu0 %v422, 24
        %v1176 = vpop.permute.xlu0 %1175
        %1177 = vrot.lane.b32.xlu0 %v423, 24
        %v1178 = vpop.permute.xlu0 %1177
        %1179 = vrot.lane.b32.xlu0 %v425, 24
        %v1180 = vpop.permute.xlu0 %1179
        %1181 = vrot.lane.b32.xlu0 %v426, 24
        %v1182 = vpop.permute.xlu0 %1181
        %1183 = vrot.lane.b32.xlu0 %v428, 24
        %v1184 = vpop.permute.xlu0 %1183
        %1185 = vrot.lane.b32.xlu0 %v429, 24
        %v1186 = vpop.permute.xlu0 %1185
        %1187 = vrot.lane.b32.xlu0 %v431, 24
        %v1188 = vpop.permute.xlu0 %1187
        %1189 = vrot.lane.b32.xlu0 %v432, 24
        %v1190 = vpop.permute.xlu0 %1189
        %1191 = vrot.lane.b32.xlu0 %v434, 24
        %v1192 = vpop.permute.xlu0 %1191
        %1193 = vrot.lane.b32.xlu0 %v435, 24
        %v1194 = vpop.permute.xlu0 %1193
        %1195 = vrot.lane.b32.xlu0 %v437, 24
        %v1196 = vpop.permute.xlu0 %1195
        %1197 = vrot.lane.b32.xlu0 %v438, 24
        %v1198 = vpop.permute.xlu0 %1197
        %1199 = vrot.lane.b32.xlu0 %v440, 24
        %v1200 = vpop.permute.xlu0 %1199
        %1201 = vrot.lane.b32.xlu0 %v441, 24
        %v1202 = vpop.permute.xlu0 %1201
        %1203 = vrot.lane.b32.xlu0 %v443, 24
        %v1204 = vpop.permute.xlu0 %1203
        %1205 = vrot.lane.b32.xlu0 %v444, 24
        %v1206 = vpop.permute.xlu0 %1205
        %1207 = vrot.lane.b32.xlu0 %v446, 24
        %v1208 = vpop.permute.xlu0 %1207
        %1209 = vrot.lane.b32.xlu0 %v447, 24
        %v1210 = vpop.permute.xlu0 %1209
        %1211 = vrot.lane.b32.xlu0 %v449, 24
        %v1212 = vpop.permute.xlu0 %1211
        %1213 = vrot.lane.b32.xlu0 %v450, 24
        %v1214 = vpop.permute.xlu0 %1213
        %1215 = vrot.lane.b32.xlu0 %v452, 24
        %v1216 = vpop.permute.xlu0 %1215
        %1217 = vrot.lane.b32.xlu0 %v453, 24
        %v1218 = vpop.permute.xlu0 %1217
        %1219 = vrot.lane.b32.xlu0 %v455, 24
        %v1220 = vpop.permute.xlu0 %1219
        %1221 = vrot.lane.b32.xlu0 %v456, 24
        %v1222 = vpop.permute.xlu0 %1221
        %1223 = vrot.lane.b32.xlu0 %v458, 24
        %v1224 = vpop.permute.xlu0 %1223
        %1225 = vrot.lane.b32.xlu0 %v459, 24
        %v1226 = vpop.permute.xlu0 %1225
        %1227 = vrot.lane.b32.xlu0 %v461, 24
        %v1228 = vpop.permute.xlu0 %1227
        %1229 = vrot.lane.b32.xlu0 %v462, 24
        %v1230 = vpop.permute.xlu0 %1229
        %1231 = vrot.lane.b32.xlu0 %v464, 24
        %v1232 = vpop.permute.xlu0 %1231
        %1233 = vrot.lane.b32.xlu0 %v465, 24
        %v1234 = vpop.permute.xlu0 %1233
        %1235 = vrot.lane.b32.xlu0 %v467, 24
        %v1236 = vpop.permute.xlu0 %1235
        %1237 = vrot.lane.b32.xlu0 %v468, 24
        %v1238 = vpop.permute.xlu0 %1237
        %v1272 = vrot.slane %v467, 1
        %v1273 = vrot.slane %v468, 1
        %v1274 = vsel %vm518, %v1272, %v1273
        %v1275 = vrot.slane %v469, 1
        %v1276 = vsel %vm518, %v1273, %v1275
        %1277 = vrot.lane.b32.xlu0 %v531, 28
        %v1278 = vpop.permute.xlu0 %1277
        %1279 = vrot.lane.b32.xlu0 %v533, 28
        %v1280 = vpop.permute.xlu0 %1279
        %1281 = vrot.lane.b32.xlu0 %v536, 28
        %v1282 = vpop.permute.xlu0 %1281
        %1283 = vrot.lane.b32.xlu0 %v538, 28
        %v1284 = vpop.permute.xlu0 %1283
        %1285 = vrot.lane.b32.xlu0 %v541, 28
        %v1286 = vpop.permute.xlu0 %1285
        %1287 = vrot.lane.b32.xlu0 %v543, 28
        %v1288 = vpop.permute.xlu0 %1287
        %1289 = vrot.lane.b32.xlu0 %v546, 28
        %v1290 = vpop.permute.xlu0 %1289
        %1291 = vrot.lane.b32.xlu0 %v548, 28
        %v1292 = vpop.permute.xlu0 %1291
        %1293 = vrot.lane.b32.xlu0 %v551, 28
        %v1294 = vpop.permute.xlu0 %1293
        %1295 = vrot.lane.b32.xlu0 %v553, 28
        %v1296 = vpop.permute.xlu0 %1295
        %1297 = vrot.lane.b32.xlu0 %v556, 28
        %v1298 = vpop.permute.xlu0 %1297
        %1299 = vrot.lane.b32.xlu0 %v558, 28
        %v1300 = vpop.permute.xlu0 %1299
        %1301 = vrot.lane.b32.xlu0 %v561, 28
        %v1302 = vpop.permute.xlu0 %1301
        %1303 = vrot.lane.b32.xlu0 %v563, 28
        %v1304 = vpop.permute.xlu0 %1303
        %1305 = vrot.lane.b32.xlu0 %v566, 28
        %v1306 = vpop.permute.xlu0 %1305
        %1307 = vrot.lane.b32.xlu0 %v568, 28
        %v1308 = vpop.permute.xlu0 %1307
        %1309 = vrot.lane.b32.xlu0 %v571, 28
        %v1310 = vpop.permute.xlu0 %1309
        %1311 = vrot.lane.b32.xlu0 %v573, 28
        %v1312 = vpop.permute.xlu0 %1311
        %1313 = vrot.lane.b32.xlu0 %v576, 28
        %v1314 = vpop.permute.xlu0 %1313
        %1315 = vrot.lane.b32.xlu0 %v578, 28
        %v1316 = vpop.permute.xlu0 %1315
        %1317 = vrot.lane.b32.xlu0 %v581, 28
        %v1318 = vpop.permute.xlu0 %1317
        %1319 = vrot.lane.b32.xlu0 %v583, 28
        %v1320 = vpop.permute.xlu0 %1319
        %1321 = vrot.lane.b32.xlu0 %v586, 28
        %v1322 = vpop.permute.xlu0 %1321
        %1323 = vrot.lane.b32.xlu0 %v588, 28
        %v1324 = vpop.permute.xlu0 %1323
        %1325 = vrot.lane.b32.xlu0 %v591, 28
        %v1326 = vpop.permute.xlu0 %1325
        %1327 = vrot.lane.b32.xlu0 %v593, 28
        %v1328 = vpop.permute.xlu0 %1327
        %1329 = vrot.lane.b32.xlu0 %v596, 28
        %v1330 = vpop.permute.xlu0 %1329
        %1331 = vrot.lane.b32.xlu0 %v598, 28
        %v1332 = vpop.permute.xlu0 %1331
        %1333 = vrot.lane.b32.xlu0 %v973, 28
        %v1334 = vpop.permute.xlu0 %1333
        %1335 = vrot.lane.b32.xlu0 %v975, 28
        %v1336 = vpop.permute.xlu0 %1335
        %1337 = vrot.lane.b32.xlu0 %v1274, 28
        %v1338 = vpop.permute.xlu0 %1337
        %1339 = vrot.lane.b32.xlu0 %v1276, 28
        %v1340 = vpop.permute.xlu0 %1339
        %v1373 = vrot.slane %v467, 2
        %v1374 = vrot.slane %v468, 2
        %v1375 = vsel %vm695, %v1373, %v1374
        %v1376 = vrot.slane %v469, 2
        %v1377 = vsel %vm695, %v1374, %v1376
        %1378 = vrot.lane.b32.xlu0 %v708, 32
        %v1379 = vpop.permute.xlu0 %1378
        %1380 = vrot.lane.b32.xlu0 %v710, 32
        %v1381 = vpop.permute.xlu0 %1380
        %1382 = vrot.lane.b32.xlu0 %v713, 32
        %v1383 = vpop.permute.xlu0 %1382
        %1384 = vrot.lane.b32.xlu0 %v715, 32
        %v1385 = vpop.permute.xlu0 %1384
        %1386 = vrot.lane.b32.xlu0 %v718, 32
        %v1387 = vpop.permute.xlu0 %1386
        %1388 = vrot.lane.b32.xlu0 %v720, 32
        %v1389 = vpop.permute.xlu0 %1388
        %1390 = vrot.lane.b32.xlu0 %v723, 32
        %v1391 = vpop.permute.xlu0 %1390
        %1392 = vrot.lane.b32.xlu0 %v725, 32
        %v1393 = vpop.permute.xlu0 %1392
        %1394 = vrot.lane.b32.xlu0 %v728, 32
        %v1395 = vpop.permute.xlu0 %1394
        %1396 = vrot.lane.b32.xlu0 %v730, 32
        %v1397 = vpop.permute.xlu0 %1396
        %1398 = vrot.lane.b32.xlu0 %v733, 32
        %v1399 = vpop.permute.xlu0 %1398
        %1400 = vrot.lane.b32.xlu0 %v735, 32
        %v1401 = vpop.permute.xlu0 %1400
        %1402 = vrot.lane.b32.xlu0 %v738, 32
        %v1403 = vpop.permute.xlu0 %1402
        %1404 = vrot.lane.b32.xlu0 %v740, 32
        %v1405 = vpop.permute.xlu0 %1404
        %1406 = vrot.lane.b32.xlu0 %v743, 32
        %v1407 = vpop.permute.xlu0 %1406
        %1408 = vrot.lane.b32.xlu0 %v745, 32
        %v1409 = vpop.permute.xlu0 %1408
        %1410 = vrot.lane.b32.xlu0 %v748, 32
        %v1411 = vpop.permute.xlu0 %1410
        %1412 = vrot.lane.b32.xlu0 %v750, 32
        %v1413 = vpop.permute.xlu0 %1412
        %1414 = vrot.lane.b32.xlu0 %v753, 32
        %v1415 = vpop.permute.xlu0 %1414
        %1416 = vrot.lane.b32.xlu0 %v755, 32
        %v1417 = vpop.permute.xlu0 %1416
        %1418 = vrot.lane.b32.xlu0 %v758, 32
        %v1419 = vpop.permute.xlu0 %1418
        %1420 = vrot.lane.b32.xlu0 %v760, 32
        %v1421 = vpop.permute.xlu0 %1420
        %1422 = vrot.lane.b32.xlu0 %v763, 32
        %v1423 = vpop.permute.xlu0 %1422
        %1424 = vrot.lane.b32.xlu0 %v765, 32
        %v1425 = vpop.permute.xlu0 %1424
        %1426 = vrot.lane.b32.xlu0 %v768, 32
        %v1427 = vpop.permute.xlu0 %1426
        %1428 = vrot.lane.b32.xlu0 %v770, 32
        %v1429 = vpop.permute.xlu0 %1428
        %1430 = vrot.lane.b32.xlu0 %v773, 32
        %v1431 = vpop.permute.xlu0 %1430
        %1432 = vrot.lane.b32.xlu0 %v775, 32
        %v1433 = vpop.permute.xlu0 %1432
        %1434 = vrot.lane.b32.xlu0 %v1074, 32
        %v1435 = vpop.permute.xlu0 %1434
        %1436 = vrot.lane.b32.xlu0 %v1076, 32
        %v1437 = vpop.permute.xlu0 %1436
        %1438 = vrot.lane.b32.xlu0 %v1375, 32
        %v1439 = vpop.permute.xlu0 %1438
        %1440 = vrot.lane.b32.xlu0 %v1377, 32
        %v1441 = vpop.permute.xlu0 %1440
        %v1474 = vsel %vm223, %v416, %v600
        %v1475 = vsel %vm223, %v417, %v602
        %v1476 = vsel %vm223, %v419, %v604
        %v1477 = vsel %vm223, %v420, %v606
        %v1478 = vsel %vm223, %v422, %v608
        %v1479 = vsel %vm223, %v423, %v610
        %v1480 = vsel %vm223, %v425, %v612
        %v1481 = vsel %vm223, %v426, %v614
        %v1482 = vsel %vm223, %v428, %v616
        %v1483 = vsel %vm223, %v429, %v618
        %v1484 = vsel %vm223, %v431, %v620
        %v1485 = vsel %vm223, %v432, %v622
        %v1486 = vsel %vm223, %v434, %v624
        %v1487 = vsel %vm223, %v435, %v626
        %v1488 = vsel %vm223, %v437, %v628
        %v1489 = vsel %vm223, %v438, %v630
        %v1490 = vsel %vm223, %v440, %v632
        %v1491 = vsel %vm223, %v441, %v634
        %v1492 = vsel %vm223, %v443, %v636
        %v1493 = vsel %vm223, %v444, %v638
        %v1494 = vsel %vm223, %v446, %v640
        %v1495 = vsel %vm223, %v447, %v642
        %v1496 = vsel %vm223, %v449, %v644
        %v1497 = vsel %vm223, %v450, %v646
        %v1498 = vsel %vm223, %v452, %v648
        %v1499 = vsel %vm223, %v453, %v650
        %v1500 = vsel %vm223, %v455, %v652
        %v1501 = vsel %vm223, %v456, %v654
        %v1502 = vsel %vm223, %v458, %v656
        %v1503 = vsel %vm223, %v459, %v658
        %v1504 = vsel %vm223, %v461, %v660
        %v1505 = vsel %vm223, %v462, %v662
        %v1506 = vsel %vm279, %v1474, %v777
        %v1507 = vsel %vm279, %v1475, %v779
        %v1508 = vsel %vm279, %v1476, %v781
        %v1509 = vsel %vm279, %v1477, %v783
        %v1510 = vsel %vm279, %v1478, %v785
        %v1511 = vsel %vm279, %v1479, %v787
        %v1512 = vsel %vm279, %v1480, %v789
        %v1513 = vsel %vm279, %v1481, %v791
        %v1514 = vsel %vm279, %v1482, %v793
        %v1515 = vsel %vm279, %v1483, %v795
        %v1516 = vsel %vm279, %v1484, %v797
        %v1517 = vsel %vm279, %v1485, %v799
        %v1518 = vsel %vm279, %v1486, %v801
        %v1519 = vsel %vm279, %v1487, %v803
        %v1520 = vsel %vm279, %v1488, %v805
        %v1521 = vsel %vm279, %v1489, %v807
        %v1522 = vsel %vm279, %v1490, %v809
        %v1523 = vsel %vm279, %v1491, %v811
        %v1524 = vsel %vm279, %v1492, %v813
        %v1525 = vsel %vm279, %v1493, %v815
        %v1526 = vsel %vm279, %v1494, %v817
        %v1527 = vsel %vm279, %v1495, %v819
        %v1528 = vsel %vm279, %v1496, %v821
        %v1529 = vsel %vm279, %v1497, %v823
        %v1530 = vsel %vm279, %v1498, %v825
        %v1531 = vsel %vm279, %v1499, %v827
        %v1532 = vsel %vm279, %v1500, %v829
        %v1533 = vsel %vm279, %v1501, %v831
        %v1534 = vsel %vm279, %v1502, %v833
        %v1535 = vsel %vm279, %v1503, %v835
        %v1536 = vsel %vm279, %v1504, %v837
        %v1537 = vsel %vm279, %v1505, %v839
        %vm1538 = vcmask 97280
        %v1539 = vsel %vm1538, %v1506, %v875
        %v1540 = vsel %vm1538, %v1507, %v877
        %v1541 = vsel %vm1538, %v1508, %v879
        %v1542 = vsel %vm1538, %v1509, %v881
        %v1543 = vsel %vm1538, %v1510, %v883
        %v1544 = vsel %vm1538, %v1511, %v885
        %v1545 = vsel %vm1538, %v1512, %v887
        %v1546 = vsel %vm1538, %v1513, %v889
        %v1547 = vsel %vm1538, %v1514, %v891
        %v1548 = vsel %vm1538, %v1515, %v893
        %v1549 = vsel %vm1538, %v1516, %v895
        %v1550 = vsel %vm1538, %v1517, %v897
        %v1551 = vsel %vm1538, %v1518, %v899
        %v1552 = vsel %vm1538, %v1519, %v901
        %v1553 = vsel %vm1538, %v1520, %v903
        %v1554 = vsel %vm1538, %v1521, %v905
        %v1555 = vsel %vm1538, %v1522, %v907
        %v1556 = vsel %vm1538, %v1523, %v909
        %v1557 = vsel %vm1538, %v1524, %v911
        %v1558 = vsel %vm1538, %v1525, %v913
        %v1559 = vsel %vm1538, %v1526, %v915
        %v1560 = vsel %vm1538, %v1527, %v917
        %v1561 = vsel %vm1538, %v1528, %v919
        %v1562 = vsel %vm1538, %v1529, %v921
        %v1563 = vsel %vm1538, %v1530, %v923
        %v1564 = vsel %vm1538, %v1531, %v925
        %v1565 = vsel %vm1538, %v1532, %v927
        %v1566 = vsel %vm1538, %v1533, %v929
        %v1567 = vsel %vm1538, %v1534, %v931
        %v1568 = vsel %vm1538, %v1535, %v933
        %v1569 = vsel %vm1538, %v1536, %v935
        %v1570 = vsel %vm1538, %v1537, %v937
        %vm1571 = vcmask 130048
        %v1572 = vsel %vm1571, %v1539, %v977
        %v1573 = vsel %vm1571, %v1540, %v979
        %v1574 = vsel %vm1571, %v1541, %v981
        %v1575 = vsel %vm1571, %v1542, %v983
        %v1576 = vsel %vm1571, %v1543, %v985
        %v1577 = vsel %vm1571, %v1544, %v987
        %v1578 = vsel %vm1571, %v1545, %v989
        %v1579 = vsel %vm1571, %v1546, %v991
        %v1580 = vsel %vm1571, %v1547, %v993
        %v1581 = vsel %vm1571, %v1548, %v995
        %v1582 = vsel %vm1571, %v1549, %v997
        %v1583 = vsel %vm1571, %v1550, %v999
        %v1584 = vsel %vm1571, %v1551, %v1001
        %v1585 = vsel %vm1571, %v1552, %v1003
        %v1586 = vsel %vm1571, %v1553, %v1005
        %v1587 = vsel %vm1571, %v1554, %v1007
        %v1588 = vsel %vm1571, %v1555, %v1009
        %v1589 = vsel %vm1571, %v1556, %v1011
        %v1590 = vsel %vm1571, %v1557, %v1013
        %v1591 = vsel %vm1571, %v1558, %v1015
        %v1592 = vsel %vm1571, %v1559, %v1017
        %v1593 = vsel %vm1571, %v1560, %v1019
        %v1594 = vsel %vm1571, %v1561, %v1021
        %v1595 = vsel %vm1571, %v1562, %v1023
        %v1596 = vsel %vm1571, %v1563, %v1025
        %v1597 = vsel %vm1571, %v1564, %v1027
        %v1598 = vsel %vm1571, %v1565, %v1029
        %v1599 = vsel %vm1571, %v1566, %v1031
        %v1600 = vsel %vm1571, %v1567, %v1033
        %v1601 = vsel %vm1571, %v1568, %v1035
        %v1602 = vsel %vm1571, %v1569, %v1037
        %v1603 = vsel %vm1571, %v1570, %v1039
        %vm1604 = vcmask 162816
        %v1605 = vsel %vm1604, %v1572, %v1078
        %v1606 = vsel %vm1604, %v1573, %v1080
        %v1607 = vsel %vm1604, %v1574, %v1082
        %v1608 = vsel %vm1604, %v1575, %v1084
        %v1609 = vsel %vm1604, %v1576, %v1086
        %v1610 = vsel %vm1604, %v1577, %v1088
        %v1611 = vsel %vm1604, %v1578, %v1090
        %v1612 = vsel %vm1604, %v1579, %v1092
        %v1613 = vsel %vm1604, %v1580, %v1094
        %v1614 = vsel %vm1604, %v1581, %v1096
        %v1615 = vsel %vm1604, %v1582, %v1098
        %v1616 = vsel %vm1604, %v1583, %v1100
        %v1617 = vsel %vm1604, %v1584, %v1102
        %v1618 = vsel %vm1604, %v1585, %v1104
        %v1619 = vsel %vm1604, %v1586, %v1106
        %v1620 = vsel %vm1604, %v1587, %v1108
        %v1621 = vsel %vm1604, %v1588, %v1110
        %v1622 = vsel %vm1604, %v1589, %v1112
        %v1623 = vsel %vm1604, %v1590, %v1114
        %v1624 = vsel %vm1604, %v1591, %v1116
        %v1625 = vsel %vm1604, %v1592, %v1118
        %v1626 = vsel %vm1604, %v1593, %v1120
        %v1627 = vsel %vm1604, %v1594, %v1122
        %v1628 = vsel %vm1604, %v1595, %v1124
        %v1629 = vsel %vm1604, %v1596, %v1126
        %v1630 = vsel %vm1604, %v1597, %v1128
        %v1631 = vsel %vm1604, %v1598, %v1130
        %v1632 = vsel %vm1604, %v1599, %v1132
        %v1633 = vsel %vm1604, %v1600, %v1134
        %v1634 = vsel %vm1604, %v1601, %v1136
        %v1635 = vsel %vm1604, %v1602, %v1138
        %v1636 = vsel %vm1604, %v1603, %v1140
        %vm1637 = vcmask 195584
        %v1638 = vsel %vm1637, %v1605, %v1176
        %v1639 = vsel %vm1637, %v1606, %v1178
        %v1640 = vsel %vm1637, %v1607, %v1180
        %v1641 = vsel %vm1637, %v1608, %v1182
        %v1642 = vsel %vm1637, %v1609, %v1184
        %v1643 = vsel %vm1637, %v1610, %v1186
        %v1644 = vsel %vm1637, %v1611, %v1188
        %v1645 = vsel %vm1637, %v1612, %v1190
        %v1646 = vsel %vm1637, %v1613, %v1192
        %v1647 = vsel %vm1637, %v1614, %v1194
        %v1648 = vsel %vm1637, %v1615, %v1196
        %v1649 = vsel %vm1637, %v1616, %v1198
        %v1650 = vsel %vm1637, %v1617, %v1200
        %v1651 = vsel %vm1637, %v1618, %v1202
        %v1652 = vsel %vm1637, %v1619, %v1204
        %v1653 = vsel %vm1637, %v1620, %v1206
        %v1654 = vsel %vm1637, %v1621, %v1208
        %v1655 = vsel %vm1637, %v1622, %v1210
        %v1656 = vsel %vm1637, %v1623, %v1212
        %v1657 = vsel %vm1637, %v1624, %v1214
        %v1658 = vsel %vm1637, %v1625, %v1216
        %v1659 = vsel %vm1637, %v1626, %v1218
        %v1660 = vsel %vm1637, %v1627, %v1220
        %v1661 = vsel %vm1637, %v1628, %v1222
        %v1662 = vsel %vm1637, %v1629, %v1224
        %v1663 = vsel %vm1637, %v1630, %v1226
        %v1664 = vsel %vm1637, %v1631, %v1228
        %v1665 = vsel %vm1637, %v1632, %v1230
        %v1666 = vsel %vm1637, %v1633, %v1232
        %v1667 = vsel %vm1637, %v1634, %v1234
        %v1668 = vsel %vm1637, %v1635, %v1236
        %v1669 = vsel %vm1637, %v1636, %v1238
        %vm1670 = vcmask 228352
        %v1671 = vsel %vm1670, %v1638, %v1278
        %v1672 = vsel %vm1670, %v1639, %v1280
        %v1673 = vsel %vm1670, %v1640, %v1282
        %v1674 = vsel %vm1670, %v1641, %v1284
        %v1675 = vsel %vm1670, %v1642, %v1286
        %v1676 = vsel %vm1670, %v1643, %v1288
        %v1677 = vsel %vm1670, %v1644, %v1290
        %v1678 = vsel %vm1670, %v1645, %v1292
        %v1679 = vsel %vm1670, %v1646, %v1294
        %v1680 = vsel %vm1670, %v1647, %v1296
        %v1681 = vsel %vm1670, %v1648, %v1298
        %v1682 = vsel %vm1670, %v1649, %v1300
        %v1683 = vsel %vm1670, %v1650, %v1302
        %v1684 = vsel %vm1670, %v1651, %v1304
        %v1685 = vsel %vm1670, %v1652, %v1306
        %v1686 = vsel %vm1670, %v1653, %v1308
        %v1687 = vsel %vm1670, %v1654, %v1310
        %v1688 = vsel %vm1670, %v1655, %v1312
        %v1689 = vsel %vm1670, %v1656, %v1314
        %v1690 = vsel %vm1670, %v1657, %v1316
        %v1691 = vsel %vm1670, %v1658, %v1318
        %v1692 = vsel %vm1670, %v1659, %v1320
        %v1693 = vsel %vm1670, %v1660, %v1322
        %v1694 = vsel %vm1670, %v1661, %v1324
        %v1695 = vsel %vm1670, %v1662, %v1326
        %v1696 = vsel %vm1670, %v1663, %v1328
        %v1697 = vsel %vm1670, %v1664, %v1330
        %v1698 = vsel %vm1670, %v1665, %v1332
        %v1699 = vsel %vm1670, %v1666, %v1334
        %v1700 = vsel %vm1670, %v1667, %v1336
        %v1701 = vsel %vm1670, %v1668, %v1338
        %v1702 = vsel %vm1670, %v1669, %v1340
        %vm1703 = vcmask 261120
        %v1704 = vsel %vm1703, %v1671, %v1379
        %v1705 = vsel %vm1703, %v1672, %v1381
        %v1706 = vsel %vm1703, %v1673, %v1383
        %v1707 = vsel %vm1703, %v1674, %v1385
        %v1708 = vsel %vm1703, %v1675, %v1387
        %v1709 = vsel %vm1703, %v1676, %v1389
        %v1710 = vsel %vm1703, %v1677, %v1391
        %v1711 = vsel %vm1703, %v1678, %v1393
        %v1712 = vsel %vm1703, %v1679, %v1395
        %v1713 = vsel %vm1703, %v1680, %v1397
        %v1714 = vsel %vm1703, %v1681, %v1399
        %v1715 = vsel %vm1703, %v1682, %v1401
        %v1716 = vsel %vm1703, %v1683, %v1403
        %v1717 = vsel %vm1703, %v1684, %v1405
        %v1718 = vsel %vm1703, %v1685, %v1407
        %v1719 = vsel %vm1703, %v1686, %v1409
        %v1720 = vsel %vm1703, %v1687, %v1411
        %v1721 = vsel %vm1703, %v1688, %v1413
        %v1722 = vsel %vm1703, %v1689, %v1415
        %v1723 = vsel %vm1703, %v1690, %v1417
        %v1724 = vsel %vm1703, %v1691, %v1419
        %v1725 = vsel %vm1703, %v1692, %v1421
        %v1726 = vsel %vm1703, %v1693, %v1423
        %v1727 = vsel %vm1703, %v1694, %v1425
        %v1728 = vsel %vm1703, %v1695, %v1427
        %v1729 = vsel %vm1703, %v1696, %v1429
        %v1730 = vsel %vm1703, %v1697, %v1431
        %v1731 = vsel %vm1703, %v1698, %v1433
        %v1732 = vsel %vm1703, %v1699, %v1435
        %v1733 = vsel %vm1703, %v1700, %v1437
        %v1734 = vsel %vm1703, %v1701, %v1439
        %v1735 = vsel %vm1703, %v1702, %v1441
        %v1737 = vlaneseq
        %v1738 = vshrl.u32 %v1737, 7
        %v1739 = vsub.s32 0, %v1738
        %v1740 = vrot.slane %v349, %v1739
        %vm1742 = vcmask 293888
        %v1744 = vsel %vm1742, %v1704, 0
        %v1747 = vsel %vm1742, %v1705, 0
        %v1750 = vsel %vm1742, %v1706, 0
        %v1753 = vsel %vm1742, %v1707, 0
        %v1756 = vsel %vm1742, %v1708, 0
        %v1759 = vsel %vm1742, %v1709, 0
        %v1762 = vsel %vm1742, %v1710, 0
        %v1765 = vsel %vm1742, %v1711, 0
        %v1768 = vsel %vm1742, %v1712, 0
        %v1771 = vsel %vm1742, %v1713, 0
        %v1774 = vsel %vm1742, %v1714, 0
        %v1777 = vsel %vm1742, %v1715, 0
        %v1780 = vsel %vm1742, %v1716, 0
        %v1783 = vsel %vm1742, %v1717, 0
        %v1786 = vsel %vm1742, %v1718, 0
        %v1789 = vsel %vm1742, %v1719, 0
        %v1792 = vsel %vm1742, %v1720, 0
        %v1795 = vsel %vm1742, %v1721, 0
        %v1798 = vsel %vm1742, %v1722, 0
        %v1801 = vsel %vm1742, %v1723, 0
        %v1804 = vsel %vm1742, %v1724, 0
        %v1807 = vsel %vm1742, %v1725, 0
        %v1810 = vsel %vm1742, %v1726, 0
        %v1813 = vsel %vm1742, %v1727, 0
        %v1816 = vsel %vm1742, %v1728, 0
        %v1819 = vsel %vm1742, %v1729, 0
        %v1822 = vsel %vm1742, %v1730, 0
        %v1825 = vsel %vm1742, %v1731, 0
        %v1828 = vsel %vm1742, %v1732, 0
        %v1831 = vsel %vm1742, %v1733, 0
        %v1834 = vsel %vm1742, %v1734, 0
        %v1837 = vsel %vm1742, %v1735, 0
        %vm1839 = vcmask 1043456
        %v1841 = vsel %vm1839, %v339, 0
        %1843 = vmatprep.subr.mxu0 0.0
        %1844 = vmatpush1.msra.mxu0 %v335
        %1845 = vmatprep.subr.mxu0 0.0
        %1846 = vmatpush1.msra.mxu0 %v336
        %1847 = vmatprep.subr.mxu0 0.0
        %1848 = vmatpush1.msra.mxu0 %v337
        %1849 = vmatprep.subr.mxu0 0.0
        %1850 = vmatpush1.msra.mxu0 %v338
        %1851 = vmatprep.subr.mxu0 0.0
        %1852 = vmatpush1.msra.mxu0 %v1841
        %1853 = vmatprep.subr.mxu0 0.0
        %1854 = vmatpush1.msra.mxu0 0.0
        %1855 = vmatprep.subr.mxu0 0.0
        %1856 = vmatpush1.msra.mxu0 0.0
        %1857 = vmatprep.subr.mxu0 0.0
        %1858 = vmatpush1.msra.mxu0 0.0
        %1859 = vmatprep.subr.mxu0 0.0
        %1860 = vmatpush1.msra.mxu0 0.0
        %1861 = vmatprep.subr.mxu0 0.0
        %1862 = vmatpush1.msra.mxu0 0.0
        %1863 = vmatprep.subr.mxu0 0.0
        %1864 = vmatpush1.msra.mxu0 0.0
        %1865 = vmatprep.subr.mxu0 0.0
        %1866 = vmatpush1.msra.mxu0 0.0
        %1867 = vmatprep.subr.mxu0 0.0
        %1868 = vmatpush1.msra.mxu0 0.0
        %1869 = vmatprep.subr.mxu0 0.0
        %1870 = vmatpush1.msra.mxu0 0.0
        %1871 = vmatprep.subr.mxu0 0.0
        %1872 = vmatpush1.msra.mxu0 0.0
        %1873 = vmatprep.subr.mxu0 0.0
        %1874 = vmatpush1.msra.mxu0 0.0
        %1875 = vmatprep.subr.mxu0 0.0
        %1876 = vmatpush1.msra.mxu0 0.0
        %1877 = vmatprep.subr.mxu0 0.0
        %1878 = vmatpush1.msra.mxu0 0.0
        %1879 = vmatprep.subr.mxu0 0.0
        %1880 = vmatpush1.msra.mxu0 0.0
        %1881 = vmatprep.subr.mxu0 0.0
        %1882 = vmatpush1.msra.mxu0 0.0
        %1883 = vmatprep.subr.mxu0 0.0
        %1884 = vmatpush1.msra.mxu0 0.0
        %1885 = vmatprep.subr.mxu0 0.0
        %1886 = vmatpush1.msra.mxu0 0.0
        %1887 = vmatprep.subr.mxu0 0.0
        %1888 = vmatpush1.msra.mxu0 0.0
        %1889 = vmatprep.subr.mxu0 0.0
        %1890 = vmatpush1.msra.mxu0 0.0
        %1891 = vmatprep.subr.mxu0 0.0
        %1892 = vmatpush1.msra.mxu0 0.0
        %1893 = vmatprep.subr.mxu0 0.0
        %1894 = vmatpush1.msra.mxu0 0.0
        %1895 = vmatprep.subr.mxu0 0.0
        %1896 = vmatpush1.msra.mxu0 0.0
        %1897 = vmatprep.subr.mxu0 0.0
        %1898 = vmatpush1.msra.mxu0 0.0
        %1899 = vmatprep.subr.mxu0 0.0
        %1900 = vmatpush1.msra.mxu0 0.0
        %1901 = vmatprep.subr.mxu0 0.0
        %1902 = vmatpush1.msra.mxu0 0.0
        %1903 = vmatprep.subr.mxu0 0.0
        %1904 = vmatpush1.msra.mxu0 0.0
        %1905 = vmatprep.subr.mxu0 0.0
        %1906 = vmatpush1.msra.mxu0 0.0
        %1907 = vmatprep.mubr.f32.mxu0 0.0
        %1908 = vmatmul.mubr.f32.gmra.mrb[0].mxu0 %v1744
        %v1909 = vpop.f32.mrb[0].mxu0
        %v1910 = vadd.f32 %v1740, %v1909
        %v1911 = vpop.f32.mrb[0].mxu0
        %1912 = vmatprep.mubr.f32.mxu0 0.0
        %1913 = vmatmul.mubr.f32.gmra.mrb[0].mxu0 %v1747
        %v1914 = vpop.f32.mrb[0].mxu0
        %v1915 = vadd.f32 %v1740, %v1914
        %v1916 = vpop.f32.mrb[0].mxu0
        %1917 = vmatprep.mubr.f32.mxu0 0.0
        %1918 = vmatmul.mubr.f32.gmra.mrb[0].mxu0 %v1750
        %v1919 = vpop.f32.mrb[0].mxu0
        %v1920 = vadd.f32 %v1740, %v1919
        %v1921 = vpop.f32.mrb[0].mxu0
        %1922 = vmatprep.mubr.f32.mxu0 0.0
        %1923 = vmatmul.mubr.f32.gmra.mrb[0].mxu0 %v1753
        %v1924 = vpop.f32.mrb[0].mxu0
        %v1925 = vadd.f32 %v1740, %v1924
        %v1926 = vpop.f32.mrb[0].mxu0
        %1927 = vmatprep.mubr.f32.mxu0 0.0
        %1928 = vmatmul.mubr.f32.gmra.mrb[0].mxu0 %v1756
        %v1929 = vpop.f32.mrb[0].mxu0
        %v1930 = vadd.f32 %v1740, %v1929
        %v1931 = vpop.f32.mrb[0].mxu0
        %1932 = vmatprep.mubr.f32.mxu0 0.0
        %1933 = vmatmul.mubr.f32.gmra.mrb[0].mxu0 %v1759
        %v1934 = vpop.f32.mrb[0].mxu0
        %v1935 = vadd.f32 %v1740, %v1934
        %v1936 = vpop.f32.mrb[0].mxu0
        %1937 = vmatprep.mubr.f32.mxu0 0.0
        %1938 = vmatmul.mubr.f32.gmra.mrb[0].mxu0 %v1762
        %v1939 = vpop.f32.mrb[0].mxu0
        %v1940 = vadd.f32 %v1740, %v1939
        %v1941 = vpop.f32.mrb[0].mxu0
        %1942 = vmatprep.mubr.f32.mxu0 0.0
        %1943 = vmatmul.mubr.f32.gmra.mrb[0].mxu0 %v1765
        %v1944 = vpop.f32.mrb[0].mxu0
        %v1945 = vadd.f32 %v1740, %v1944
        %v1946 = vpop.f32.mrb[0].mxu0
        %1947 = vmatprep.mubr.f32.mxu0 0.0
        %1948 = vmatmul.mubr.f32.gmra.mrb[0].mxu0 %v1768
        %v1949 = vpop.f32.mrb[0].mxu0
        %v1950 = vadd.f32 %v1740, %v1949
        %v1951 = vpop.f32.mrb[0].mxu0
        %1952 = vmatprep.mubr.f32.mxu0 0.0
        %1953 = vmatmul.mubr.f32.gmra.mrb[0].mxu0 %v1771
        %v1954 = vpop.f32.mrb[0].mxu0
        %v1955 = vadd.f32 %v1740, %v1954
        %v1956 = vpop.f32.mrb[0].mxu0
        %1957 = vmatprep.mubr.f32.mxu0 0.0
        %1958 = vmatmul.mubr.f32.gmra.mrb[0].mxu0 %v1774
        %v1959 = vpop.f32.mrb[0].mxu0
        %v1960 = vadd.f32 %v1740, %v1959
        %v1961 = vpop.f32.mrb[0].mxu0
        %1962 = vmatprep.mubr.f32.mxu0 0.0
        %1963 = vmatmul.mubr.f32.gmra.mrb[0].mxu0 %v1777
        %v1964 = vpop.f32.mrb[0].mxu0
        %v1965 = vadd.f32 %v1740, %v1964
        %v1966 = vpop.f32.mrb[0].mxu0
        %1967 = vmatprep.mubr.f32.mxu0 0.0
        %1968 = vmatmul.mubr.f32.gmra.mrb[0].mxu0 %v1780
        %v1969 = vpop.f32.mrb[0].mxu0
        %v1970 = vadd.f32 %v1740, %v1969
        %v1971 = vpop.f32.mrb[0].mxu0
        %1972 = vmatprep.mubr.f32.mxu0 0.0
        %1973 = vmatmul.mubr.f32.gmra.mrb[0].mxu0 %v1783
        %v1974 = vpop.f32.mrb[0].mxu0
        %v1975 = vadd.f32 %v1740, %v1974
        %v1976 = vpop.f32.mrb[0].mxu0
        %1977 = vmatprep.mubr.f32.mxu0 0.0
        %1978 = vmatmul.mubr.f32.gmra.mrb[0].mxu0 %v1786
        %v1979 = vpop.f32.mrb[0].mxu0
        %v1980 = vadd.f32 %v1740, %v1979
        %v1981 = vpop.f32.mrb[0].mxu0
        %1982 = vmatprep.mubr.f32.mxu0 0.0
        %1983 = vmatmul.mubr.f32.gmra.mrb[0].mxu0 %v1789
        %v1984 = vpop.f32.mrb[0].mxu0
        %v1985 = vadd.f32 %v1740, %v1984
        %v1986 = vpop.f32.mrb[0].mxu0
        %1987 = vmatprep.mubr.f32.mxu0 0.0
        %1988 = vmatmul.mubr.f32.gmra.mrb[0].mxu0 %v1792
        %v1989 = vpop.f32.mrb[0].mxu0
        %v1990 = vadd.f32 %v1740, %v1989
        %v1991 = vpop.f32.mrb[0].mxu0
        %1992 = vmatprep.mubr.f32.mxu0 0.0
        %1993 = vmatmul.mubr.f32.gmra.mrb[0].mxu0 %v1795
        %v1994 = vpop.f32.mrb[0].mxu0
        %v1995 = vadd.f32 %v1740, %v1994
        %v1996 = vpop.f32.mrb[0].mxu0
        %1997 = vmatprep.mubr.f32.mxu0 0.0
        %1998 = vmatmul.mubr.f32.gmra.mrb[0].mxu0 %v1798
        %v1999 = vpop.f32.mrb[0].mxu0
        %v2000 = vadd.f32 %v1740, %v1999
        %v2001 = vpop.f32.mrb[0].mxu0
        %2002 = vmatprep.mubr.f32.mxu0 0.0
        %2003 = vmatmul.mubr.f32.gmra.mrb[0].mxu0 %v1801
        %v2004 = vpop.f32.mrb[0].mxu0
        %v2005 = vadd.f32 %v1740, %v2004
        %v2006 = vpop.f32.mrb[0].mxu0
        %2007 = vmatprep.mubr.f32.mxu0 0.0
        %2008 = vmatmul.mubr.f32.gmra.mrb[0].mxu0 %v1804
        %v2009 = vpop.f32.mrb[0].mxu0
        %v2010 = vadd.f32 %v1740, %v2009
        %v2011 = vpop.f32.mrb[0].mxu0
        %2012 = vmatprep.mubr.f32.mxu0 0.0
        %2013 = vmatmul.mubr.f32.gmra.mrb[0].mxu0 %v1807
        %v2014 = vpop.f32.mrb[0].mxu0
        %v2015 = vadd.f32 %v1740, %v2014
        %v2016 = vpop.f32.mrb[0].mxu0
        %2017 = vmatprep.mubr.f32.mxu0 0.0
        %2018 = vmatmul.mubr.f32.gmra.mrb[0].mxu0 %v1810
        %v2019 = vpop.f32.mrb[0].mxu0
        %v2020 = vadd.f32 %v1740, %v2019
        %v2021 = vpop.f32.mrb[0].mxu0
        %2022 = vmatprep.mubr.f32.mxu0 0.0
        %2023 = vmatmul.mubr.f32.gmra.mrb[0].mxu0 %v1813
        %v2024 = vpop.f32.mrb[0].mxu0
        %v2025 = vadd.f32 %v1740, %v2024
        %v2026 = vpop.f32.mrb[0].mxu0
        %2027 = vmatprep.mubr.f32.mxu0 0.0
        %2028 = vmatmul.mubr.f32.gmra.mrb[0].mxu0 %v1816
        %v2029 = vpop.f32.mrb[0].mxu0
        %v2030 = vadd.f32 %v1740, %v2029
        %v2031 = vpop.f32.mrb[0].mxu0
        %2032 = vmatprep.mubr.f32.mxu0 0.0
        %2033 = vmatmul.mubr.f32.gmra.mrb[0].mxu0 %v1819
        %v2034 = vpop.f32.mrb[0].mxu0
        %v2035 = vadd.f32 %v1740, %v2034
        %v2036 = vpop.f32.mrb[0].mxu0
        %2037 = vmatprep.mubr.f32.mxu0 0.0
        %2038 = vmatmul.mubr.f32.gmra.mrb[0].mxu0 %v1822
        %v2039 = vpop.f32.mrb[0].mxu0
        %v2040 = vadd.f32 %v1740, %v2039
        %v2041 = vpop.f32.mrb[0].mxu0
        %2042 = vmatprep.mubr.f32.mxu0 0.0
        %2043 = vmatmul.mubr.f32.gmra.mrb[0].mxu0 %v1825
        %v2044 = vpop.f32.mrb[0].mxu0
        %v2045 = vadd.f32 %v1740, %v2044
        %v2046 = vpop.f32.mrb[0].mxu0
        %2047 = vmatprep.mubr.f32.mxu0 0.0
        %2048 = vmatmul.mubr.f32.gmra.mrb[0].mxu0 %v1828
        %v2049 = vpop.f32.mrb[0].mxu0
        %v2050 = vadd.f32 %v1740, %v2049
        %v2051 = vpop.f32.mrb[0].mxu0
        %2052 = vmatprep.mubr.f32.mxu0 0.0
        %2053 = vmatmul.mubr.f32.gmra.mrb[0].mxu0 %v1831
        %v2054 = vpop.f32.mrb[0].mxu0
        %v2055 = vadd.f32 %v1740, %v2054
        %v2056 = vpop.f32.mrb[0].mxu0
        %2057 = vmatprep.mubr.f32.mxu0 0.0
        %2058 = vmatmul.mubr.f32.gmra.mrb[0].mxu0 %v1834
        %v2059 = vpop.f32.mrb[0].mxu0
        %v2060 = vadd.f32 %v1740, %v2059
        %v2061 = vpop.f32.mrb[0].mxu0
        %2062 = vmatprep.mubr.f32.mxu0 0.0
        %2063 = vmatmul.mubr.f32.gmra.mrb[0].mxu0 %v1837
        %v2064 = vpop.f32.mrb[0].mxu0
        %v2065 = vadd.f32 %v1740, %v2064
        %v2066 = vpop.f32.mrb[0].mxu0
        %2067 = vdwg.mxu0
        %v2068 = vmax.f32 %v1910, 0.0
        %v2069 = vmax.f32 %v1915, 0.0
        %v2070 = vmax.f32 %v1920, 0.0
        %v2071 = vmax.f32 %v1925, 0.0
        %v2072 = vmax.f32 %v1930, 0.0
        %v2073 = vmax.f32 %v1935, 0.0
        %v2074 = vmax.f32 %v1940, 0.0
        %v2075 = vmax.f32 %v1945, 0.0
        %v2076 = vmax.f32 %v1950, 0.0
        %v2077 = vmax.f32 %v1955, 0.0
        %v2078 = vmax.f32 %v1960, 0.0
        %v2079 = vmax.f32 %v1965, 0.0
        %v2080 = vmax.f32 %v1970, 0.0
        %v2081 = vmax.f32 %v1975, 0.0
        %v2082 = vmax.f32 %v1980, 0.0
        %v2083 = vmax.f32 %v1985, 0.0
        %v2084 = vmax.f32 %v1990, 0.0
        %v2085 = vmax.f32 %v1995, 0.0
        %v2086 = vmax.f32 %v2000, 0.0
        %v2087 = vmax.f32 %v2005, 0.0
        %v2088 = vmax.f32 %v2010, 0.0
        %v2089 = vmax.f32 %v2015, 0.0
        %v2090 = vmax.f32 %v2020, 0.0
        %v2091 = vmax.f32 %v2025, 0.0
        %v2092 = vmax.f32 %v2030, 0.0
        %v2093 = vmax.f32 %v2035, 0.0
        %v2094 = vmax.f32 %v2040, 0.0
        %v2095 = vmax.f32 %v2045, 0.0
        %v2096 = vmax.f32 %v2050, 0.0
        %v2097 = vmax.f32 %v2055, 0.0
        %v2098 = vmax.f32 %v2060, 0.0
        %v2099 = vmax.f32 %v2065, 0.0
        %s2100 = scalar_lea.vmem [#allocation3], 24
        %2101 = vst.msk [vmem:[%s2100 + $0x1] sm:$0xff] %vm279, %v2068
        %2102 = vst.msk [vmem:[%s2100 + $0x9] sm:$0xff] %vm279, %v2069
        %2103 = vst.msk [vmem:[%s2100 + $0x19] sm:$0xff] %vm279, %v2070
        %2104 = vst.msk [vmem:[%s2100 + $0x21] sm:$0xff] %vm279, %v2071
        %2105 = vst.msk [vmem:[%s2100 + $0x31] sm:$0xff] %vm279, %v2072
        %2106 = vst.msk [vmem:[%s2100 + $0x39] sm:$0xff] %vm279, %v2073
        %2107 = vst.msk [vmem:[%s2100 + $0x49] sm:$0xff] %vm279, %v2074
        %2108 = vst.msk [vmem:[%s2100 + $0x51] sm:$0xff] %vm279, %v2075
        %2109 = vst.msk [vmem:[%s2100 + $0x61] sm:$0xff] %vm279, %v2076
        %2110 = vst.msk [vmem:[%s2100 + $0x69] sm:$0xff] %vm279, %v2077
        %2111 = vst.msk [vmem:[%s2100 + $0x79] sm:$0xff] %vm279, %v2078
        %2112 = vst.msk [vmem:[%s2100 + $0x81] sm:$0xff] %vm279, %v2079
        %2113 = vst.msk [vmem:[%s2100 + $0x91] sm:$0xff] %vm279, %v2080
        %2114 = vst.msk [vmem:[%s2100 + $0x99] sm:$0xff] %vm279, %v2081
        %2115 = vst.msk [vmem:[%s2100 + $0xa9] sm:$0xff] %vm279, %v2082
        %2116 = vst.msk [vmem:[%s2100 + $0xb1] sm:$0xff] %vm279, %v2083
        %2117 = vst.msk [vmem:[%s2100 + $0xc1] sm:$0xff] %vm279, %v2084
        %2118 = vst.msk [vmem:[%s2100 + $0xc9] sm:$0xff] %vm279, %v2085
        %2119 = vst.msk [vmem:[%s2100 + $0xd9] sm:$0xff] %vm279, %v2086
        %2120 = vst.msk [vmem:[%s2100 + $0xe1] sm:$0xff] %vm279, %v2087
        %2121 = vst.msk [vmem:[%s2100 + $0xf1] sm:$0xff] %vm279, %v2088
        %2122 = vst.msk [vmem:[%s2100 + $0xf9] sm:$0xff] %vm279, %v2089
        %2123 = vst.msk [vmem:[%s2100 + $0x109] sm:$0xff] %vm279, %v2090
        %2124 = vst.msk [vmem:[%s2100 + $0x111] sm:$0xff] %vm279, %v2091
        %2125 = vst.msk [vmem:[%s2100 + $0x121] sm:$0xff] %vm279, %v2092
        %2126 = vst.msk [vmem:[%s2100 + $0x129] sm:$0xff] %vm279, %v2093
        %2127 = vst.msk [vmem:[%s2100 + $0x139] sm:$0xff] %vm279, %v2094
        %2128 = vst.msk [vmem:[%s2100 + $0x141] sm:$0xff] %vm279, %v2095
        %2129 = vst.msk [vmem:[%s2100 + $0x151] sm:$0xff] %vm279, %v2096
        %2130 = vst.msk [vmem:[%s2100 + $0x159] sm:$0xff] %vm279, %v2097
        %2131 = vst.msk [vmem:[%s2100 + $0x169] sm:$0xff] %vm279, %v2098
        %2132 = vst.msk [vmem:[%s2100 + $0x171] sm:$0xff] %vm279, %v2099
        %v2133 = vld [vmem:[#allocation3] sm:$0xff]
        %v2134 = vld [vmem:[#allocation3 + $0x8] sm:$0xff]
        %v2135 = vld [vmem:[#allocation3 + $0x10] sm:$0x3]
        %v2136 = vld [vmem:[#allocation3 + $0x18] sm:$0xff]
        %v2137 = vld [vmem:[#allocation3 + $0x20] sm:$0xff]
        %v2138 = vld [vmem:[#allocation3 + $0x28] sm:$0x3]
        %v2139 = vld [vmem:[#allocation3 + $0x30] sm:$0xff]
        %v2140 = vld [vmem:[#allocation3 + $0x38] sm:$0xff]
        %v2141 = vld [vmem:[#allocation3 + $0x40] sm:$0x3]
        %v2142 = vld [vmem:[#allocation3 + $0x48] sm:$0xff]
        %v2143 = vld [vmem:[#allocation3 + $0x50] sm:$0xff]
        %v2144 = vld [vmem:[#allocation3 + $0x58] sm:$0x3]
        %v2145 = vld [vmem:[#allocation3 + $0x60] sm:$0xff]
        %v2146 = vld [vmem:[#allocation3 + $0x68] sm:$0xff]
        %v2147 = vld [vmem:[#allocation3 + $0x70] sm:$0x3]
        %v2148 = vld [vmem:[#allocation3 + $0x78] sm:$0xff]
        %v2149 = vld [vmem:[#allocation3 + $0x80] sm:$0xff]
        %v2150 = vld [vmem:[#allocation3 + $0x88] sm:$0x3]
        %v2151 = vld [vmem:[#allocation3 + $0x90] sm:$0xff]
        %v2152 = vld [vmem:[#allocation3 + $0x98] sm:$0xff]
        %v2153 = vld [vmem:[#allocation3 + $0xa0] sm:$0x3]
        %v2154 = vld [vmem:[#allocation3 + $0xa8] sm:$0xff]
        %v2155 = vld [vmem:[#allocation3 + $0xb0] sm:$0xff]
        %v2156 = vld [vmem:[#allocation3 + $0xb8] sm:$0x3]
        %v2157 = vld [vmem:[#allocation3 + $0xc0] sm:$0xff]
        %v2158 = vld [vmem:[#allocation3 + $0xc8] sm:$0xff]
        %v2159 = vld [vmem:[#allocation3 + $0xd0] sm:$0x3]
        %v2160 = vld [vmem:[#allocation3 + $0xd8] sm:$0xff]
        %v2161 = vld [vmem:[#allocation3 + $0xe0] sm:$0xff]
        %v2162 = vld [vmem:[#allocation3 + $0xe8] sm:$0x3]
        %v2163 = vld [vmem:[#allocation3 + $0xf0] sm:$0xff]
        %v2164 = vld [vmem:[#allocation3 + $0xf8] sm:$0xff]
        %v2165 = vld [vmem:[#allocation3 + $0x100] sm:$0x3]
        %v2166 = vld [vmem:[#allocation3 + $0x108] sm:$0xff]
        %v2167 = vld [vmem:[#allocation3 + $0x110] sm:$0xff]
        %v2168 = vld [vmem:[#allocation3 + $0x118] sm:$0x3]
        %v2169 = vld [vmem:[#allocation3 + $0x120] sm:$0xff]
        %v2170 = vld [vmem:[#allocation3 + $0x128] sm:$0xff]
        %v2171 = vld [vmem:[#allocation3 + $0x130] sm:$0x3]
        %v2172 = vld [vmem:[#allocation3 + $0x138] sm:$0xff]
        %v2173 = vld [vmem:[#allocation3 + $0x140] sm:$0xff]
        %v2174 = vld [vmem:[#allocation3 + $0x148] sm:$0x3]
        %v2175 = vld [vmem:[#allocation3 + $0x150] sm:$0xff]
        %v2176 = vld [vmem:[#allocation3 + $0x158] sm:$0xff]
        %v2177 = vld [vmem:[#allocation3 + $0x160] sm:$0x3]
        %v2178 = vld [vmem:[#allocation3 + $0x168] sm:$0xff]
        %v2179 = vld [vmem:[#allocation3 + $0x170] sm:$0xff]
        %v2180 = vld [vmem:[#allocation3 + $0x178] sm:$0x3]
        %v2181 = vld [vmem:[#allocation3 + $0x180] sm:$0xff]
        %v2182 = vld [vmem:[#allocation3 + $0x188] sm:$0xff]
        %v2183 = vld [vmem:[#allocation3 + $0x190] sm:$0x3]
        %v2184 = vld [vmem:[#allocation3 + $0x198] sm:$0xff]
        %v2185 = vld [vmem:[#allocation3 + $0x1a0] sm:$0xff]
        %v2186 = vld [vmem:[#allocation3 + $0x1a8] sm:$0x3]
        %v2235 = vrot.slane %v2133, 1
        %v2236 = vrot.slane %v2134, 1
        %v2237 = vsel %vm518, %v2235, %v2236
        %v2238 = vrot.slane %v2135, 1
        %v2239 = vsel %vm518, %v2236, %v2238
        %v2240 = vrot.slane %v2136, 1
        %v2241 = vrot.slane %v2137, 1
        %v2242 = vsel %vm518, %v2240, %v2241
        %v2243 = vrot.slane %v2138, 1
        %v2244 = vsel %vm518, %v2241, %v2243
        %v2245 = vrot.slane %v2139, 1
        %v2246 = vrot.slane %v2140, 1
        %v2247 = vsel %vm518, %v2245, %v2246
        %v2248 = vrot.slane %v2141, 1
        %v2249 = vsel %vm518, %v2246, %v2248
        %v2250 = vrot.slane %v2142, 1
        %v2251 = vrot.slane %v2143, 1
        %v2252 = vsel %vm518, %v2250, %v2251
        %v2253 = vrot.slane %v2144, 1
        %v2254 = vsel %vm518, %v2251, %v2253
        %v2255 = vrot.slane %v2145, 1
        %v2256 = vrot.slane %v2146, 1
        %v2257 = vsel %vm518, %v2255, %v2256
        %v2258 = vrot.slane %v2147, 1
        %v2259 = vsel %vm518, %v2256, %v2258
        %v2260 = vrot.slane %v2148, 1
        %v2261 = vrot.slane %v2149, 1
        %v2262 = vsel %vm518, %v2260, %v2261
        %v2263 = vrot.slane %v2150, 1
        %v2264 = vsel %vm518, %v2261, %v2263
        %v2265 = vrot.slane %v2151, 1
        %v2266 = vrot.slane %v2152, 1
        %v2267 = vsel %vm518, %v2265, %v2266
        %v2268 = vrot.slane %v2153, 1
        %v2269 = vsel %vm518, %v2266, %v2268
        %v2270 = vrot.slane %v2154, 1
        %v2271 = vrot.slane %v2155, 1
        %v2272 = vsel %vm518, %v2270, %v2271
        %v2273 = vrot.slane %v2156, 1
        %v2274 = vsel %vm518, %v2271, %v2273
        %v2275 = vrot.slane %v2157, 1
        %v2276 = vrot.slane %v2158, 1
        %v2277 = vsel %vm518, %v2275, %v2276
        %v2278 = vrot.slane %v2159, 1
        %v2279 = vsel %vm518, %v2276, %v2278
        %v2280 = vrot.slane %v2160, 1
        %v2281 = vrot.slane %v2161, 1
        %v2282 = vsel %vm518, %v2280, %v2281
        %v2283 = vrot.slane %v2162, 1
        %v2284 = vsel %vm518, %v2281, %v2283
        %v2285 = vrot.slane %v2163, 1
        %v2286 = vrot.slane %v2164, 1
        %v2287 = vsel %vm518, %v2285, %v2286
        %v2288 = vrot.slane %v2165, 1
        %v2289 = vsel %vm518, %v2286, %v2288
        %v2290 = vrot.slane %v2166, 1
        %v2291 = vrot.slane %v2167, 1
        %v2292 = vsel %vm518, %v2290, %v2291
        %v2293 = vrot.slane %v2168, 1
        %v2294 = vsel %vm518, %v2291, %v2293
        %v2295 = vrot.slane %v2169, 1
        %v2296 = vrot.slane %v2170, 1
        %v2297 = vsel %vm518, %v2295, %v2296
        %v2298 = vrot.slane %v2171, 1
        %v2299 = vsel %vm518, %v2296, %v2298
        %v2300 = vrot.slane %v2172, 1
        %v2301 = vrot.slane %v2173, 1
        %v2302 = vsel %vm518, %v2300, %v2301
        %v2303 = vrot.slane %v2174, 1
        %v2304 = vsel %vm518, %v2301, %v2303
        %v2305 = vrot.slane %v2175, 1
        %v2306 = vrot.slane %v2176, 1
        %v2307 = vsel %vm518, %v2305, %v2306
        %v2308 = vrot.slane %v2177, 1
        %v2309 = vsel %vm518, %v2306, %v2308
        %v2310 = vrot.slane %v2178, 1
        %v2311 = vrot.slane %v2179, 1
        %v2312 = vsel %vm518, %v2310, %v2311
        %v2313 = vrot.slane %v2180, 1
        %v2314 = vsel %vm518, %v2311, %v2313
        %2315 = vrot.lane.b32.xlu0 %v2237, 8
        %v2316 = vpop.permute.xlu0 %2315
        %2317 = vrot.lane.b32.xlu0 %v2239, 8
        %v2318 = vpop.permute.xlu0 %2317
        %2319 = vrot.lane.b32.xlu0 %v2242, 8
        %v2320 = vpop.permute.xlu0 %2319
        %2321 = vrot.lane.b32.xlu0 %v2244, 8
        %v2322 = vpop.permute.xlu0 %2321
        %2323 = vrot.lane.b32.xlu0 %v2247, 8
        %v2324 = vpop.permute.xlu0 %2323
        %2325 = vrot.lane.b32.xlu0 %v2249, 8
        %v2326 = vpop.permute.xlu0 %2325
        %2327 = vrot.lane.b32.xlu0 %v2252, 8
        %v2328 = vpop.permute.xlu0 %2327
        %2329 = vrot.lane.b32.xlu0 %v2254, 8
        %v2330 = vpop.permute.xlu0 %2329
        %2331 = vrot.lane.b32.xlu0 %v2257, 8
        %v2332 = vpop.permute.xlu0 %2331
        %2333 = vrot.lane.b32.xlu0 %v2259, 8
        %v2334 = vpop.permute.xlu0 %2333
        %2335 = vrot.lane.b32.xlu0 %v2262, 8
        %v2336 = vpop.permute.xlu0 %2335
        %2337 = vrot.lane.b32.xlu0 %v2264, 8
        %v2338 = vpop.permute.xlu0 %2337
        %2339 = vrot.lane.b32.xlu0 %v2267, 8
        %v2340 = vpop.permute.xlu0 %2339
        %2341 = vrot.lane.b32.xlu0 %v2269, 8
        %v2342 = vpop.permute.xlu0 %2341
        %2343 = vrot.lane.b32.xlu0 %v2272, 8
        %v2344 = vpop.permute.xlu0 %2343
        %2345 = vrot.lane.b32.xlu0 %v2274, 8
        %v2346 = vpop.permute.xlu0 %2345
        %2347 = vrot.lane.b32.xlu0 %v2277, 8
        %v2348 = vpop.permute.xlu0 %2347
        %2349 = vrot.lane.b32.xlu0 %v2279, 8
        %v2350 = vpop.permute.xlu0 %2349
        %2351 = vrot.lane.b32.xlu0 %v2282, 8
        %v2352 = vpop.permute.xlu0 %2351
        %2353 = vrot.lane.b32.xlu0 %v2284, 8
        %v2354 = vpop.permute.xlu0 %2353
        %2355 = vrot.lane.b32.xlu0 %v2287, 8
        %v2356 = vpop.permute.xlu0 %2355
        %2357 = vrot.lane.b32.xlu0 %v2289, 8
        %v2358 = vpop.permute.xlu0 %2357
        %2359 = vrot.lane.b32.xlu0 %v2292, 8
        %v2360 = vpop.permute.xlu0 %2359
        %2361 = vrot.lane.b32.xlu0 %v2294, 8
        %v2362 = vpop.permute.xlu0 %2361
        %2363 = vrot.lane.b32.xlu0 %v2297, 8
        %v2364 = vpop.permute.xlu0 %2363
        %2365 = vrot.lane.b32.xlu0 %v2299, 8
        %v2366 = vpop.permute.xlu0 %2365
        %2367 = vrot.lane.b32.xlu0 %v2302, 8
        %v2368 = vpop.permute.xlu0 %2367
        %2369 = vrot.lane.b32.xlu0 %v2304, 8
        %v2370 = vpop.permute.xlu0 %2369
        %2371 = vrot.lane.b32.xlu0 %v2307, 8
        %v2372 = vpop.permute.xlu0 %2371
        %2373 = vrot.lane.b32.xlu0 %v2309, 8
        %v2374 = vpop.permute.xlu0 %2373
        %2375 = vrot.lane.b32.xlu0 %v2312, 8
        %v2376 = vpop.permute.xlu0 %2375
        %2377 = vrot.lane.b32.xlu0 %v2314, 8
        %v2378 = vpop.permute.xlu0 %2377
        %v2411 = vrot.slane %v2133, 2
        %v2412 = vrot.slane %v2134, 2
        %v2413 = vsel %vm695, %v2411, %v2412
        %v2414 = vrot.slane %v2135, 2
        %v2415 = vsel %vm695, %v2412, %v2414
        %v2416 = vrot.slane %v2136, 2
        %v2417 = vrot.slane %v2137, 2
        %v2418 = vsel %vm695, %v2416, %v2417
        %v2419 = vrot.slane %v2138, 2
        %v2420 = vsel %vm695, %v2417, %v2419
        %v2421 = vrot.slane %v2139, 2
        %v2422 = vrot.slane %v2140, 2
        %v2423 = vsel %vm695, %v2421, %v2422
        %v2424 = vrot.slane %v2141, 2
        %v2425 = vsel %vm695, %v2422, %v2424
        %v2426 = vrot.slane %v2142, 2
        %v2427 = vrot.slane %v2143, 2
        %v2428 = vsel %vm695, %v2426, %v2427
        %v2429 = vrot.slane %v2144, 2
        %v2430 = vsel %vm695, %v2427, %v2429
        %v2431 = vrot.slane %v2145, 2
        %v2432 = vrot.slane %v2146, 2
        %v2433 = vsel %vm695, %v2431, %v2432
        %v2434 = vrot.slane %v2147, 2
        %v2435 = vsel %vm695, %v2432, %v2434
        %v2436 = vrot.slane %v2148, 2
        %v2437 = vrot.slane %v2149, 2
        %v2438 = vsel %vm695, %v2436, %v2437
        %v2439 = vrot.slane %v2150, 2
        %v2440 = vsel %vm695, %v2437, %v2439
        %v2441 = vrot.slane %v2151, 2
        %v2442 = vrot.slane %v2152, 2
        %v2443 = vsel %vm695, %v2441, %v2442
        %v2444 = vrot.slane %v2153, 2
        %v2445 = vsel %vm695, %v2442, %v2444
        %v2446 = vrot.slane %v2154, 2
        %v2447 = vrot.slane %v2155, 2
        %v2448 = vsel %vm695, %v2446, %v2447
        %v2449 = vrot.slane %v2156, 2
        %v2450 = vsel %vm695, %v2447, %v2449
        %v2451 = vrot.slane %v2157, 2
        %v2452 = vrot.slane %v2158, 2
        %v2453 = vsel %vm695, %v2451, %v2452
        %v2454 = vrot.slane %v2159, 2
        %v2455 = vsel %vm695, %v2452, %v2454
        %v2456 = vrot.slane %v2160, 2
        %v2457 = vrot.slane %v2161, 2
        %v2458 = vsel %vm695, %v2456, %v2457
        %v2459 = vrot.slane %v2162, 2
        %v2460 = vsel %vm695, %v2457, %v2459
        %v2461 = vrot.slane %v2163, 2
        %v2462 = vrot.slane %v2164, 2
        %v2463 = vsel %vm695, %v2461, %v2462
        %v2464 = vrot.slane %v2165, 2
        %v2465 = vsel %vm695, %v2462, %v2464
        %v2466 = vrot.slane %v2166, 2
        %v2467 = vrot.slane %v2167, 2
        %v2468 = vsel %vm695, %v2466, %v2467
        %v2469 = vrot.slane %v2168, 2
        %v2470 = vsel %vm695, %v2467, %v2469
        %v2471 = vrot.slane %v2169, 2
        %v2472 = vrot.slane %v2170, 2
        %v2473 = vsel %vm695, %v2471, %v2472
        %v2474 = vrot.slane %v2171, 2
        %v2475 = vsel %vm695, %v2472, %v2474
        %v2476 = vrot.slane %v2172, 2
        %v2477 = vrot.slane %v2173, 2
        %v2478 = vsel %vm695, %v2476, %v2477
        %v2479 = vrot.slane %v2174, 2
        %v2480 = vsel %vm695, %v2477, %v2479
        %v2481 = vrot.slane %v2175, 2
        %v2482 = vrot.slane %v2176, 2
        %v2483 = vsel %vm695, %v2481, %v2482
        %v2484 = vrot.slane %v2177, 2
        %v2485 = vsel %vm695, %v2482, %v2484
        %v2486 = vrot.slane %v2178, 2
        %v2487 = vrot.slane %v2179, 2
        %v2488 = vsel %vm695, %v2486, %v2487
        %v2489 = vrot.slane %v2180, 2
        %v2490 = vsel %vm695, %v2487, %v2489
        %2491 = vrot.lane.b32.xlu0 %v2413, 16
        %v2492 = vpop.permute.xlu0 %2491
        %2493 = vrot.lane.b32.xlu0 %v2415, 16
        %v2494 = vpop.permute.xlu0 %2493
        %2495 = vrot.lane.b32.xlu0 %v2418, 16
        %v2496 = vpop.permute.xlu0 %2495
        %2497 = vrot.lane.b32.xlu0 %v2420, 16
        %v2498 = vpop.permute.xlu0 %2497
        %2499 = vrot.lane.b32.xlu0 %v2423, 16
        %v2500 = vpop.permute.xlu0 %2499
        %2501 = vrot.lane.b32.xlu0 %v2425, 16
        %v2502 = vpop.permute.xlu0 %2501
        %2503 = vrot.lane.b32.xlu0 %v2428, 16
        %v2504 = vpop.permute.xlu0 %2503
        %2505 = vrot.lane.b32.xlu0 %v2430, 16
        %v2506 = vpop.permute.xlu0 %2505
        %2507 = vrot.lane.b32.xlu0 %v2433, 16
        %v2508 = vpop.permute.xlu0 %2507
        %2509 = vrot.lane.b32.xlu0 %v2435, 16
        %v2510 = vpop.permute.xlu0 %2509
        %2511 = vrot.lane.b32.xlu0 %v2438, 16
        %v2512 = vpop.permute.xlu0 %2511
        %2513 = vrot.lane.b32.xlu0 %v2440, 16
        %v2514 = vpop.permute.xlu0 %2513
        %2515 = vrot.lane.b32.xlu0 %v2443, 16
        %v2516 = vpop.permute.xlu0 %2515
        %2517 = vrot.lane.b32.xlu0 %v2445, 16
        %v2518 = vpop.permute.xlu0 %2517
        %2519 = vrot.lane.b32.xlu0 %v2448, 16
        %v2520 = vpop.permute.xlu0 %2519
        %2521 = vrot.lane.b32.xlu0 %v2450, 16
        %v2522 = vpop.permute.xlu0 %2521
        %2523 = vrot.lane.b32.xlu0 %v2453, 16
        %v2524 = vpop.permute.xlu0 %2523
        %2525 = vrot.lane.b32.xlu0 %v2455, 16
        %v2526 = vpop.permute.xlu0 %2525
        %2527 = vrot.lane.b32.xlu0 %v2458, 16
        %v2528 = vpop.permute.xlu0 %2527
        %2529 = vrot.lane.b32.xlu0 %v2460, 16
        %v2530 = vpop.permute.xlu0 %2529
        %2531 = vrot.lane.b32.xlu0 %v2463, 16
        %v2532 = vpop.permute.xlu0 %2531
        %2533 = vrot.lane.b32.xlu0 %v2465, 16
        %v2534 = vpop.permute.xlu0 %2533
        %2535 = vrot.lane.b32.xlu0 %v2468, 16
        %v2536 = vpop.permute.xlu0 %2535
        %2537 = vrot.lane.b32.xlu0 %v2470, 16
        %v2538 = vpop.permute.xlu0 %2537
        %2539 = vrot.lane.b32.xlu0 %v2473, 16
        %v2540 = vpop.permute.xlu0 %2539
        %2541 = vrot.lane.b32.xlu0 %v2475, 16
        %v2542 = vpop.permute.xlu0 %2541
        %2543 = vrot.lane.b32.xlu0 %v2478, 16
        %v2544 = vpop.permute.xlu0 %2543
        %2545 = vrot.lane.b32.xlu0 %v2480, 16
        %v2546 = vpop.permute.xlu0 %2545
        %2547 = vrot.lane.b32.xlu0 %v2483, 16
        %v2548 = vpop.permute.xlu0 %2547
        %2549 = vrot.lane.b32.xlu0 %v2485, 16
        %v2550 = vpop.permute.xlu0 %2549
        %2551 = vrot.lane.b32.xlu0 %v2488, 16
        %v2552 = vpop.permute.xlu0 %2551
        %2553 = vrot.lane.b32.xlu0 %v2490, 16
        %v2554 = vpop.permute.xlu0 %2553
        %2589 = vrot.lane.b32.xlu0 %v2136, 24
        %v2590 = vpop.permute.xlu0 %2589
        %2591 = vrot.lane.b32.xlu0 %v2137, 24
        %v2592 = vpop.permute.xlu0 %2591
        %2593 = vrot.lane.b32.xlu0 %v2139, 24
        %v2594 = vpop.permute.xlu0 %2593
        %2595 = vrot.lane.b32.xlu0 %v2140, 24
        %v2596 = vpop.permute.xlu0 %2595
        %2597 = vrot.lane.b32.xlu0 %v2142, 24
        %v2598 = vpop.permute.xlu0 %2597
        %2599 = vrot.lane.b32.xlu0 %v2143, 24
        %v2600 = vpop.permute.xlu0 %2599
        %2601 = vrot.lane.b32.xlu0 %v2145, 24
        %v2602 = vpop.permute.xlu0 %2601
        %2603 = vrot.lane.b32.xlu0 %v2146, 24
        %v2604 = vpop.permute.xlu0 %2603
        %2605 = vrot.lane.b32.xlu0 %v2148, 24
        %v2606 = vpop.permute.xlu0 %2605
        %2607 = vrot.lane.b32.xlu0 %v2149, 24
        %v2608 = vpop.permute.xlu0 %2607
        %2609 = vrot.lane.b32.xlu0 %v2151, 24
        %v2610 = vpop.permute.xlu0 %2609
        %2611 = vrot.lane.b32.xlu0 %v2152, 24
        %v2612 = vpop.permute.xlu0 %2611
        %2613 = vrot.lane.b32.xlu0 %v2154, 24
        %v2614 = vpop.permute.xlu0 %2613
        %2615 = vrot.lane.b32.xlu0 %v2155, 24
        %v2616 = vpop.permute.xlu0 %2615
        %2617 = vrot.lane.b32.xlu0 %v2157, 24
        %v2618 = vpop.permute.xlu0 %2617
        %2619 = vrot.lane.b32.xlu0 %v2158, 24
        %v2620 = vpop.permute.xlu0 %2619
        %2621 = vrot.lane.b32.xlu0 %v2160, 24
        %v2622 = vpop.permute.xlu0 %2621
        %2623 = vrot.lane.b32.xlu0 %v2161, 24
        %v2624 = vpop.permute.xlu0 %2623
        %2625 = vrot.lane.b32.xlu0 %v2163, 24
        %v2626 = vpop.permute.xlu0 %2625
        %2627 = vrot.lane.b32.xlu0 %v2164, 24
        %v2628 = vpop.permute.xlu0 %2627
        %2629 = vrot.lane.b32.xlu0 %v2166, 24
        %v2630 = vpop.permute.xlu0 %2629
        %2631 = vrot.lane.b32.xlu0 %v2167, 24
        %v2632 = vpop.permute.xlu0 %2631
        %2633 = vrot.lane.b32.xlu0 %v2169, 24
        %v2634 = vpop.permute.xlu0 %2633
        %2635 = vrot.lane.b32.xlu0 %v2170, 24
        %v2636 = vpop.permute.xlu0 %2635
        %2637 = vrot.lane.b32.xlu0 %v2172, 24
        %v2638 = vpop.permute.xlu0 %2637
        %2639 = vrot.lane.b32.xlu0 %v2173, 24
        %v2640 = vpop.permute.xlu0 %2639
        %2641 = vrot.lane.b32.xlu0 %v2175, 24
        %v2642 = vpop.permute.xlu0 %2641
        %2643 = vrot.lane.b32.xlu0 %v2176, 24
        %v2644 = vpop.permute.xlu0 %2643
        %2645 = vrot.lane.b32.xlu0 %v2178, 24
        %v2646 = vpop.permute.xlu0 %2645
        %2647 = vrot.lane.b32.xlu0 %v2179, 24
        %v2648 = vpop.permute.xlu0 %2647
        %2649 = vrot.lane.b32.xlu0 %v2181, 24
        %v2650 = vpop.permute.xlu0 %2649
        %2651 = vrot.lane.b32.xlu0 %v2182, 24
        %v2652 = vpop.permute.xlu0 %2651
        %v2686 = vrot.slane %v2181, 1
        %v2687 = vrot.slane %v2182, 1
        %v2688 = vsel %vm518, %v2686, %v2687
        %v2689 = vrot.slane %v2183, 1
        %v2690 = vsel %vm518, %v2687, %v2689
        %2691 = vrot.lane.b32.xlu0 %v2242, 32
        %v2692 = vpop.permute.xlu0 %2691
        %2693 = vrot.lane.b32.xlu0 %v2244, 32
        %v2694 = vpop.permute.xlu0 %2693
        %2695 = vrot.lane.b32.xlu0 %v2247, 32
        %v2696 = vpop.permute.xlu0 %2695
        %2697 = vrot.lane.b32.xlu0 %v2249, 32
        %v2698 = vpop.permute.xlu0 %2697
        %2699 = vrot.lane.b32.xlu0 %v2252, 32
        %v2700 = vpop.permute.xlu0 %2699
        %2701 = vrot.lane.b32.xlu0 %v2254, 32
        %v2702 = vpop.permute.xlu0 %2701
        %2703 = vrot.lane.b32.xlu0 %v2257, 32
        %v2704 = vpop.permute.xlu0 %2703
        %2705 = vrot.lane.b32.xlu0 %v2259, 32
        %v2706 = vpop.permute.xlu0 %2705
        %2707 = vrot.lane.b32.xlu0 %v2262, 32
        %v2708 = vpop.permute.xlu0 %2707
        %2709 = vrot.lane.b32.xlu0 %v2264, 32
        %v2710 = vpop.permute.xlu0 %2709
        %2711 = vrot.lane.b32.xlu0 %v2267, 32
        %v2712 = vpop.permute.xlu0 %2711
        %2713 = vrot.lane.b32.xlu0 %v2269, 32
        %v2714 = vpop.permute.xlu0 %2713
        %2715 = vrot.lane.b32.xlu0 %v2272, 32
        %v2716 = vpop.permute.xlu0 %2715
        %2717 = vrot.lane.b32.xlu0 %v2274, 32
        %v2718 = vpop.permute.xlu0 %2717
        %2719 = vrot.lane.b32.xlu0 %v2277, 32
        %v2720 = vpop.permute.xlu0 %2719
        %2721 = vrot.lane.b32.xlu0 %v2279, 32
        %v2722 = vpop.permute.xlu0 %2721
        %2723 = vrot.lane.b32.xlu0 %v2282, 32
        %v2724 = vpop.permute.xlu0 %2723
        %2725 = vrot.lane.b32.xlu0 %v2284, 32
        %v2726 = vpop.permute.xlu0 %2725
        %2727 = vrot.lane.b32.xlu0 %v2287, 32
        %v2728 = vpop.permute.xlu0 %2727
        %2729 = vrot.lane.b32.xlu0 %v2289, 32
        %v2730 = vpop.permute.xlu0 %2729
        %2731 = vrot.lane.b32.xlu0 %v2292, 32
        %v2732 = vpop.permute.xlu0 %2731
        %2733 = vrot.lane.b32.xlu0 %v2294, 32
        %v2734 = vpop.permute.xlu0 %2733
        %2735 = vrot.lane.b32.xlu0 %v2297, 32
        %v2736 = vpop.permute.xlu0 %2735
        %2737 = vrot.lane.b32.xlu0 %v2299, 32
        %v2738 = vpop.permute.xlu0 %2737
        %2739 = vrot.lane.b32.xlu0 %v2302, 32
        %v2740 = vpop.permute.xlu0 %2739
        %2741 = vrot.lane.b32.xlu0 %v2304, 32
        %v2742 = vpop.permute.xlu0 %2741
        %2743 = vrot.lane.b32.xlu0 %v2307, 32
        %v2744 = vpop.permute.xlu0 %2743
        %2745 = vrot.lane.b32.xlu0 %v2309, 32
        %v2746 = vpop.permute.xlu0 %2745
        %2747 = vrot.lane.b32.xlu0 %v2312, 32
        %v2748 = vpop.permute.xlu0 %2747
        %2749 = vrot.lane.b32.xlu0 %v2314, 32
        %v2750 = vpop.permute.xlu0 %2749
        %2751 = vrot.lane.b32.xlu0 %v2688, 32
        %v2752 = vpop.permute.xlu0 %2751
        %2753 = vrot.lane.b32.xlu0 %v2690, 32
        %v2754 = vpop.permute.xlu0 %2753
        %v2787 = vrot.slane %v2181, 2
        %v2788 = vrot.slane %v2182, 2
        %v2789 = vsel %vm695, %v2787, %v2788
        %v2790 = vrot.slane %v2183, 2
        %v2791 = vsel %vm695, %v2788, %v2790
        %2792 = vrot.lane.b32.xlu0 %v2418, 40
        %v2793 = vpop.permute.xlu0 %2792
        %2794 = vrot.lane.b32.xlu0 %v2420, 40
        %v2795 = vpop.permute.xlu0 %2794
        %2796 = vrot.lane.b32.xlu0 %v2423, 40
        %v2797 = vpop.permute.xlu0 %2796
        %2798 = vrot.lane.b32.xlu0 %v2425, 40
        %v2799 = vpop.permute.xlu0 %2798
        %2800 = vrot.lane.b32.xlu0 %v2428, 40
        %v2801 = vpop.permute.xlu0 %2800
        %2802 = vrot.lane.b32.xlu0 %v2430, 40
        %v2803 = vpop.permute.xlu0 %2802
        %2804 = vrot.lane.b32.xlu0 %v2433, 40
        %v2805 = vpop.permute.xlu0 %2804
        %2806 = vrot.lane.b32.xlu0 %v2435, 40
        %v2807 = vpop.permute.xlu0 %2806
        %2808 = vrot.lane.b32.xlu0 %v2438, 40
        %v2809 = vpop.permute.xlu0 %2808
        %2810 = vrot.lane.b32.xlu0 %v2440, 40
        %v2811 = vpop.permute.xlu0 %2810
        %2812 = vrot.lane.b32.xlu0 %v2443, 40
        %v2813 = vpop.permute.xlu0 %2812
        %2814 = vrot.lane.b32.xlu0 %v2445, 40
        %v2815 = vpop.permute.xlu0 %2814
        %2816 = vrot.lane.b32.xlu0 %v2448, 40
        %v2817 = vpop.permute.xlu0 %2816
        %2818 = vrot.lane.b32.xlu0 %v2450, 40
        %v2819 = vpop.permute.xlu0 %2818
        %2820 = vrot.lane.b32.xlu0 %v2453, 40
        %v2821 = vpop.permute.xlu0 %2820
        %2822 = vrot.lane.b32.xlu0 %v2455, 40
        %v2823 = vpop.permute.xlu0 %2822
        %2824 = vrot.lane.b32.xlu0 %v2458, 40
        %v2825 = vpop.permute.xlu0 %2824
        %2826 = vrot.lane.b32.xlu0 %v2460, 40
        %v2827 = vpop.permute.xlu0 %2826
        %2828 = vrot.lane.b32.xlu0 %v2463, 40
        %v2829 = vpop.permute.xlu0 %2828
        %2830 = vrot.lane.b32.xlu0 %v2465, 40
        %v2831 = vpop.permute.xlu0 %2830
        %2832 = vrot.lane.b32.xlu0 %v2468, 40
        %v2833 = vpop.permute.xlu0 %2832
        %2834 = vrot.lane.b32.xlu0 %v2470, 40
        %v2835 = vpop.permute.xlu0 %2834
        %2836 = vrot.lane.b32.xlu0 %v2473, 40
        %v2837 = vpop.permute.xlu0 %2836
        %2838 = vrot.lane.b32.xlu0 %v2475, 40
        %v2839 = vpop.permute.xlu0 %2838
        %2840 = vrot.lane.b32.xlu0 %v2478, 40
        %v2841 = vpop.permute.xlu0 %2840
        %2842 = vrot.lane.b32.xlu0 %v2480, 40
        %v2843 = vpop.permute.xlu0 %2842
        %2844 = vrot.lane.b32.xlu0 %v2483, 40
        %v2845 = vpop.permute.xlu0 %2844
        %2846 = vrot.lane.b32.xlu0 %v2485, 40
        %v2847 = vpop.permute.xlu0 %2846
        %2848 = vrot.lane.b32.xlu0 %v2488, 40
        %v2849 = vpop.permute.xlu0 %2848
        %2850 = vrot.lane.b32.xlu0 %v2490, 40
        %v2851 = vpop.permute.xlu0 %2850
        %2852 = vrot.lane.b32.xlu0 %v2789, 40
        %v2853 = vpop.permute.xlu0 %2852
        %2854 = vrot.lane.b32.xlu0 %v2791, 40
        %v2855 = vpop.permute.xlu0 %2854
        %2890 = vrot.lane.b32.xlu0 %v2139, 48
        %v2891 = vpop.permute.xlu0 %2890
        %2892 = vrot.lane.b32.xlu0 %v2140, 48
        %v2893 = vpop.permute.xlu0 %2892
        %2894 = vrot.lane.b32.xlu0 %v2142, 48
        %v2895 = vpop.permute.xlu0 %2894
        %2896 = vrot.lane.b32.xlu0 %v2143, 48
        %v2897 = vpop.permute.xlu0 %2896
        %2898 = vrot.lane.b32.xlu0 %v2145, 48
        %v2899 = vpop.permute.xlu0 %2898
        %2900 = vrot.lane.b32.xlu0 %v2146, 48
        %v2901 = vpop.permute.xlu0 %2900
        %2902 = vrot.lane.b32.xlu0 %v2148, 48
        %v2903 = vpop.permute.xlu0 %2902
        %2904 = vrot.lane.b32.xlu0 %v2149, 48
        %v2905 = vpop.permute.xlu0 %2904
        %2906 = vrot.lane.b32.xlu0 %v2151, 48
        %v2907 = vpop.permute.xlu0 %2906
        %2908 = vrot.lane.b32.xlu0 %v2152, 48
        %v2909 = vpop.permute.xlu0 %2908
        %2910 = vrot.lane.b32.xlu0 %v2154, 48
        %v2911 = vpop.permute.xlu0 %2910
        %2912 = vrot.lane.b32.xlu0 %v2155, 48
        %v2913 = vpop.permute.xlu0 %2912
        %2914 = vrot.lane.b32.xlu0 %v2157, 48
        %v2915 = vpop.permute.xlu0 %2914
        %2916 = vrot.lane.b32.xlu0 %v2158, 48
        %v2917 = vpop.permute.xlu0 %2916
        %2918 = vrot.lane.b32.xlu0 %v2160, 48
        %v2919 = vpop.permute.xlu0 %2918
        %2920 = vrot.lane.b32.xlu0 %v2161, 48
        %v2921 = vpop.permute.xlu0 %2920
        %2922 = vrot.lane.b32.xlu0 %v2163, 48
        %v2923 = vpop.permute.xlu0 %2922
        %2924 = vrot.lane.b32.xlu0 %v2164, 48
        %v2925 = vpop.permute.xlu0 %2924
        %2926 = vrot.lane.b32.xlu0 %v2166, 48
        %v2927 = vpop.permute.xlu0 %2926
        %2928 = vrot.lane.b32.xlu0 %v2167, 48
        %v2929 = vpop.permute.xlu0 %2928
        %2930 = vrot.lane.b32.xlu0 %v2169, 48
        %v2931 = vpop.permute.xlu0 %2930
        %2932 = vrot.lane.b32.xlu0 %v2170, 48
        %v2933 = vpop.permute.xlu0 %2932
        %2934 = vrot.lane.b32.xlu0 %v2172, 48
        %v2935 = vpop.permute.xlu0 %2934
        %2936 = vrot.lane.b32.xlu0 %v2173, 48
        %v2937 = vpop.permute.xlu0 %2936
        %2938 = vrot.lane.b32.xlu0 %v2175, 48
        %v2939 = vpop.permute.xlu0 %2938
        %2940 = vrot.lane.b32.xlu0 %v2176, 48
        %v2941 = vpop.permute.xlu0 %2940
        %2942 = vrot.lane.b32.xlu0 %v2178, 48
        %v2943 = vpop.permute.xlu0 %2942
        %2944 = vrot.lane.b32.xlu0 %v2179, 48
        %v2945 = vpop.permute.xlu0 %2944
        %2946 = vrot.lane.b32.xlu0 %v2181, 48
        %v2947 = vpop.permute.xlu0 %2946
        %2948 = vrot.lane.b32.xlu0 %v2182, 48
        %v2949 = vpop.permute.xlu0 %2948
        %2950 = vrot.lane.b32.xlu0 %v2184, 48
        %v2951 = vpop.permute.xlu0 %2950
        %2952 = vrot.lane.b32.xlu0 %v2185, 48
        %v2953 = vpop.permute.xlu0 %2952
        %v2987 = vrot.slane %v2184, 1
        %v2988 = vrot.slane %v2185, 1
        %v2989 = vsel %vm518, %v2987, %v2988
        %v2990 = vrot.slane %v2186, 1
        %v2991 = vsel %vm518, %v2988, %v2990
        %2992 = vrot.lane.b32.xlu0 %v2247, 56
        %v2993 = vpop.permute.xlu0 %2992
        %2994 = vrot.lane.b32.xlu0 %v2249, 56
        %v2995 = vpop.permute.xlu0 %2994
        %2996 = vrot.lane.b32.xlu0 %v2252, 56
        %v2997 = vpop.permute.xlu0 %2996
        %2998 = vrot.lane.b32.xlu0 %v2254, 56
        %v2999 = vpop.permute.xlu0 %2998
        %3000 = vrot.lane.b32.xlu0 %v2257, 56
        %v3001 = vpop.permute.xlu0 %3000
        %3002 = vrot.lane.b32.xlu0 %v2259, 56
        %v3003 = vpop.permute.xlu0 %3002
        %3004 = vrot.lane.b32.xlu0 %v2262, 56
        %v3005 = vpop.permute.xlu0 %3004
        %3006 = vrot.lane.b32.xlu0 %v2264, 56
        %v3007 = vpop.permute.xlu0 %3006
        %3008 = vrot.lane.b32.xlu0 %v2267, 56
        %v3009 = vpop.permute.xlu0 %3008
        %3010 = vrot.lane.b32.xlu0 %v2269, 56
        %v3011 = vpop.permute.xlu0 %3010
        %3012 = vrot.lane.b32.xlu0 %v2272, 56
        %v3013 = vpop.permute.xlu0 %3012
        %3014 = vrot.lane.b32.xlu0 %v2274, 56
        %v3015 = vpop.permute.xlu0 %3014
        %3016 = vrot.lane.b32.xlu0 %v2277, 56
        %v3017 = vpop.permute.xlu0 %3016
        %3018 = vrot.lane.b32.xlu0 %v2279, 56
        %v3019 = vpop.permute.xlu0 %3018
        %3020 = vrot.lane.b32.xlu0 %v2282, 56
        %v3021 = vpop.permute.xlu0 %3020
        %3022 = vrot.lane.b32.xlu0 %v2284, 56
        %v3023 = vpop.permute.xlu0 %3022
        %3024 = vrot.lane.b32.xlu0 %v2287, 56
        %v3025 = vpop.permute.xlu0 %3024
        %3026 = vrot.lane.b32.xlu0 %v2289, 56
        %v3027 = vpop.permute.xlu0 %3026
        %3028 = vrot.lane.b32.xlu0 %v2292, 56
        %v3029 = vpop.permute.xlu0 %3028
        %3030 = vrot.lane.b32.xlu0 %v2294, 56
        %v3031 = vpop.permute.xlu0 %3030
        %3032 = vrot.lane.b32.xlu0 %v2297, 56
        %v3033 = vpop.permute.xlu0 %3032
        %3034 = vrot.lane.b32.xlu0 %v2299, 56
        %v3035 = vpop.permute.xlu0 %3034
        %3036 = vrot.lane.b32.xlu0 %v2302, 56
        %v3037 = vpop.permute.xlu0 %3036
        %3038 = vrot.lane.b32.xlu0 %v2304, 56
        %v3039 = vpop.permute.xlu0 %3038
        %3040 = vrot.lane.b32.xlu0 %v2307, 56
        %v3041 = vpop.permute.xlu0 %3040
        %3042 = vrot.lane.b32.xlu0 %v2309, 56
        %v3043 = vpop.permute.xlu0 %3042
        %3044 = vrot.lane.b32.xlu0 %v2312, 56
        %v3045 = vpop.permute.xlu0 %3044
        %3046 = vrot.lane.b32.xlu0 %v2314, 56
        %v3047 = vpop.permute.xlu0 %3046
        %3048 = vrot.lane.b32.xlu0 %v2688, 56
        %v3049 = vpop.permute.xlu0 %3048
        %3050 = vrot.lane.b32.xlu0 %v2690, 56
        %v3051 = vpop.permute.xlu0 %3050
        %3052 = vrot.lane.b32.xlu0 %v2989, 56
        %v3053 = vpop.permute.xlu0 %3052
        %3054 = vrot.lane.b32.xlu0 %v2991, 56
        %v3055 = vpop.permute.xlu0 %3054
        %v3088 = vrot.slane %v2184, 2
        %v3089 = vrot.slane %v2185, 2
        %v3090 = vsel %vm695, %v3088, %v3089
        %v3091 = vrot.slane %v2186, 2
        %v3092 = vsel %vm695, %v3089, %v3091
        %3093 = vrot.lane.b32.xlu0 %v2423, 64
        %v3094 = vpop.permute.xlu0 %3093
        %3095 = vrot.lane.b32.xlu0 %v2425, 64
        %v3096 = vpop.permute.xlu0 %3095
        %3097 = vrot.lane.b32.xlu0 %v2428, 64
        %v3098 = vpop.permute.xlu0 %3097
        %3099 = vrot.lane.b32.xlu0 %v2430, 64
        %v3100 = vpop.permute.xlu0 %3099
        %3101 = vrot.lane.b32.xlu0 %v2433, 64
        %v3102 = vpop.permute.xlu0 %3101
        %3103 = vrot.lane.b32.xlu0 %v2435, 64
        %v3104 = vpop.permute.xlu0 %3103
        %3105 = vrot.lane.b32.xlu0 %v2438, 64
        %v3106 = vpop.permute.xlu0 %3105
        %3107 = vrot.lane.b32.xlu0 %v2440, 64
        %v3108 = vpop.permute.xlu0 %3107
        %3109 = vrot.lane.b32.xlu0 %v2443, 64
        %v3110 = vpop.permute.xlu0 %3109
        %3111 = vrot.lane.b32.xlu0 %v2445, 64
        %v3112 = vpop.permute.xlu0 %3111
        %3113 = vrot.lane.b32.xlu0 %v2448, 64
        %v3114 = vpop.permute.xlu0 %3113
        %3115 = vrot.lane.b32.xlu0 %v2450, 64
        %v3116 = vpop.permute.xlu0 %3115
        %3117 = vrot.lane.b32.xlu0 %v2453, 64
        %v3118 = vpop.permute.xlu0 %3117
        %3119 = vrot.lane.b32.xlu0 %v2455, 64
        %v3120 = vpop.permute.xlu0 %3119
        %3121 = vrot.lane.b32.xlu0 %v2458, 64
        %v3122 = vpop.permute.xlu0 %3121
        %3123 = vrot.lane.b32.xlu0 %v2460, 64
        %v3124 = vpop.permute.xlu0 %3123
        %3125 = vrot.lane.b32.xlu0 %v2463, 64
        %v3126 = vpop.permute.xlu0 %3125
        %3127 = vrot.lane.b32.xlu0 %v2465, 64
        %v3128 = vpop.permute.xlu0 %3127
        %3129 = vrot.lane.b32.xlu0 %v2468, 64
        %v3130 = vpop.permute.xlu0 %3129
        %3131 = vrot.lane.b32.xlu0 %v2470, 64
        %v3132 = vpop.permute.xlu0 %3131
        %3133 = vrot.lane.b32.xlu0 %v2473, 64
        %v3134 = vpop.permute.xlu0 %3133
        %3135 = vrot.lane.b32.xlu0 %v2475, 64
        %v3136 = vpop.permute.xlu0 %3135
        %3137 = vrot.lane.b32.xlu0 %v2478, 64
        %v3138 = vpop.permute.xlu0 %3137
        %3139 = vrot.lane.b32.xlu0 %v2480, 64
        %v3140 = vpop.permute.xlu0 %3139
        %3141 = vrot.lane.b32.xlu0 %v2483, 64
        %v3142 = vpop.permute.xlu0 %3141
        %3143 = vrot.lane.b32.xlu0 %v2485, 64
        %v3144 = vpop.permute.xlu0 %3143
        %3145 = vrot.lane.b32.xlu0 %v2488, 64
        %v3146 = vpop.permute.xlu0 %3145
        %3147 = vrot.lane.b32.xlu0 %v2490, 64
        %v3148 = vpop.permute.xlu0 %3147
        %3149 = vrot.lane.b32.xlu0 %v2789, 64
        %v3150 = vpop.permute.xlu0 %3149
        %3151 = vrot.lane.b32.xlu0 %v2791, 64
        %v3152 = vpop.permute.xlu0 %3151
        %3153 = vrot.lane.b32.xlu0 %v3090, 64
        %v3154 = vpop.permute.xlu0 %3153
        %3155 = vrot.lane.b32.xlu0 %v3092, 64
        %v3156 = vpop.permute.xlu0 %3155
        %v3189 = vsel %vm279, %v2133, %v2316
        %v3190 = vsel %vm279, %v2134, %v2318
        %v3191 = vsel %vm279, %v2136, %v2320
        %v3192 = vsel %vm279, %v2137, %v2322
        %v3193 = vsel %vm279, %v2139, %v2324
        %v3194 = vsel %vm279, %v2140, %v2326
        %v3195 = vsel %vm279, %v2142, %v2328
        %v3196 = vsel %vm279, %v2143, %v2330
        %v3197 = vsel %vm279, %v2145, %v2332
        %v3198 = vsel %vm279, %v2146, %v2334
        %v3199 = vsel %vm279, %v2148, %v2336
        %v3200 = vsel %vm279, %v2149, %v2338
        %v3201 = vsel %vm279, %v2151, %v2340
        %v3202 = vsel %vm279, %v2152, %v2342
        %v3203 = vsel %vm279, %v2154, %v2344
        %v3204 = vsel %vm279, %v2155, %v2346
        %v3205 = vsel %vm279, %v2157, %v2348
        %v3206 = vsel %vm279, %v2158, %v2350
        %v3207 = vsel %vm279, %v2160, %v2352
        %v3208 = vsel %vm279, %v2161, %v2354
        %v3209 = vsel %vm279, %v2163, %v2356
        %v3210 = vsel %vm279, %v2164, %v2358
        %v3211 = vsel %vm279, %v2166, %v2360
        %v3212 = vsel %vm279, %v2167, %v2362
        %v3213 = vsel %vm279, %v2169, %v2364
        %v3214 = vsel %vm279, %v2170, %v2366
        %v3215 = vsel %vm279, %v2172, %v2368
        %v3216 = vsel %vm279, %v2173, %v2370
        %v3217 = vsel %vm279, %v2175, %v2372
        %v3218 = vsel %vm279, %v2176, %v2374
        %v3219 = vsel %vm279, %v2178, %v2376
        %v3220 = vsel %vm279, %v2179, %v2378
        %v3221 = vsel %vm1571, %v3189, %v2492
        %v3222 = vsel %vm1571, %v3190, %v2494
        %v3223 = vsel %vm1571, %v3191, %v2496
        %v3224 = vsel %vm1571, %v3192, %v2498
        %v3225 = vsel %vm1571, %v3193, %v2500
        %v3226 = vsel %vm1571, %v3194, %v2502
        %v3227 = vsel %vm1571, %v3195, %v2504
        %v3228 = vsel %vm1571, %v3196, %v2506
        %v3229 = vsel %vm1571, %v3197, %v2508
        %v3230 = vsel %vm1571, %v3198, %v2510
        %v3231 = vsel %vm1571, %v3199, %v2512
        %v3232 = vsel %vm1571, %v3200, %v2514
        %v3233 = vsel %vm1571, %v3201, %v2516
        %v3234 = vsel %vm1571, %v3202, %v2518
        %v3235 = vsel %vm1571, %v3203, %v2520
        %v3236 = vsel %vm1571, %v3204, %v2522
        %v3237 = vsel %vm1571, %v3205, %v2524
        %v3238 = vsel %vm1571, %v3206, %v2526
        %v3239 = vsel %vm1571, %v3207, %v2528
        %v3240 = vsel %vm1571, %v3208, %v2530
        %v3241 = vsel %vm1571, %v3209, %v2532
        %v3242 = vsel %vm1571, %v3210, %v2534
        %v3243 = vsel %vm1571, %v3211, %v2536
        %v3244 = vsel %vm1571, %v3212, %v2538
        %v3245 = vsel %vm1571, %v3213, %v2540
        %v3246 = vsel %vm1571, %v3214, %v2542
        %v3247 = vsel %vm1571, %v3215, %v2544
        %v3248 = vsel %vm1571, %v3216, %v2546
        %v3249 = vsel %vm1571, %v3217, %v2548
        %v3250 = vsel %vm1571, %v3218, %v2550
        %v3251 = vsel %vm1571, %v3219, %v2552
        %v3252 = vsel %vm1571, %v3220, %v2554
        %v3253 = vsel %vm1637, %v3221, %v2590
        %v3254 = vsel %vm1637, %v3222, %v2592
        %v3255 = vsel %vm1637, %v3223, %v2594
        %v3256 = vsel %vm1637, %v3224, %v2596
        %v3257 = vsel %vm1637, %v3225, %v2598
        %v3258 = vsel %vm1637, %v3226, %v2600
        %v3259 = vsel %vm1637, %v3227, %v2602
        %v3260 = vsel %vm1637, %v3228, %v2604
        %v3261 = vsel %vm1637, %v3229, %v2606
        %v3262 = vsel %vm1637, %v3230, %v2608
        %v3263 = vsel %vm1637, %v3231, %v2610
        %v3264 = vsel %vm1637, %v3232, %v2612
        %v3265 = vsel %vm1637, %v3233, %v2614
        %v3266 = vsel %vm1637, %v3234, %v2616
        %v3267 = vsel %vm1637, %v3235, %v2618
        %v3268 = vsel %vm1637, %v3236, %v2620
        %v3269 = vsel %vm1637, %v3237, %v2622
        %v3270 = vsel %vm1637, %v3238, %v2624
        %v3271 = vsel %vm1637, %v3239, %v2626
        %v3272 = vsel %vm1637, %v3240, %v2628
        %v3273 = vsel %vm1637, %v3241, %v2630
        %v3274 = vsel %vm1637, %v3242, %v2632
        %v3275 = vsel %vm1637, %v3243, %v2634
        %v3276 = vsel %vm1637, %v3244, %v2636
        %v3277 = vsel %vm1637, %v3245, %v2638
        %v3278 = vsel %vm1637, %v3246, %v2640
        %v3279 = vsel %vm1637, %v3247, %v2642
        %v3280 = vsel %vm1637, %v3248, %v2644
        %v3281 = vsel %vm1637, %v3249, %v2646
        %v3282 = vsel %vm1637, %v3250, %v2648
        %v3283 = vsel %vm1637, %v3251, %v2650
        %v3284 = vsel %vm1637, %v3252, %v2652
        %v3285 = vsel %vm1703, %v3253, %v2692
        %v3286 = vsel %vm1703, %v3254, %v2694
        %v3287 = vsel %vm1703, %v3255, %v2696
        %v3288 = vsel %vm1703, %v3256, %v2698
        %v3289 = vsel %vm1703, %v3257, %v2700
        %v3290 = vsel %vm1703, %v3258, %v2702
        %v3291 = vsel %vm1703, %v3259, %v2704
        %v3292 = vsel %vm1703, %v3260, %v2706
        %v3293 = vsel %vm1703, %v3261, %v2708
        %v3294 = vsel %vm1703, %v3262, %v2710
        %v3295 = vsel %vm1703, %v3263, %v2712
        %v3296 = vsel %vm1703, %v3264, %v2714
        %v3297 = vsel %vm1703, %v3265, %v2716
        %v3298 = vsel %vm1703, %v3266, %v2718
        %v3299 = vsel %vm1703, %v3267, %v2720
        %v3300 = vsel %vm1703, %v3268, %v2722
        %v3301 = vsel %vm1703, %v3269, %v2724
        %v3302 = vsel %vm1703, %v3270, %v2726
        %v3303 = vsel %vm1703, %v3271, %v2728
        %v3304 = vsel %vm1703, %v3272, %v2730
        %v3305 = vsel %vm1703, %v3273, %v2732
        %v3306 = vsel %vm1703, %v3274, %v2734
        %v3307 = vsel %vm1703, %v3275, %v2736
        %v3308 = vsel %vm1703, %v3276, %v2738
        %v3309 = vsel %vm1703, %v3277, %v2740
        %v3310 = vsel %vm1703, %v3278, %v2742
        %v3311 = vsel %vm1703, %v3279, %v2744
        %v3312 = vsel %vm1703, %v3280, %v2746
        %v3313 = vsel %vm1703, %v3281, %v2748
        %v3314 = vsel %vm1703, %v3282, %v2750
        %v3315 = vsel %vm1703, %v3283, %v2752
        %v3316 = vsel %vm1703, %v3284, %v2754
        %vm3317 = vcmask 326656
        %v3318 = vsel %vm3317, %v3285, %v2793
        %v3319 = vsel %vm3317, %v3286, %v2795
        %v3320 = vsel %vm3317, %v3287, %v2797
        %v3321 = vsel %vm3317, %v3288, %v2799
        %v3322 = vsel %vm3317, %v3289, %v2801
        %v3323 = vsel %vm3317, %v3290, %v2803
        %v3324 = vsel %vm3317, %v3291, %v2805
        %v3325 = vsel %vm3317, %v3292, %v2807
        %v3326 = vsel %vm3317, %v3293, %v2809
        %v3327 = vsel %vm3317, %v3294, %v2811
        %v3328 = vsel %vm3317, %v3295, %v2813
        %v3329 = vsel %vm3317, %v3296, %v2815
        %v3330 = vsel %vm3317, %v3297, %v2817
        %v3331 = vsel %vm3317, %v3298, %v2819
        %v3332 = vsel %vm3317, %v3299, %v2821
        %v3333 = vsel %vm3317, %v3300, %v2823
        %v3334 = vsel %vm3317, %v3301, %v2825
        %v3335 = vsel %vm3317, %v3302, %v2827
        %v3336 = vsel %vm3317, %v3303, %v2829
        %v3337 = vsel %vm3317, %v3304, %v2831
        %v3338 = vsel %vm3317, %v3305, %v2833
        %v3339 = vsel %vm3317, %v3306, %v2835
        %v3340 = vsel %vm3317, %v3307, %v2837
        %v3341 = vsel %vm3317, %v3308, %v2839
        %v3342 = vsel %vm3317, %v3309, %v2841
        %v3343 = vsel %vm3317, %v3310, %v2843
        %v3344 = vsel %vm3317, %v3311, %v2845
        %v3345 = vsel %vm3317, %v3312, %v2847
        %v3346 = vsel %vm3317, %v3313, %v2849
        %v3347 = vsel %vm3317, %v3314, %v2851
        %v3348 = vsel %vm3317, %v3315, %v2853
        %v3349 = vsel %vm3317, %v3316, %v2855
        %vm3350 = vcmask 392192
        %v3351 = vsel %vm3350, %v3318, %v2891
        %v3352 = vsel %vm3350, %v3319, %v2893
        %v3353 = vsel %vm3350, %v3320, %v2895
        %v3354 = vsel %vm3350, %v3321, %v2897
        %v3355 = vsel %vm3350, %v3322, %v2899
        %v3356 = vsel %vm3350, %v3323, %v2901
        %v3357 = vsel %vm3350, %v3324, %v2903
        %v3358 = vsel %vm3350, %v3325, %v2905
        %v3359 = vsel %vm3350, %v3326, %v2907
        %v3360 = vsel %vm3350, %v3327, %v2909
        %v3361 = vsel %vm3350, %v3328, %v2911
        %v3362 = vsel %vm3350, %v3329, %v2913
        %v3363 = vsel %vm3350, %v3330, %v2915
        %v3364 = vsel %vm3350, %v3331, %v2917
        %v3365 = vsel %vm3350, %v3332, %v2919
        %v3366 = vsel %vm3350, %v3333, %v2921
        %v3367 = vsel %vm3350, %v3334, %v2923
        %v3368 = vsel %vm3350, %v3335, %v2925
        %v3369 = vsel %vm3350, %v3336, %v2927
        %v3370 = vsel %vm3350, %v3337, %v2929
        %v3371 = vsel %vm3350, %v3338, %v2931
        %v3372 = vsel %vm3350, %v3339, %v2933
        %v3373 = vsel %vm3350, %v3340, %v2935
        %v3374 = vsel %vm3350, %v3341, %v2937
        %v3375 = vsel %vm3350, %v3342, %v2939
        %v3376 = vsel %vm3350, %v3343, %v2941
        %v3377 = vsel %vm3350, %v3344, %v2943
        %v3378 = vsel %vm3350, %v3345, %v2945
        %v3379 = vsel %vm3350, %v3346, %v2947
        %v3380 = vsel %vm3350, %v3347, %v2949
        %v3381 = vsel %vm3350, %v3348, %v2951
        %v3382 = vsel %vm3350, %v3349, %v2953
        %vm3383 = vcmask 457728
        %v3384 = vsel %vm3383, %v3351, %v2993
        %v3385 = vsel %vm3383, %v3352, %v2995
        %v3386 = vsel %vm3383, %v3353, %v2997
        %v3387 = vsel %vm3383, %v3354, %v2999
        %v3388 = vsel %vm3383, %v3355, %v3001
        %v3389 = vsel %vm3383, %v3356, %v3003
        %v3390 = vsel %vm3383, %v3357, %v3005
        %v3391 = vsel %vm3383, %v3358, %v3007
        %v3392 = vsel %vm3383, %v3359, %v3009
        %v3393 = vsel %vm3383, %v3360, %v3011
        %v3394 = vsel %vm3383, %v3361, %v3013
        %v3395 = vsel %vm3383, %v3362, %v3015
        %v3396 = vsel %vm3383, %v3363, %v3017
        %v3397 = vsel %vm3383, %v3364, %v3019
        %v3398 = vsel %vm3383, %v3365, %v3021
        %v3399 = vsel %vm3383, %v3366, %v3023
        %v3400 = vsel %vm3383, %v3367, %v3025
        %v3401 = vsel %vm3383, %v3368, %v3027
        %v3402 = vsel %vm3383, %v3369, %v3029
        %v3403 = vsel %vm3383, %v3370, %v3031
        %v3404 = vsel %vm3383, %v3371, %v3033
        %v3405 = vsel %vm3383, %v3372, %v3035
        %v3406 = vsel %vm3383, %v3373, %v3037
        %v3407 = vsel %vm3383, %v3374, %v3039
        %v3408 = vsel %vm3383, %v3375, %v3041
        %v3409 = vsel %vm3383, %v3376, %v3043
        %v3410 = vsel %vm3383, %v3377, %v3045
        %v3411 = vsel %vm3383, %v3378, %v3047
        %v3412 = vsel %vm3383, %v3379, %v3049
        %v3413 = vsel %vm3383, %v3380, %v3051
        %v3414 = vsel %vm3383, %v3381, %v3053
        %v3415 = vsel %vm3383, %v3382, %v3055
        %vm3416 = vcmask 523264
        %v3417 = vsel %vm3416, %v3384, %v3094
        %v3418 = vsel %vm3416, %v3385, %v3096
        %v3419 = vsel %vm3416, %v3386, %v3098
        %v3420 = vsel %vm3416, %v3387, %v3100
        %v3421 = vsel %vm3416, %v3388, %v3102
        %v3422 = vsel %vm3416, %v3389, %v3104
        %v3423 = vsel %vm3416, %v3390, %v3106
        %v3424 = vsel %vm3416, %v3391, %v3108
        %v3425 = vsel %vm3416, %v3392, %v3110
        %v3426 = vsel %vm3416, %v3393, %v3112
        %v3427 = vsel %vm3416, %v3394, %v3114
        %v3428 = vsel %vm3416, %v3395, %v3116
        %v3429 = vsel %vm3416, %v3396, %v3118
        %v3430 = vsel %vm3416, %v3397, %v3120
        %v3431 = vsel %vm3416, %v3398, %v3122
        %v3432 = vsel %vm3416, %v3399, %v3124
        %v3433 = vsel %vm3416, %v3400, %v3126
        %v3434 = vsel %vm3416, %v3401, %v3128
        %v3435 = vsel %vm3416, %v3402, %v3130
        %v3436 = vsel %vm3416, %v3403, %v3132
        %v3437 = vsel %vm3416, %v3404, %v3134
        %v3438 = vsel %vm3416, %v3405, %v3136
        %v3439 = vsel %vm3416, %v3406, %v3138
        %v3440 = vsel %vm3416, %v3407, %v3140
        %v3441 = vsel %vm3416, %v3408, %v3142
        %v3442 = vsel %vm3416, %v3409, %v3144
        %v3443 = vsel %vm3416, %v3410, %v3146
        %v3444 = vsel %vm3416, %v3411, %v3148
        %v3445 = vsel %vm3416, %v3412, %v3150
        %v3446 = vsel %vm3416, %v3413, %v3152
        %v3447 = vsel %vm3416, %v3414, %v3154
        %v3448 = vsel %vm3416, %v3415, %v3156
        %v3450 = vlaneseq
        %v3451 = vshrl.u32 %v3450, 7
        %v3452 = vsub.s32 0, %v3451
        %v3453 = vrot.slane %v350, %v3452
        %vm3455 = vcmask 588800
        %v3457 = vsel %vm3455, %v3417, 0
        %v3460 = vsel %vm3455, %v3418, 0
        %v3463 = vsel %vm3455, %v3419, 0
        %v3466 = vsel %vm3455, %v3420, 0
        %v3469 = vsel %vm3455, %v3421, 0
        %v3472 = vsel %vm3455, %v3422, 0
        %v3475 = vsel %vm3455, %v3423, 0
        %v3478 = vsel %vm3455, %v3424, 0
        %v3481 = vsel %vm3455, %v3425, 0
        %v3484 = vsel %vm3455, %v3426, 0
        %v3487 = vsel %vm3455, %v3427, 0
        %v3490 = vsel %vm3455, %v3428, 0
        %v3493 = vsel %vm3455, %v3429, 0
        %v3496 = vsel %vm3455, %v3430, 0
        %v3499 = vsel %vm3455, %v3431, 0
        %v3502 = vsel %vm3455, %v3432, 0
        %v3505 = vsel %vm3455, %v3433, 0
        %v3508 = vsel %vm3455, %v3434, 0
        %v3511 = vsel %vm3455, %v3435, 0
        %v3514 = vsel %vm3455, %v3436, 0
        %v3517 = vsel %vm3455, %v3437, 0
        %v3520 = vsel %vm3455, %v3438, 0
        %v3523 = vsel %vm3455, %v3439, 0
        %v3526 = vsel %vm3455, %v3440, 0
        %v3529 = vsel %vm3455, %v3441, 0
        %v3532 = vsel %vm3455, %v3442, 0
        %v3535 = vsel %vm3455, %v3443, 0
        %v3538 = vsel %vm3455, %v3444, 0
        %v3541 = vsel %vm3455, %v3445, 0
        %v3544 = vsel %vm3455, %v3446, 0
        %v3547 = vsel %vm3455, %v3447, 0
        %v3550 = vsel %vm3455, %v3448, 0
        %3552 = vmatprep.subr.mxu0 0.0
        %3553 = vmatpush1.msra.mxu0 %v340
        %3554 = vmatprep.subr.mxu0 0.0
        %3555 = vmatpush1.msra.mxu0 %v341
        %3556 = vmatprep.subr.mxu0 0.0
        %3557 = vmatpush1.msra.mxu0 %v342
        %3558 = vmatprep.subr.mxu0 0.0
        %3559 = vmatpush1.msra.mxu0 %v343
        %3560 = vmatprep.subr.mxu0 0.0
        %3561 = vmatpush1.msra.mxu0 %v344
        %3562 = vmatprep.subr.mxu0 0.0
        %3563 = vmatpush1.msra.mxu0 %v345
        %3564 = vmatprep.subr.mxu0 0.0
        %3565 = vmatpush1.msra.mxu0 %v346
        %3566 = vmatprep.subr.mxu0 0.0
        %3567 = vmatpush1.msra.mxu0 %v347
        %3568 = vmatprep.subr.mxu0 0.0
        %3569 = vmatpush1.msra.mxu0 %v348
        %3570 = vmatprep.subr.mxu0 0.0
        %3571 = vmatpush1.msra.mxu0 0.0
        %3572 = vmatprep.subr.mxu0 0.0
        %3573 = vmatpush1.msra.mxu0 0.0
        %3574 = vmatprep.subr.mxu0 0.0
        %3575 = vmatpush1.msra.mxu0 0.0
        %3576 = vmatprep.subr.mxu0 0.0
        %3577 = vmatpush1.msra.mxu0 0.0
        %3578 = vmatprep.subr.mxu0 0.0
        %3579 = vmatpush1.msra.mxu0 0.0
        %3580 = vmatprep.subr.mxu0 0.0
        %3581 = vmatpush1.msra.mxu0 0.0
        %3582 = vmatprep.subr.mxu0 0.0
        %3583 = vmatpush1.msra.mxu0 0.0
        %3584 = vmatprep.subr.mxu0 0.0
        %3585 = vmatpush1.msra.mxu0 0.0
        %3586 = vmatprep.subr.mxu0 0.0
        %3587 = vmatpush1.msra.mxu0 0.0
        %3588 = vmatprep.subr.mxu0 0.0
        %3589 = vmatpush1.msra.mxu0 0.0
        %3590 = vmatprep.subr.mxu0 0.0
        %3591 = vmatpush1.msra.mxu0 0.0
        %3592 = vmatprep.subr.mxu0 0.0
        %3593 = vmatpush1.msra.mxu0 0.0
        %3594 = vmatprep.subr.mxu0 0.0
        %3595 = vmatpush1.msra.mxu0 0.0
        %3596 = vmatprep.subr.mxu0 0.0
        %3597 = vmatpush1.msra.mxu0 0.0
        %3598 = vmatprep.subr.mxu0 0.0
        %3599 = vmatpush1.msra.mxu0 0.0
        %3600 = vmatprep.subr.mxu0 0.0
        %3601 = vmatpush1.msra.mxu0 0.0
        %3602 = vmatprep.subr.mxu0 0.0
        %3603 = vmatpush1.msra.mxu0 0.0
        %3604 = vmatprep.subr.mxu0 0.0
        %3605 = vmatpush1.msra.mxu0 0.0
        %3606 = vmatprep.subr.mxu0 0.0
        %3607 = vmatpush1.msra.mxu0 0.0
        %3608 = vmatprep.subr.mxu0 0.0
        %3609 = vmatpush1.msra.mxu0 0.0
        %3610 = vmatprep.subr.mxu0 0.0
        %3611 = vmatpush1.msra.mxu0 0.0
        %3612 = vmatprep.subr.mxu0 0.0
        %3613 = vmatpush1.msra.mxu0 0.0
        %3614 = vmatprep.subr.mxu0 0.0
        %3615 = vmatpush1.msra.mxu0 0.0
        %3616 = vmatprep.mubr.f32.mxu0 0.0
        %3617 = vmatmul.mubr.f32.gmra.mrb[0].mxu0 %v3457
        %v3618 = vpop.f32.mrb[0].mxu0
        %v3619 = vadd.f32 %v3453, %v3618
        %v3620 = vpop.f32.mrb[0].mxu0
        %3621 = vmatprep.mubr.f32.mxu0 0.0
        %3622 = vmatmul.mubr.f32.gmra.mrb[0].mxu0 %v3460
        %v3623 = vpop.f32.mrb[0].mxu0
        %v3624 = vadd.f32 %v3453, %v3623
        %v3625 = vpop.f32.mrb[0].mxu0
        %3626 = vmatprep.mubr.f32.mxu0 0.0
        %3627 = vmatmul.mubr.f32.gmra.mrb[0].mxu0 %v3463
        %v3628 = vpop.f32.mrb[0].mxu0
        %v3629 = vadd.f32 %v3453, %v3628
        %v3630 = vpop.f32.mrb[0].mxu0
        %3631 = vmatprep.mubr.f32.mxu0 0.0
        %3632 = vmatmul.mubr.f32.gmra.mrb[0].mxu0 %v3466
        %v3633 = vpop.f32.mrb[0].mxu0
        %v3634 = vadd.f32 %v3453, %v3633
        %v3635 = vpop.f32.mrb[0].mxu0
        %3636 = vmatprep.mubr.f32.mxu0 0.0
        %3637 = vmatmul.mubr.f32.gmra.mrb[0].mxu0 %v3469
        %v3638 = vpop.f32.mrb[0].mxu0
        %v3639 = vadd.f32 %v3453, %v3638
        %v3640 = vpop.f32.mrb[0].mxu0
        %3641 = vmatprep.mubr.f32.mxu0 0.0
        %3642 = vmatmul.mubr.f32.gmra.mrb[0].mxu0 %v3472
        %v3643 = vpop.f32.mrb[0].mxu0
        %v3644 = vadd.f32 %v3453, %v3643
        %v3645 = vpop.f32.mrb[0].mxu0
        %3646 = vmatprep.mubr.f32.mxu0 0.0
        %3647 = vmatmul.mubr.f32.gmra.mrb[0].mxu0 %v3475
        %v3648 = vpop.f32.mrb[0].mxu0
        %v3649 = vadd.f32 %v3453, %v3648
        %v3650 = vpop.f32.mrb[0].mxu0
        %3651 = vmatprep.mubr.f32.mxu0 0.0
        %3652 = vmatmul.mubr.f32.gmra.mrb[0].mxu0 %v3478
        %v3653 = vpop.f32.mrb[0].mxu0
        %v3654 = vadd.f32 %v3453, %v3653
        %v3655 = vpop.f32.mrb[0].mxu0
        %3656 = vmatprep.mubr.f32.mxu0 0.0
        %3657 = vmatmul.mubr.f32.gmra.mrb[0].mxu0 %v3481
        %v3658 = vpop.f32.mrb[0].mxu0
        %v3659 = vadd.f32 %v3453, %v3658
        %v3660 = vpop.f32.mrb[0].mxu0
        %3661 = vmatprep.mubr.f32.mxu0 0.0
        %3662 = vmatmul.mubr.f32.gmra.mrb[0].mxu0 %v3484
        %v3663 = vpop.f32.mrb[0].mxu0
        %v3664 = vadd.f32 %v3453, %v3663
        %v3665 = vpop.f32.mrb[0].mxu0
        %3666 = vmatprep.mubr.f32.mxu0 0.0
        %3667 = vmatmul.mubr.f32.gmra.mrb[0].mxu0 %v3487
        %v3668 = vpop.f32.mrb[0].mxu0
        %v3669 = vadd.f32 %v3453, %v3668
        %v3670 = vpop.f32.mrb[0].mxu0
        %3671 = vmatprep.mubr.f32.mxu0 0.0
        %3672 = vmatmul.mubr.f32.gmra.mrb[0].mxu0 %v3490
        %v3673 = vpop.f32.mrb[0].mxu0
        %v3674 = vadd.f32 %v3453, %v3673
        %v3675 = vpop.f32.mrb[0].mxu0
        %3676 = vmatprep.mubr.f32.mxu0 0.0
        %3677 = vmatmul.mubr.f32.gmra.mrb[0].mxu0 %v3493
        %v3678 = vpop.f32.mrb[0].mxu0
        %v3679 = vadd.f32 %v3453, %v3678
        %v3680 = vpop.f32.mrb[0].mxu0
        %3681 = vmatprep.mubr.f32.mxu0 0.0
        %3682 = vmatmul.mubr.f32.gmra.mrb[0].mxu0 %v3496
        %v3683 = vpop.f32.mrb[0].mxu0
        %v3684 = vadd.f32 %v3453, %v3683
        %v3685 = vpop.f32.mrb[0].mxu0
        %3686 = vmatprep.mubr.f32.mxu0 0.0
        %3687 = vmatmul.mubr.f32.gmra.mrb[0].mxu0 %v3499
        %v3688 = vpop.f32.mrb[0].mxu0
        %v3689 = vadd.f32 %v3453, %v3688
        %v3690 = vpop.f32.mrb[0].mxu0
        %3691 = vmatprep.mubr.f32.mxu0 0.0
        %3692 = vmatmul.mubr.f32.gmra.mrb[0].mxu0 %v3502
        %v3693 = vpop.f32.mrb[0].mxu0
        %v3694 = vadd.f32 %v3453, %v3693
        %v3695 = vpop.f32.mrb[0].mxu0
        %3696 = vmatprep.mubr.f32.mxu0 0.0
        %3697 = vmatmul.mubr.f32.gmra.mrb[0].mxu0 %v3505
        %v3698 = vpop.f32.mrb[0].mxu0
        %v3699 = vadd.f32 %v3453, %v3698
        %v3700 = vpop.f32.mrb[0].mxu0
        %3701 = vmatprep.mubr.f32.mxu0 0.0
        %3702 = vmatmul.mubr.f32.gmra.mrb[0].mxu0 %v3508
        %v3703 = vpop.f32.mrb[0].mxu0
        %v3704 = vadd.f32 %v3453, %v3703
        %v3705 = vpop.f32.mrb[0].mxu0
        %3706 = vmatprep.mubr.f32.mxu0 0.0
        %3707 = vmatmul.mubr.f32.gmra.mrb[0].mxu0 %v3511
        %v3708 = vpop.f32.mrb[0].mxu0
        %v3709 = vadd.f32 %v3453, %v3708
        %v3710 = vpop.f32.mrb[0].mxu0
        %3711 = vmatprep.mubr.f32.mxu0 0.0
        %3712 = vmatmul.mubr.f32.gmra.mrb[0].mxu0 %v3514
        %v3713 = vpop.f32.mrb[0].mxu0
        %v3714 = vadd.f32 %v3453, %v3713
        %v3715 = vpop.f32.mrb[0].mxu0
        %3716 = vmatprep.mubr.f32.mxu0 0.0
        %3717 = vmatmul.mubr.f32.gmra.mrb[0].mxu0 %v3517
        %v3718 = vpop.f32.mrb[0].mxu0
        %v3719 = vadd.f32 %v3453, %v3718
        %v3720 = vpop.f32.mrb[0].mxu0
        %3721 = vmatprep.mubr.f32.mxu0 0.0
        %3722 = vmatmul.mubr.f32.gmra.mrb[0].mxu0 %v3520
        %v3723 = vpop.f32.mrb[0].mxu0
        %v3724 = vadd.f32 %v3453, %v3723
        %v3725 = vpop.f32.mrb[0].mxu0
        %3726 = vmatprep.mubr.f32.mxu0 0.0
        %3727 = vmatmul.mubr.f32.gmra.mrb[0].mxu0 %v3523
        %v3728 = vpop.f32.mrb[0].mxu0
        %v3729 = vadd.f32 %v3453, %v3728
        %v3730 = vpop.f32.mrb[0].mxu0
        %3731 = vmatprep.mubr.f32.mxu0 0.0
        %3732 = vmatmul.mubr.f32.gmra.mrb[0].mxu0 %v3526
        %v3733 = vpop.f32.mrb[0].mxu0
        %v3734 = vadd.f32 %v3453, %v3733
        %v3735 = vpop.f32.mrb[0].mxu0
        %3736 = vmatprep.mubr.f32.mxu0 0.0
        %3737 = vmatmul.mubr.f32.gmra.mrb[0].mxu0 %v3529
        %v3738 = vpop.f32.mrb[0].mxu0
        %v3739 = vadd.f32 %v3453, %v3738
        %v3740 = vpop.f32.mrb[0].mxu0
        %3741 = vmatprep.mubr.f32.mxu0 0.0
        %3742 = vmatmul.mubr.f32.gmra.mrb[0].mxu0 %v3532
        %v3743 = vpop.f32.mrb[0].mxu0
        %v3744 = vadd.f32 %v3453, %v3743
        %v3745 = vpop.f32.mrb[0].mxu0
        %3746 = vmatprep.mubr.f32.mxu0 0.0
        %3747 = vmatmul.mubr.f32.gmra.mrb[0].mxu0 %v3535
        %v3748 = vpop.f32.mrb[0].mxu0
        %v3749 = vadd.f32 %v3453, %v3748
        %v3750 = vpop.f32.mrb[0].mxu0
        %3751 = vmatprep.mubr.f32.mxu0 0.0
        %3752 = vmatmul.mubr.f32.gmra.mrb[0].mxu0 %v3538
        %v3753 = vpop.f32.mrb[0].mxu0
        %v3754 = vadd.f32 %v3453, %v3753
        %v3755 = vpop.f32.mrb[0].mxu0
        %3756 = vmatprep.mubr.f32.mxu0 0.0
        %3757 = vmatmul.mubr.f32.gmra.mrb[0].mxu0 %v3541
        %v3758 = vpop.f32.mrb[0].mxu0
        %v3759 = vadd.f32 %v3453, %v3758
        %v3760 = vpop.f32.mrb[0].mxu0
        %3761 = vmatprep.mubr.f32.mxu0 0.0
        %3762 = vmatmul.mubr.f32.gmra.mrb[0].mxu0 %v3544
        %v3763 = vpop.f32.mrb[0].mxu0
        %v3764 = vadd.f32 %v3453, %v3763
        %v3765 = vpop.f32.mrb[0].mxu0
        %3766 = vmatprep.mubr.f32.mxu0 0.0
        %3767 = vmatmul.mubr.f32.gmra.mrb[0].mxu0 %v3547
        %v3768 = vpop.f32.mrb[0].mxu0
        %v3769 = vadd.f32 %v3453, %v3768
        %v3770 = vpop.f32.mrb[0].mxu0
        %3771 = vmatprep.mubr.f32.mxu0 0.0
        %3772 = vmatmul.mubr.f32.gmra.mrb[0].mxu0 %v3550
        %v3773 = vpop.f32.mrb[0].mxu0
        %v3774 = vadd.f32 %v3453, %v3773
        %v3775 = vpop.f32.mrb[0].mxu0
        %3776 = vdwg.mxu0
        %v3777 = vmax.f32 %v3619, 0.0
        %v3778 = vmax.f32 %v3624, 0.0
        %v3779 = vmax.f32 %v3629, 0.0
        %v3780 = vmax.f32 %v3634, 0.0
        %v3781 = vmax.f32 %v3639, 0.0
        %v3782 = vmax.f32 %v3644, 0.0
        %v3783 = vmax.f32 %v3649, 0.0
        %v3784 = vmax.f32 %v3654, 0.0
        %v3785 = vmax.f32 %v3659, 0.0
        %v3786 = vmax.f32 %v3664, 0.0
        %v3787 = vmax.f32 %v3669, 0.0
        %v3788 = vmax.f32 %v3674, 0.0
        %v3789 = vmax.f32 %v3679, 0.0
        %v3790 = vmax.f32 %v3684, 0.0
        %v3791 = vmax.f32 %v3689, 0.0
        %v3792 = vmax.f32 %v3694, 0.0
        %v3793 = vmax.f32 %v3699, 0.0
        %v3794 = vmax.f32 %v3704, 0.0
        %v3795 = vmax.f32 %v3709, 0.0
        %v3796 = vmax.f32 %v3714, 0.0
        %v3797 = vmax.f32 %v3719, 0.0
        %v3798 = vmax.f32 %v3724, 0.0
        %v3799 = vmax.f32 %v3729, 0.0
        %v3800 = vmax.f32 %v3734, 0.0
        %v3801 = vmax.f32 %v3739, 0.0
        %v3802 = vmax.f32 %v3744, 0.0
        %v3803 = vmax.f32 %v3749, 0.0
        %v3804 = vmax.f32 %v3754, 0.0
        %v3805 = vmax.f32 %v3759, 0.0
        %v3806 = vmax.f32 %v3764, 0.0
        %v3807 = vmax.f32 %v3769, 0.0
        %v3808 = vmax.f32 %v3774, 0.0
        %3809 = vxpose.xlu0.b32.start [1/16] %v3777, 128
        %3810 = vxpose.xlu0.b32.cont [2/16] %v3778, 128
        %3811 = vxpose.xlu0.b32.cont [3/16] %v3779, 128
        %3812 = vxpose.xlu0.b32.cont [4/16] %v3780, 128
        %3813 = vxpose.xlu0.b32.cont [5/16] %v3781, 128
        %3814 = vxpose.xlu0.b32.cont [6/16] %v3782, 128
        %3815 = vxpose.xlu0.b32.cont [7/16] %v3783, 128
        %3816 = vxpose.xlu0.b32.cont [8/16] %v3784, 128
        %3817 = vxpose.xlu0.b32.cont [9/16] %v3785, 128
        %3818 = vxpose.xlu0.b32.cont [10/16] %v3786, 128
        %3819 = vxpose.xlu0.b32.cont [11/16] %v3787, 128
        %3820 = vxpose.xlu0.b32.cont [12/16] %v3788, 128
        %3821 = vxpose.xlu0.b32.cont [13/16] %v3789, 128
        %3822 = vxpose.xlu0.b32.cont [14/16] %v3790, 128
        %3823 = vxpose.xlu0.b32.cont [15/16] %v3791, 128
        %3824 = vxpose.xlu0.b32.end [16/16] %v3792, 128
        %v3825 = vpop.trf.xlu0
        %v3826 = vpop.trf.xlu0
        %v3827 = vpop.trf.xlu0
        %v3828 = vpop.trf.xlu0
        %v3829 = vpop.trf.xlu0
        %v3830 = vpop.trf.xlu0
        %v3831 = vpop.trf.xlu0
        %v3832 = vpop.trf.xlu0
        %v3833 = vpop.trf.xlu0
        %v3834 = vpop.trf.xlu0
        %v3835 = vpop.trf.xlu0
        %v3836 = vpop.trf.xlu0
        %v3837 = vpop.trf.xlu0
        %v3838 = vpop.trf.xlu0
        %v3839 = vpop.trf.xlu0
        %v3840 = vpop.trf.xlu0
        %3841 = vxpose.xlu0.b32.start [1/16] %v3793, 128
        %3842 = vxpose.xlu0.b32.cont [2/16] %v3794, 128
        %3843 = vxpose.xlu0.b32.cont [3/16] %v3795, 128
        %3844 = vxpose.xlu0.b32.cont [4/16] %v3796, 128
        %3845 = vxpose.xlu0.b32.cont [5/16] %v3797, 128
        %3846 = vxpose.xlu0.b32.cont [6/16] %v3798, 128
        %3847 = vxpose.xlu0.b32.cont [7/16] %v3799, 128
        %3848 = vxpose.xlu0.b32.cont [8/16] %v3800, 128
        %3849 = vxpose.xlu0.b32.cont [9/16] %v3801, 128
        %3850 = vxpose.xlu0.b32.cont [10/16] %v3802, 128
        %3851 = vxpose.xlu0.b32.cont [11/16] %v3803, 128
        %3852 = vxpose.xlu0.b32.cont [12/16] %v3804, 128
        %3853 = vxpose.xlu0.b32.cont [13/16] %v3805, 128
        %3854 = vxpose.xlu0.b32.cont [14/16] %v3806, 128
        %3855 = vxpose.xlu0.b32.cont [15/16] %v3807, 128
        %3856 = vxpose.xlu0.b32.end [16/16] %v3808, 128
        %v3857 = vpop.trf.xlu0
        %v3858 = vpop.trf.xlu0
        %v3859 = vpop.trf.xlu0
        %v3860 = vpop.trf.xlu0
        %v3861 = vpop.trf.xlu0
        %v3862 = vpop.trf.xlu0
        %v3863 = vpop.trf.xlu0
        %v3864 = vpop.trf.xlu0
        %v3865 = vpop.trf.xlu0
        %v3866 = vpop.trf.xlu0
        %v3867 = vpop.trf.xlu0
        %v3868 = vpop.trf.xlu0
        %v3869 = vpop.trf.xlu0
        %v3870 = vpop.trf.xlu0
        %v3871 = vpop.trf.xlu0
        %v3872 = vpop.trf.xlu0
        %3873 = vst [vmem:[%s217] sm:$0xff] %v3825
        %3874 = vst [vmem:[%s217 + $0x8] sm:$0xff] %v3857
        %s3875 = sand.u32 %s137, 1
        %s3876 = scalar_lea.sflag [#allocation5], %s3875
        %s3877 = sand.u32 %s137, 1
        %s3878 = smul.addr %s3877, 16
        %s3879 = scalar_lea.vmem [#allocation4], %s3878
        // Predicated region
        $region41: #{tpu_custom_call.1} parent=39 // pred_check
          %p3880 = pneg %p147
        $region42: #{tpu_custom_call.1} parent=39 // pred_check_branch
          %3882 = sbr.rel (%p3880) target = $region44
        $region43: #{tpu_custom_call.1} parent=39 // pred_region
          %s3884 = ssub.s32 256, 256
          %3885 = vsyncadd %s3876, %s3884
          %s3886 = smul.addr %s19, 2
          %s3887 = smul.addr %s3886, 128
          %s3888 = scalar_lea.hbm %s5, %s3887
          %s3890 = sshll.u32 %s3879, 4
          %s3891 = int_to_ptr.vmem [resolvable:$true] %s3890
          %3893 = dma.vmem_to_hbm [thread:$0]  %s3891, 256, %s3888, %s3876
        $region44: #{tpu_custom_call.1} parent=39 // pred_fallthru
          _
      $region40: #{tpu_custom_call.1} parent=5 // pred_fallthru
        _
      %p3894 = scmp.le.s32.totalorder 2, %s14
      // Predicated region
      $region45: #{tpu_custom_call.1} parent=5 // pred_check
        %p3895 = pneg %p3894
      $region46: #{tpu_custom_call.1} parent=5 // pred_check_branch
        %3897 = sbr.rel (%p3895) target = $region48
      $region47: #{tpu_custom_call.1} parent=5 // pred_region
        %s3898 = ssub.s32 %s14, 2
        // Predicated region
        $region49: #{tpu_custom_call.1} parent=47 // pred_check
          %p3899 = pneg %p153
        $region50: #{tpu_custom_call.1} parent=47 // pred_check_branch
          %3901 = sbr.rel (%p3899) target = $region52
        $region51: #{tpu_custom_call.1} parent=47 // pred_region
          %s3902 = sand.u32 %s138, 1
          %s3903 = scalar_lea.sflag [#allocation5], %s3902
          %s3904 = sand.u32 %s138, 1
          %s3905 = smul.addr %s3904, 16
          %s3906 = scalar_lea.vmem [#allocation4], %s3905
          %3907 = dma.done %s3903, 256
        $region52: #{tpu_custom_call.1} parent=47 // pred_fallthru
          _
      $region48: #{tpu_custom_call.1} parent=5 // pred_fallthru
        _
    $region6: #{tpu_custom_call.1} parent=1 // loop_footer
      %s18 = sadd.s32 1, %s14
    $region7: #{tpu_custom_call.1} parent=1 // loop_footer_branch
      %13 = sbr.rel target = $region3
    $region8: #{tpu_custom_call.1} parent=1 // loop_exit
      _
    %3908 = vsyncpa [#allocation5], 1
    %s3909 = scalar_lea.sflag [#allocation5], 1
    %3910 = vsyncpa %s3909, 1

</llo_original>
